<compile_context>
chip_gen: v7x
topology: tpu7x:2x2x1
jax: 0.10.0
libtpu: 0.0.40
codegen_flags: <defaults>
</compile_context>

<pallas_src>
from functools import partial

import jax
import jax.numpy as jnp
from jax.experimental import pallas as pl
from jax.experimental.pallas import tpu as pltpu

MIN_VALUE = -0.1
MAX_VALUE = 0.3


def _fused_kernel(x_ref, w1_ref, b1_ref, w2_ref, b2_ref, w3_ref, b3_ref,
                  o_ref, xwin_ref, v4_ref, v7_ref):
    C = xwin_ref.shape[0]                 # input channels (3)
    C1, _, Wv = v4_ref.shape              # 16 v4 planes, width Wo+1
    C2, R, Wo = v7_ref.shape              # 8  v7 planes, chunk rows R, width Wo
    C3, T, _ = o_ref.shape                # 8 output channels, T rows per tile
    H = x_ref.shape[1]
    Ho = H - 6                            # valid output rows
    n_chunks = T // R

    tile0 = pl.program_id(0) * T          # first output row of this tile

    def chunk_body(c, carry):
        # Clamp the chunk start so (a) input reads never go out of bounds and
        # (b) chunks of the last (partial) tile recompute duplicate valid rows
        # instead of touching rows that do not exist.  Writes for rows >= Ho
        # are dropped by the partial-block writeback.
        g0 = jnp.minimum(tile0 + c * R, Ho - R)   # global output row of chunk
        off = g0 - tile0                          # row offset inside the block

        # Hoist the 3-channel input window out of the o1 loop: one dynamic-
        # offset read per channel per chunk; the 16 o1 iterations below read
        # this compact, statically indexed copy (full-width => lane-aligned).
        for ci in range(C):
            xwin_ref[ci] = x_ref[ci, pl.ds(g0 + 2, R + 2), :]

        # ---- stage 1: v1 -> v4 planes, each written to scratch exactly once.
        # Column offsets 2/3 fold the two conv "padding=1" border crops.
        for o1 in range(C1):
            v1 = xwin_ref[0] * w1_ref[0, o1]
            for ci in range(1, C):
                v1 = v1 + xwin_ref[ci] * w1_ref[ci, o1]
            v1 = v1 + b1_ref[o1]                       # (R+2, W)
            a = v1[:, 2:2 + Wv]                        # (R+2, Wv)
            b = v1[:, 3:3 + Wv]
            mc = jnp.maximum(a, b)
            pooled = jnp.maximum(mc[:-1, :], mc[1:, :])        # (R+1, Wv)
            # TODO(synk): torch adds the (H-2,W-2) map to the (H-3,W-3) pooled
            # map (shape error in the original module); we crop v1 to the
            # pooled size.
            v4_ref[o1] = a[:-1, :] + jnp.maximum(pooled, 0.0)

        # ---- stage 1b: v5 = w2 . v4 (+b2), pool+relu -> v7 planes.
        # Two v5/v7 channels per pass share every v4-plane load; accumulation
        # stays in vregs and each v7 plane is stored exactly once.
        # TODO(synk): conv_transpose2d_1 declares in_channels=3 but receives 16
        # channels; we use the actual 16.
        for o2s in range(0, C2, 2):
            cols = list(range(o2s, min(o2s + 2, C2)))
            p = v4_ref[0]
            accs = [p * w2_ref[0, o2] + b2_ref[o2] for o2 in cols]
            for o1 in range(1, C1):
                p = v4_ref[o1]
                accs = [acc + p * w2_ref[o1, o2] for acc, o2 in zip(accs, cols)]
            for acc, o2 in zip(accs, cols):
                mc = jnp.maximum(acc[:, :Wo], acc[:, 1:Wo + 1])
                v7_ref[o2] = jnp.maximum(jnp.maximum(mc[:-1, :], mc[1:, :]), 0.0)

        # ---- stage 2: out = clamp(w3 . v7 + b3), one store per channel.
        # TODO(synk): conv_transpose2d_2 declares in_channels=3 but receives 8
        # channels; we use the actual 8.
        for o3s in range(0, C3, 2):
            cols = list(range(o3s, min(o3s + 2, C3)))
            p = v7_ref[0]
            accs = [p * w3_ref[0, o3] + b3_ref[o3] for o3 in cols]
            for o2 in range(1, C2):
                p = v7_ref[o2]
                accs = [acc + p * w3_ref[o2, o3] for acc, o3 in zip(accs, cols)]
            for acc, o3 in zip(accs, cols):
                o_ref[o3, pl.ds(off, R), :] = jnp.clip(acc, MIN_VALUE, MAX_VALUE)

        return carry

    jax.lax.fori_loop(0, n_chunks, chunk_body, 0)


def _round_up(a, m):
    return (a + m - 1) // m * m


def _choose_row_tile(Ho, tile_h, R):
    """Largest T <= tile_h (multiple of R) whose remainder tile keeps >= R rows."""
    T = min(_round_up(Ho, R), max(R, (tile_h // R) * R))
    while T > R and not (Ho % T == 0 or Ho % T >= R):
        T -= R
    if not (Ho % T == 0 or Ho % T >= R):
        T = _round_up(Ho, R)          # single-tile fallback (always valid)
    return T


@partial(jax.jit, static_argnames=("tile_h", "row_chunk"))
def model_forward(x, w1, b1, w2, b2, w3, b3, *, tile_h=64, row_chunk=8):
    """x: (1, C, H, W) float32 (NCHW).  Returns (1, C3, H-6, W-6) float32."""
    n, C, H, W = x.shape
    assert n == 1, "kernel handles batch size 1 (matches the reference input)"
    C1, C2, C3 = w1.shape[1], w2.shape[1], w3.shape[1]
    Ho, Wo = H - 6, W - 6
    Wv = Wo + 1
    R = row_chunk
    assert R % 8 == 0 and Ho >= R and Wo >= 1, "input too small for this kernel"

    T = _choose_row_tile(Ho, tile_h, R)
    grid = (pl.cdiv(Ho, T),)

    # --- VMEM budget and per-generation cap (<= 3/4 of physical VMEM) ---
    def _pad(r, c):
        return _round_up(r, 8) * _round_up(max(c, 1), 128)

    need = 4 * (2 * C * _pad(H, W)            # resident input (double-buffered)
                + 2 * C3 * _pad(T, Wo)        # output block  (double-buffered)
                + C * _pad(R + 2, W)          # per-chunk input window scratch
                + C1 * _pad(R + 1, Wv)        # v4 planes
                + C2 * _pad(R, Wo))           # v7 planes
    try:
        cap = int(pltpu.get_tpu_info().vmem_capacity_bytes)
    except Exception:
        cap = 64 * 2**20                      # v7x physical VMEM (smallest gen)
    assert need < (cap * 3) // 4, "input too large for the VMEM-resident design"
    vmem_limit = min(max(32 * 2**20, int(need * 1.3)), (cap * 3) // 4)

    smem = pl.BlockSpec(memory_space=pltpu.MemorySpace.SMEM)
    out = pl.pallas_call(
        _fused_kernel,
        out_shape=jax.ShapeDtypeStruct((C3, Ho, Wo), jnp.float32),
        grid=grid,
        in_specs=[
            # full input, resident in VMEM across grid steps (constant index)
            pl.BlockSpec((C, H, W), lambda i: (0, 0, 0)),
            smem, smem, smem, smem, smem, smem,
        ],
        out_specs=pl.BlockSpec((C3, T, Wo), lambda i: (0, i, 0)),
        scratch_shapes=[
            pltpu.VMEM((C, R + 2, W), jnp.float32),    # hoisted input window
            pltpu.VMEM((C1, R + 1, Wv), jnp.float32),  # v4 planes
            pltpu.VMEM((C2, R, Wo), jnp.float32),      # v7 planes
        ],
        compiler_params=pltpu.CompilerParams(
            dimension_semantics=("parallel",),   # v7x: row tiles split over 2 TCs
            vmem_limit_bytes=vmem_limit,
        ),
    )(x[0], w1, b1, w2, b2, w3, b3)
    return out[None]


def reference(x, w1, b1, w2, b2, w3, b3):
    # pure-JAX reference with identical (fixed) semantics
    xs = x[0]

    def pool(v):
        return jnp.maximum(jnp.maximum(v[:, :-1, :-1], v[:, :-1, 1:]),
                           jnp.maximum(v[:, 1:, :-1], v[:, 1:, 1:]))

    v1 = jnp.einsum("io,ihw->ohw", w1, xs[:, 1:-1, 1:-1]) + b1[:, None, None]
    v4 = v1[:, :-1, :-1] + jnp.maximum(pool(v1), 0.0)
    v5 = jnp.einsum("io,ihw->ohw", w2, v4) + b2[:, None, None]
    v7 = jnp.maximum(pool(v5), 0.0)
    v8 = jnp.einsum("io,ihw->ohw", w3, v7[:, 1:-1, 1:-1]) + b3[:, None, None]
    return jnp.clip(v8, MIN_VALUE, MAX_VALUE)[None]


if __name__ == "__main__":
    key = jax.random.PRNGKey(0)
    ks = jax.random.split(key, 7)

    # Small stand-in for the 1x3x768x768 torch input.  tile_h=16 -> 3 row tiles
    # (the last one a partial block) with two 8-row chunks each: exercises the
    # grid, the partial-block writeback and the clamped boundary chunk.
    H = W = 46
    x = jax.random.normal(ks[0], (1, 3, H, W), jnp.float32)

    def uinit(k, shape, fan_in):
        b = 1.0 / (fan_in ** 0.5)
        return jax.random.uniform(k, shape, jnp.float32, -b, b)

    w1 = uinit(ks[1], (3, 16), 3)      # conv_transpose2d      weight (Cin, Cout)
    b1 = uinit(ks[2], (16,), 3)
    w2 = uinit(ks[3], (16, 8), 16)     # conv_transpose2d_1
    b2 = uinit(ks[4], (8,), 16)
    w3 = uinit(ks[5], (8, 8), 8)       # conv_transpose2d_2
    b3 = uinit(ks[6], (8,), 8)

    out = model_forward(x, w1, b1, w2, b2, w3, b3, tile_h=16)
    out = jax.block_until_ready(out)

    ref = reference(x, w1, b1, w2, b2, w3, b3)
    assert out.shape == (1, 8, H - 6, W - 6), out.shape
    assert jnp.allclose(out, ref, atol=1e-4, rtol=1e-4), "mismatch vs reference"
    print("KERNEL_OK")
</pallas_src>

<mosaic_0001>
module attributes {stable_mosaic.version = 11 : i64} {
  func.func @_fused_kernel(%arg0: i32, %arg1: memref<3x46x46xf32, #tpu.memory_space<vmem>>, %arg2: memref<3x16xf32, #tpu.memory_space<smem>>, %arg3: memref<16xf32, #tpu.memory_space<smem>>, %arg4: memref<16x8xf32, #tpu.memory_space<smem>>, %arg5: memref<8xf32, #tpu.memory_space<smem>>, %arg6: memref<8x8xf32, #tpu.memory_space<smem>>, %arg7: memref<8xf32, #tpu.memory_space<smem>>, %arg8: memref<8x16x40xf32, #tpu.memory_space<vmem>>, %arg9: memref<3x10x46xf32, #tpu.memory_space<vmem>>, %arg10: memref<16x9x41xf32, #tpu.memory_space<vmem>>, %arg11: memref<8x8x40xf32, #tpu.memory_space<vmem>>) attributes {dimension_semantics = [#tpu.dimension_semantics<parallel>], iteration_bounds = array<i64: 3>, scalar_prefetch = 0 : i64, scratch_operands = 3 : i64, tpu.core_type = #tpu.core_type<tc>, window_params = [{pipeline_mode = #tpu.pipeline_mode<synchronous>, transform_indices = @transform_0, window_bounds = array<i64: 3, 46, 46>}, {transform_indices = @transform_1, window_bounds = array<i64: 3, 16>}, {transform_indices = @transform_2, window_bounds = array<i64: 16>}, {transform_indices = @transform_3, window_bounds = array<i64: 16, 8>}, {transform_indices = @transform_4, window_bounds = array<i64: 8>}, {transform_indices = @transform_5, window_bounds = array<i64: 8, 8>}, {transform_indices = @transform_6, window_bounds = array<i64: 8>}, {transform_indices = @transform_7, window_bounds = array<i64: 8, 16, 40>}]} {
    %c16_i32 = arith.constant 16 : i32
    %0 = arith.muli %arg0, %c16_i32 : i32
    %c0_i32 = arith.constant 0 : i32
    %c2_i32 = arith.constant 2 : i32
    %1 = arith.addi %c0_i32, %c2_i32 : i32
    %c1_i32 = arith.constant 1 : i32
    scf.for %arg12 = %c0_i32 to %1 step %c1_i32  : i32 {
      %c8_i32 = arith.constant 8 : i32
      %2 = arith.muli %arg12, %c8_i32 : i32
      %3 = arith.addi %0, %2 : i32
      %c32_i32 = arith.constant 32 : i32
      %4 = arith.minsi %3, %c32_i32 : i32
      %5 = arith.subi %4, %0 : i32
      %c2_i32_1 = arith.constant 2 : i32
      %6 = arith.addi %4, %c2_i32_1 : i32
      %c0 = arith.constant 0 : index
      %7 = arith.index_cast %6 : i32 to index
      %c0_2 = arith.constant 0 : index
      %8 = vector.load %arg1[%c0, %7, %c0_2] : memref<3x46x46xf32, #tpu.memory_space<vmem>>, vector<1x10x46xf32>
      %9 = vector.shape_cast %8 : vector<1x10x46xf32> to vector<10x46xf32>
      %c0_3 = arith.constant 0 : index
      %c0_4 = arith.constant 0 : index
      %c0_5 = arith.constant 0 : index
      %10 = vector.load %arg9[%c0_3, %c0_4, %c0_5] : memref<3x10x46xf32, #tpu.memory_space<vmem>>, vector<1x10x46xf32>
      %11 = vector.shape_cast %10 : vector<1x10x46xf32> to vector<10x46xf32>
      %12 = vector.shape_cast %9 : vector<10x46xf32> to vector<1x10x46xf32>
      tpu.vector_store %arg9[%c0_3, %c0_4, %c0_5], %12 {strides = array<i32>} : memref<3x10x46xf32, #tpu.memory_space<vmem>>, vector<1x10x46xf32>,
      %c2_i32_6 = arith.constant 2 : i32
      %13 = arith.addi %4, %c2_i32_6 : i32
      %c1 = arith.constant 1 : index
      %14 = arith.index_cast %13 : i32 to index
      %c0_7 = arith.constant 0 : index
      %15 = vector.load %arg1[%c1, %14, %c0_7] : memref<3x46x46xf32, #tpu.memory_space<vmem>>, vector<1x10x46xf32>
      %16 = vector.shape_cast %15 : vector<1x10x46xf32> to vector<10x46xf32>
      %c1_8 = arith.constant 1 : index
      %c0_9 = arith.constant 0 : index
      %c0_10 = arith.constant 0 : index
      %17 = vector.load %arg9[%c1_8, %c0_9, %c0_10] : memref<3x10x46xf32, #tpu.memory_space<vmem>>, vector<1x10x46xf32>
      %18 = vector.shape_cast %17 : vector<1x10x46xf32> to vector<10x46xf32>
      %19 = vector.shape_cast %16 : vector<10x46xf32> to vector<1x10x46xf32>
      tpu.vector_store %arg9[%c1_8, %c0_9, %c0_10], %19 {strides = array<i32>} : memref<3x10x46xf32, #tpu.memory_space<vmem>>, vector<1x10x46xf32>,
      %c2_i32_11 = arith.constant 2 : i32
      %20 = arith.addi %4, %c2_i32_11 : i32
      %c2 = arith.constant 2 : index
      %21 = arith.index_cast %20 : i32 to index
      %c0_12 = arith.constant 0 : index
      %22 = vector.load %arg1[%c2, %21, %c0_12] : memref<3x46x46xf32, #tpu.memory_space<vmem>>, vector<1x10x46xf32>
      %23 = vector.shape_cast %22 : vector<1x10x46xf32> to vector<10x46xf32>
      %c2_13 = arith.constant 2 : index
      %c0_14 = arith.constant 0 : index
      %c0_15 = arith.constant 0 : index
      %24 = vector.load %arg9[%c2_13, %c0_14, %c0_15] : memref<3x10x46xf32, #tpu.memory_space<vmem>>, vector<1x10x46xf32>
      %25 = vector.shape_cast %24 : vector<1x10x46xf32> to vector<10x46xf32>
      %26 = vector.shape_cast %23 : vector<10x46xf32> to vector<1x10x46xf32>
      tpu.vector_store %arg9[%c2_13, %c0_14, %c0_15], %26 {strides = array<i32>} : memref<3x10x46xf32, #tpu.memory_space<vmem>>, vector<1x10x46xf32>,
      %c0_16 = arith.constant 0 : index
      %c0_17 = arith.constant 0 : index
      %c0_18 = arith.constant 0 : index
      %27 = vector.load %arg9[%c0_16, %c0_17, %c0_18] : memref<3x10x46xf32, #tpu.memory_space<vmem>>, vector<1x10x46xf32>
      %28 = vector.shape_cast %27 : vector<1x10x46xf32> to vector<10x46xf32>
      %c0_19 = arith.constant 0 : index
      %c0_20 = arith.constant 0 : index
      %29 = memref.load %arg2[%c0_19, %c0_20] : memref<3x16xf32, #tpu.memory_space<smem>>
      %30 = vector.broadcast %29 : f32 to vector<10x46xf32>
      %31 = arith.mulf %28, %30 : vector<10x46xf32>
      %c1_21 = arith.constant 1 : index
      %c0_22 = arith.constant 0 : index
      %c0_23 = arith.constant 0 : index
      %32 = vector.load %arg9[%c1_21, %c0_22, %c0_23] : memref<3x10x46xf32, #tpu.memory_space<vmem>>, vector<1x10x46xf32>
      %33 = vector.shape_cast %32 : vector<1x10x46xf32> to vector<10x46xf32>
      %c1_24 = arith.constant 1 : index
      %c0_25 = arith.constant 0 : index
      %34 = memref.load %arg2[%c1_24, %c0_25] : memref<3x16xf32, #tpu.memory_space<smem>>
      %35 = vector.broadcast %34 : f32 to vector<10x46xf32>
      %36 = arith.mulf %33, %35 : vector<10x46xf32>
      %37 = arith.addf %31, %36 : vector<10x46xf32>
      %c2_26 = arith.constant 2 : index
      %c0_27 = arith.constant 0 : index
      %c0_28 = arith.constant 0 : index
      %38 = vector.load %arg9[%c2_26, %c0_27, %c0_28] : memref<3x10x46xf32, #tpu.memory_space<vmem>>, vector<1x10x46xf32>
      %39 = vector.shape_cast %38 : vector<1x10x46xf32> to vector<10x46xf32>
      %c2_29 = arith.constant 2 : index
      %c0_30 = arith.constant 0 : index
      %40 = memref.load %arg2[%c2_29, %c0_30] : memref<3x16xf32, #tpu.memory_space<smem>>
      %41 = vector.broadcast %40 : f32 to vector<10x46xf32>
      %42 = arith.mulf %39, %41 : vector<10x46xf32>
      %43 = arith.addf %37, %42 : vector<10x46xf32>
      %c0_31 = arith.constant 0 : index
      %44 = memref.load %arg3[%c0_31] : memref<16xf32, #tpu.memory_space<smem>>
      %45 = vector.broadcast %44 : f32 to vector<10x46xf32>
      %46 = arith.addf %43, %45 : vector<10x46xf32>
      %47 = vector.extract_strided_slice %46 {offsets = [0, 2], sizes = [10, 41], strides = [1, 1]} : vector<10x46xf32> to vector<10x41xf32>
      %48 = vector.extract_strided_slice %46 {offsets = [0, 3], sizes = [10, 41], strides = [1, 1]} : vector<10x46xf32> to vector<10x41xf32>
      %49 = arith.maximumf %47, %48 : vector<10x41xf32>
      %50 = vector.extract_strided_slice %49 {offsets = [0, 0], sizes = [9, 41], strides = [1, 1]} : vector<10x41xf32> to vector<9x41xf32>
      %51 = vector.extract_strided_slice %49 {offsets = [1, 0], sizes = [9, 41], strides = [1, 1]} : vector<10x41xf32> to vector<9x41xf32>
      %52 = arith.maximumf %50, %51 : vector<9x41xf32>
      %53 = vector.extract_strided_slice %47 {offsets = [0, 0], sizes = [9, 41], strides = [1, 1]} : vector<10x41xf32> to vector<9x41xf32>
      %cst = arith.constant 0.000000e+00 : f32
      %54 = vector.broadcast %cst : f32 to vector<9x41xf32>
      %55 = arith.maximumf %52, %54 : vector<9x41xf32>
      %56 = arith.addf %53, %55 : vector<9x41xf32>
      %c0_32 = arith.constant 0 : index
      %c0_33 = arith.constant 0 : index
      %c0_34 = arith.constant 0 : index
      %57 = vector.load %arg10[%c0_32, %c0_33, %c0_34] : memref<16x9x41xf32, #tpu.memory_space<vmem>>, vector<1x9x41xf32>
      %58 = vector.shape_cast %57 : vector<1x9x41xf32> to vector<9x41xf32>
      %59 = vector.shape_cast %56 : vector<9x41xf32> to vector<1x9x41xf32>
      tpu.vector_store %arg10[%c0_32, %c0_33, %c0_34], %59 {strides = array<i32>} : memref<16x9x41xf32, #tpu.memory_space<vmem>>, vector<1x9x41xf32>,
      %c0_35 = arith.constant 0 : index
      %c0_36 = arith.constant 0 : index
      %c0_37 = arith.constant 0 : index
      %60 = vector.load %arg9[%c0_35, %c0_36, %c0_37] : memref<3x10x46xf32, #tpu.memory_space<vmem>>, vector<1x10x46xf32>
      %61 = vector.shape_cast %60 : vector<1x10x46xf32> to vector<10x46xf32>
      %c0_38 = arith.constant 0 : index
      %c1_39 = arith.constant 1 : index
      %62 = memref.load %arg2[%c0_38, %c1_39] : memref<3x16xf32, #tpu.memory_space<smem>>
      %63 = vector.broadcast %62 : f32 to vector<10x46xf32>
      %64 = arith.mulf %61, %63 : vector<10x46xf32>
      %c1_40 = arith.constant 1 : index
      %c0_41 = arith.constant 0 : index
      %c0_42 = arith.constant 0 : index
      %65 = vector.load %arg9[%c1_40, %c0_41, %c0_42] : memref<3x10x46xf32, #tpu.memory_space<vmem>>, vector<1x10x46xf32>
      %66 = vector.shape_cast %65 : vector<1x10x46xf32> to vector<10x46xf32>
      %c1_43 = arith.constant 1 : index
      %c1_44 = arith.constant 1 : index
      %67 = memref.load %arg2[%c1_43, %c1_44] : memref<3x16xf32, #tpu.memory_space<smem>>
      %68 = vector.broadcast %67 : f32 to vector<10x46xf32>
      %69 = arith.mulf %66, %68 : vector<10x46xf32>
      %70 = arith.addf %64, %69 : vector<10x46xf32>
      %c2_45 = arith.constant 2 : index
      %c0_46 = arith.constant 0 : index
      %c0_47 = arith.constant 0 : index
      %71 = vector.load %arg9[%c2_45, %c0_46, %c0_47] : memref<3x10x46xf32, #tpu.memory_space<vmem>>, vector<1x10x46xf32>
      %72 = vector.shape_cast %71 : vector<1x10x46xf32> to vector<10x46xf32>
      %c2_48 = arith.constant 2 : index
      %c1_49 = arith.constant 1 : index
      %73 = memref.load %arg2[%c2_48, %c1_49] : memref<3x16xf32, #tpu.memory_space<smem>>
      %74 = vector.broadcast %73 : f32 to vector<10x46xf32>
      %75 = arith.mulf %72, %74 : vector<10x46xf32>
      %76 = arith.addf %70, %75 : vector<10x46xf32>
      %c1_50 = arith.constant 1 : index
      %77 = memref.load %arg3[%c1_50] : memref<16xf32, #tpu.memory_space<smem>>
      %78 = vector.broadcast %77 : f32 to vector<10x46xf32>
      %79 = arith.addf %76, %78 : vector<10x46xf32>
      %80 = vector.extract_strided_slice %79 {offsets = [0, 2], sizes = [10, 41], strides = [1, 1]} : vector<10x46xf32> to vector<10x41xf32>
      %81 = vector.extract_strided_slice %79 {offsets = [0, 3], sizes = [10, 41], strides = [1, 1]} : vector<10x46xf32> to vector<10x41xf32>
      %82 = arith.maximumf %80, %81 : vector<10x41xf32>
      %83 = vector.extract_strided_slice %82 {offsets = [0, 0], sizes = [9, 41], strides = [1, 1]} : vector<10x41xf32> to vector<9x41xf32>
      %84 = vector.extract_strided_slice %82 {offsets = [1, 0], sizes = [9, 41], strides = [1, 1]} : vector<10x41xf32> to vector<9x41xf32>
      %85 = arith.maximumf %83, %84 : vector<9x41xf32>
      %86 = vector.extract_strided_slice %80 {offsets = [0, 0], sizes = [9, 41], strides = [1, 1]} : vector<10x41xf32> to vector<9x41xf32>
      %cst_51 = arith.constant 0.000000e+00 : f32
      %87 = vector.broadcast %cst_51 : f32 to vector<9x41xf32>
      %88 = arith.maximumf %85, %87 : vector<9x41xf32>
      %89 = arith.addf %86, %88 : vector<9x41xf32>
      %c1_52 = arith.constant 1 : index
      %c0_53 = arith.constant 0 : index
      %c0_54 = arith.constant 0 : index
      %90 = vector.load %arg10[%c1_52, %c0_53, %c0_54] : memref<16x9x41xf32, #tpu.memory_space<vmem>>, vector<1x9x41xf32>
      %91 = vector.shape_cast %90 : vector<1x9x41xf32> to vector<9x41xf32>
      %92 = vector.shape_cast %89 : vector<9x41xf32> to vector<1x9x41xf32>
      tpu.vector_store %arg10[%c1_52, %c0_53, %c0_54], %92 {strides = array<i32>} : memref<16x9x41xf32, #tpu.memory_space<vmem>>, vector<1x9x41xf32>,
      %c0_55 = arith.constant 0 : index
      %c0_56 = arith.constant 0 : index
      %c0_57 = arith.constant 0 : index
      %93 = vector.load %arg9[%c0_55, %c0_56, %c0_57] : memref<3x10x46xf32, #tpu.memory_space<vmem>>, vector<1x10x46xf32>
      %94 = vector.shape_cast %93 : vector<1x10x46xf32> to vector<10x46xf32>
      %c0_58 = arith.constant 0 : index
      %c2_59 = arith.constant 2 : index
      %95 = memref.load %arg2[%c0_58, %c2_59] : memref<3x16xf32, #tpu.memory_space<smem>>
      %96 = vector.broadcast %95 : f32 to vector<10x46xf32>
      %97 = arith.mulf %94, %96 : vector<10x46xf32>
      %c1_60 = arith.constant 1 : index
      %c0_61 = arith.constant 0 : index
      %c0_62 = arith.constant 0 : index
      %98 = vector.load %arg9[%c1_60, %c0_61, %c0_62] : memref<3x10x46xf32, #tpu.memory_space<vmem>>, vector<1x10x46xf32>
      %99 = vector.shape_cast %98 : vector<1x10x46xf32> to vector<10x46xf32>
      %c1_63 = arith.constant 1 : index
      %c2_64 = arith.constant 2 : index
      %100 = memref.load %arg2[%c1_63, %c2_64] : memref<3x16xf32, #tpu.memory_space<smem>>
      %101 = vector.broadcast %100 : f32 to vector<10x46xf32>
      %102 = arith.mulf %99, %101 : vector<10x46xf32>
      %103 = arith.addf %97, %102 : vector<10x46xf32>
      %c2_65 = arith.constant 2 : index
      %c0_66 = arith.constant 0 : index
      %c0_67 = arith.constant 0 : index
      %104 = vector.load %arg9[%c2_65, %c0_66, %c0_67] : memref<3x10x46xf32, #tpu.memory_space<vmem>>, vector<1x10x46xf32>
      %105 = vector.shape_cast %104 : vector<1x10x46xf32> to vector<10x46xf32>
      %c2_68 = arith.constant 2 : index
      %c2_69 = arith.constant 2 : index
      %106 = memref.load %arg2[%c2_68, %c2_69] : memref<3x16xf32, #tpu.memory_space<smem>>
      %107 = vector.broadcast %106 : f32 to vector<10x46xf32>
      %108 = arith.mulf %105, %107 : vector<10x46xf32>
      %109 = arith.addf %103, %108 : vector<10x46xf32>
      %c2_70 = arith.constant 2 : index
      %110 = memref.load %arg3[%c2_70] : memref<16xf32, #tpu.memory_space<smem>>
      %111 = vector.broadcast %110 : f32 to vector<10x46xf32>
      %112 = arith.addf %109, %111 : vector<10x46xf32>
      %113 = vector.extract_strided_slice %112 {offsets = [0, 2], sizes = [10, 41], strides = [1, 1]} : vector<10x46xf32> to vector<10x41xf32>
      %114 = vector.extract_strided_slice %112 {offsets = [0, 3], sizes = [10, 41], strides = [1, 1]} : vector<10x46xf32> to vector<10x41xf32>
      %115 = arith.maximumf %113, %114 : vector<10x41xf32>
      %116 = vector.extract_strided_slice %115 {offsets = [0, 0], sizes = [9, 41], strides = [1, 1]} : vector<10x41xf32> to vector<9x41xf32>
      %117 = vector.extract_strided_slice %115 {offsets = [1, 0], sizes = [9, 41], strides = [1, 1]} : vector<10x41xf32> to vector<9x41xf32>
      %118 = arith.maximumf %116, %117 : vector<9x41xf32>
      %119 = vector.extract_strided_slice %113 {offsets = [0, 0], sizes = [9, 41], strides = [1, 1]} : vector<10x41xf32> to vector<9x41xf32>
      %cst_71 = arith.constant 0.000000e+00 : f32
      %120 = vector.broadcast %cst_71 : f32 to vector<9x41xf32>
      %121 = arith.maximumf %118, %120 : vector<9x41xf32>
      %122 = arith.addf %119, %121 : vector<9x41xf32>
      %c2_72 = arith.constant 2 : index
      %c0_73 = arith.constant 0 : index
      %c0_74 = arith.constant 0 : index
      %123 = vector.load %arg10[%c2_72, %c0_73, %c0_74] : memref<16x9x41xf32, #tpu.memory_space<vmem>>, vector<1x9x41xf32>
      %124 = vector.shape_cast %123 : vector<1x9x41xf32> to vector<9x41xf32>
      %125 = vector.shape_cast %122 : vector<9x41xf32> to vector<1x9x41xf32>
      tpu.vector_store %arg10[%c2_72, %c0_73, %c0_74], %125 {strides = array<i32>} : memref<16x9x41xf32, #tpu.memory_space<vmem>>, vector<1x9x41xf32>,
      %c0_75 = arith.constant 0 : index
      %c0_76 = arith.constant 0 : index
      %c0_77 = arith.constant 0 : index
      %126 = vector.load %arg9[%c0_75, %c0_76, %c0_77] : memref<3x10x46xf32, #tpu.memory_space<vmem>>, vector<1x10x46xf32>
      %127 = vector.shape_cast %126 : vector<1x10x46xf32> to vector<10x46xf32>
      %c0_78 = arith.constant 0 : index
      %c3 = arith.constant 3 : index
      %128 = memref.load %arg2[%c0_78, %c3] : memref<3x16xf32, #tpu.memory_space<smem>>
      %129 = vector.broadcast %128 : f32 to vector<10x46xf32>
      %130 = arith.mulf %127, %129 : vector<10x46xf32>
      %c1_79 = arith.constant 1 : index
      %c0_80 = arith.constant 0 : index
      %c0_81 = arith.constant 0 : index
      %131 = vector.load %arg9[%c1_79, %c0_80, %c0_81] : memref<3x10x46xf32, #tpu.memory_space<vmem>>, vector<1x10x46xf32>
      %132 = vector.shape_cast %131 : vector<1x10x46xf32> to vector<10x46xf32>
      %c1_82 = arith.constant 1 : index
      %c3_83 = arith.constant 3 : index
      %133 = memref.load %arg2[%c1_82, %c3_83] : memref<3x16xf32, #tpu.memory_space<smem>>
      %134 = vector.broadcast %133 : f32 to vector<10x46xf32>
      %135 = arith.mulf %132, %134 : vector<10x46xf32>
      %136 = arith.addf %130, %135 : vector<10x46xf32>
      %c2_84 = arith.constant 2 : index
      %c0_85 = arith.constant 0 : index
      %c0_86 = arith.constant 0 : index
      %137 = vector.load %arg9[%c2_84, %c0_85, %c0_86] : memref<3x10x46xf32, #tpu.memory_space<vmem>>, vector<1x10x46xf32>
      %138 = vector.shape_cast %137 : vector<1x10x46xf32> to vector<10x46xf32>
      %c2_87 = arith.constant 2 : index
      %c3_88 = arith.constant 3 : index
      %139 = memref.load %arg2[%c2_87, %c3_88] : memref<3x16xf32, #tpu.memory_space<smem>>
      %140 = vector.broadcast %139 : f32 to vector<10x46xf32>
      %141 = arith.mulf %138, %140 : vector<10x46xf32>
      %142 = arith.addf %136, %141 : vector<10x46xf32>
      %c3_89 = arith.constant 3 : index
      %143 = memref.load %arg3[%c3_89] : memref<16xf32, #tpu.memory_space<smem>>
      %144 = vector.broadcast %143 : f32 to vector<10x46xf32>
      %145 = arith.addf %142, %144 : vector<10x46xf32>
      %146 = vector.extract_strided_slice %145 {offsets = [0, 2], sizes = [10, 41], strides = [1, 1]} : vector<10x46xf32> to vector<10x41xf32>
      %147 = vector.extract_strided_slice %145 {offsets = [0, 3], sizes = [10, 41], strides = [1, 1]} : vector<10x46xf32> to vector<10x41xf32>
      %148 = arith.maximumf %146, %147 : vector<10x41xf32>
      %149 = vector.extract_strided_slice %148 {offsets = [0, 0], sizes = [9, 41], strides = [1, 1]} : vector<10x41xf32> to vector<9x41xf32>
      %150 = vector.extract_strided_slice %148 {offsets = [1, 0], sizes = [9, 41], strides = [1, 1]} : vector<10x41xf32> to vector<9x41xf32>
      %151 = arith.maximumf %149, %150 : vector<9x41xf32>
      %152 = vector.extract_strided_slice %146 {offsets = [0, 0], sizes = [9, 41], strides = [1, 1]} : vector<10x41xf32> to vector<9x41xf32>
      %cst_90 = arith.constant 0.000000e+00 : f32
      %153 = vector.broadcast %cst_90 : f32 to vector<9x41xf32>
      %154 = arith.maximumf %151, %153 : vector<9x41xf32>
      %155 = arith.addf %152, %154 : vector<9x41xf32>
      %c3_91 = arith.constant 3 : index
      %c0_92 = arith.constant 0 : index
      %c0_93 = arith.constant 0 : index
      %156 = vector.load %arg10[%c3_91, %c0_92, %c0_93] : memref<16x9x41xf32, #tpu.memory_space<vmem>>, vector<1x9x41xf32>
      %157 = vector.shape_cast %156 : vector<1x9x41xf32> to vector<9x41xf32>
      %158 = vector.shape_cast %155 : vector<9x41xf32> to vector<1x9x41xf32>
      tpu.vector_store %arg10[%c3_91, %c0_92, %c0_93], %158 {strides = array<i32>} : memref<16x9x41xf32, #tpu.memory_space<vmem>>, vector<1x9x41xf32>,
      %c0_94 = arith.constant 0 : index
      %c0_95 = arith.constant 0 : index
      %c0_96 = arith.constant 0 : index
      %159 = vector.load %arg9[%c0_94, %c0_95, %c0_96] : memref<3x10x46xf32, #tpu.memory_space<vmem>>, vector<1x10x46xf32>
      %160 = vector.shape_cast %159 : vector<1x10x46xf32> to vector<10x46xf32>
      %c0_97 = arith.constant 0 : index
      %c4 = arith.constant 4 : index
      %161 = memref.load %arg2[%c0_97, %c4] : memref<3x16xf32, #tpu.memory_space<smem>>
      %162 = vector.broadcast %161 : f32 to vector<10x46xf32>
      %163 = arith.mulf %160, %162 : vector<10x46xf32>
      %c1_98 = arith.constant 1 : index
      %c0_99 = arith.constant 0 : index
      %c0_100 = arith.constant 0 : index
      %164 = vector.load %arg9[%c1_98, %c0_99, %c0_100] : memref<3x10x46xf32, #tpu.memory_space<vmem>>, vector<1x10x46xf32>
      %165 = vector.shape_cast %164 : vector<1x10x46xf32> to vector<10x46xf32>
      %c1_101 = arith.constant 1 : index
      %c4_102 = arith.constant 4 : index
      %166 = memref.load %arg2[%c1_101, %c4_102] : memref<3x16xf32, #tpu.memory_space<smem>>
      %167 = vector.broadcast %166 : f32 to vector<10x46xf32>
      %168 = arith.mulf %165, %167 : vector<10x46xf32>
      %169 = arith.addf %163, %168 : vector<10x46xf32>
      %c2_103 = arith.constant 2 : index
      %c0_104 = arith.constant 0 : index
      %c0_105 = arith.constant 0 : index
      %170 = vector.load %arg9[%c2_103, %c0_104, %c0_105] : memref<3x10x46xf32, #tpu.memory_space<vmem>>, vector<1x10x46xf32>
      %171 = vector.shape_cast %170 : vector<1x10x46xf32> to vector<10x46xf32>
      %c2_106 = arith.constant 2 : index
      %c4_107 = arith.constant 4 : index
      %172 = memref.load %arg2[%c2_106, %c4_107] : memref<3x16xf32, #tpu.memory_space<smem>>
      %173 = vector.broadcast %172 : f32 to vector<10x46xf32>
      %174 = arith.mulf %171, %173 : vector<10x46xf32>
      %175 = arith.addf %169, %174 : vector<10x46xf32>
      %c4_108 = arith.constant 4 : index
      %176 = memref.load %arg3[%c4_108] : memref<16xf32, #tpu.memory_space<smem>>
      %177 = vector.broadcast %176 : f32 to vector<10x46xf32>
      %178 = arith.addf %175, %177 : vector<10x46xf32>
      %179 = vector.extract_strided_slice %178 {offsets = [0, 2], sizes = [10, 41], strides = [1, 1]} : vector<10x46xf32> to vector<10x41xf32>
      %180 = vector.extract_strided_slice %178 {offsets = [0, 3], sizes = [10, 41], strides = [1, 1]} : vector<10x46xf32> to vector<10x41xf32>
      %181 = arith.maximumf %179, %180 : vector<10x41xf32>
      %182 = vector.extract_strided_slice %181 {offsets = [0, 0], sizes = [9, 41], strides = [1, 1]} : vector<10x41xf32> to vector<9x41xf32>
      %183 = vector.extract_strided_slice %181 {offsets = [1, 0], sizes = [9, 41], strides = [1, 1]} : vector<10x41xf32> to vector<9x41xf32>
      %184 = arith.maximumf %182, %183 : vector<9x41xf32>
      %185 = vector.extract_strided_slice %179 {offsets = [0, 0], sizes = [9, 41], strides = [1, 1]} : vector<10x41xf32> to vector<9x41xf32>
      %cst_109 = arith.constant 0.000000e+00 : f32
      %186 = vector.broadcast %cst_109 : f32 to vector<9x41xf32>
      %187 = arith.maximumf %184, %186 : vector<9x41xf32>
      %188 = arith.addf %185, %187 : vector<9x41xf32>
      %c4_110 = arith.constant 4 : index
      %c0_111 = arith.constant 0 : index
      %c0_112 = arith.constant 0 : index
      %189 = vector.load %arg10[%c4_110, %c0_111, %c0_112] : memref<16x9x41xf32, #tpu.memory_space<vmem>>, vector<1x9x41xf32>
      %190 = vector.shape_cast %189 : vector<1x9x41xf32> to vector<9x41xf32>
      %191 = vector.shape_cast %188 : vector<9x41xf32> to vector<1x9x41xf32>
      tpu.vector_store %arg10[%c4_110, %c0_111, %c0_112], %191 {strides = array<i32>} : memref<16x9x41xf32, #tpu.memory_space<vmem>>, vector<1x9x41xf32>,
      %c0_113 = arith.constant 0 : index
      %c0_114 = arith.constant 0 : index
      %c0_115 = arith.constant 0 : index
      %192 = vector.load %arg9[%c0_113, %c0_114, %c0_115] : memref<3x10x46xf32, #tpu.memory_space<vmem>>, vector<1x10x46xf32>
      %193 = vector.shape_cast %192 : vector<1x10x46xf32> to vector<10x46xf32>
      %c0_116 = arith.constant 0 : index
      %c5 = arith.constant 5 : index
      %194 = memref.load %arg2[%c0_116, %c5] : memref<3x16xf32, #tpu.memory_space<smem>>
      %195 = vector.broadcast %194 : f32 to vector<10x46xf32>
      %196 = arith.mulf %193, %195 : vector<10x46xf32>
      %c1_117 = arith.constant 1 : index
      %c0_118 = arith.constant 0 : index
      %c0_119 = arith.constant 0 : index
      %197 = vector.load %arg9[%c1_117, %c0_118, %c0_119] : memref<3x10x46xf32, #tpu.memory_space<vmem>>, vector<1x10x46xf32>
      %198 = vector.shape_cast %197 : vector<1x10x46xf32> to vector<10x46xf32>
      %c1_120 = arith.constant 1 : index
      %c5_121 = arith.constant 5 : index
      %199 = memref.load %arg2[%c1_120, %c5_121] : memref<3x16xf32, #tpu.memory_space<smem>>
      %200 = vector.broadcast %199 : f32 to vector<10x46xf32>
      %201 = arith.mulf %198, %200 : vector<10x46xf32>
      %202 = arith.addf %196, %201 : vector<10x46xf32>
      %c2_122 = arith.constant 2 : index
      %c0_123 = arith.constant 0 : index
      %c0_124 = arith.constant 0 : index
      %203 = vector.load %arg9[%c2_122, %c0_123, %c0_124] : memref<3x10x46xf32, #tpu.memory_space<vmem>>, vector<1x10x46xf32>
      %204 = vector.shape_cast %203 : vector<1x10x46xf32> to vector<10x46xf32>
      %c2_125 = arith.constant 2 : index
      %c5_126 = arith.constant 5 : index
      %205 = memref.load %arg2[%c2_125, %c5_126] : memref<3x16xf32, #tpu.memory_space<smem>>
      %206 = vector.broadcast %205 : f32 to vector<10x46xf32>
      %207 = arith.mulf %204, %206 : vector<10x46xf32>
      %208 = arith.addf %202, %207 : vector<10x46xf32>
      %c5_127 = arith.constant 5 : index
      %209 = memref.load %arg3[%c5_127] : memref<16xf32, #tpu.memory_space<smem>>
      %210 = vector.broadcast %209 : f32 to vector<10x46xf32>
      %211 = arith.addf %208, %210 : vector<10x46xf32>
      %212 = vector.extract_strided_slice %211 {offsets = [0, 2], sizes = [10, 41], strides = [1, 1]} : vector<10x46xf32> to vector<10x41xf32>
      %213 = vector.extract_strided_slice %211 {offsets = [0, 3], sizes = [10, 41], strides = [1, 1]} : vector<10x46xf32> to vector<10x41xf32>
      %214 = arith.maximumf %212, %213 : vector<10x41xf32>
      %215 = vector.extract_strided_slice %214 {offsets = [0, 0], sizes = [9, 41], strides = [1, 1]} : vector<10x41xf32> to vector<9x41xf32>
      %216 = vector.extract_strided_slice %214 {offsets = [1, 0], sizes = [9, 41], strides = [1, 1]} : vector<10x41xf32> to vector<9x41xf32>
      %217 = arith.maximumf %215, %216 : vector<9x41xf32>
      %218 = vector.extract_strided_slice %212 {offsets = [0, 0], sizes = [9, 41], strides = [1, 1]} : vector<10x41xf32> to vector<9x41xf32>
      %cst_128 = arith.constant 0.000000e+00 : f32
      %219 = vector.broadcast %cst_128 : f32 to vector<9x41xf32>
      %220 = arith.maximumf %217, %219 : vector<9x41xf32>
      %221 = arith.addf %218, %220 : vector<9x41xf32>
      %c5_129 = arith.constant 5 : index
      %c0_130 = arith.constant 0 : index
      %c0_131 = arith.constant 0 : index
      %222 = vector.load %arg10[%c5_129, %c0_130, %c0_131] : memref<16x9x41xf32, #tpu.memory_space<vmem>>, vector<1x9x41xf32>
      %223 = vector.shape_cast %222 : vector<1x9x41xf32> to vector<9x41xf32>
      %224 = vector.shape_cast %221 : vector<9x41xf32> to vector<1x9x41xf32>
      tpu.vector_store %arg10[%c5_129, %c0_130, %c0_131], %224 {strides = array<i32>} : memref<16x9x41xf32, #tpu.memory_space<vmem>>, vector<1x9x41xf32>,
      %c0_132 = arith.constant 0 : index
      %c0_133 = arith.constant 0 : index
      %c0_134 = arith.constant 0 : index
      %225 = vector.load %arg9[%c0_132, %c0_133, %c0_134] : memref<3x10x46xf32, #tpu.memory_space<vmem>>, vector<1x10x46xf32>
      %226 = vector.shape_cast %225 : vector<1x10x46xf32> to vector<10x46xf32>
      %c0_135 = arith.constant 0 : index
      %c6 = arith.constant 6 : index
      %227 = memref.load %arg2[%c0_135, %c6] : memref<3x16xf32, #tpu.memory_space<smem>>
      %228 = vector.broadcast %227 : f32 to vector<10x46xf32>
      %229 = arith.mulf %226, %228 : vector<10x46xf32>
      %c1_136 = arith.constant 1 : index
      %c0_137 = arith.constant 0 : index
      %c0_138 = arith.constant 0 : index
      %230 = vector.load %arg9[%c1_136, %c0_137, %c0_138] : memref<3x10x46xf32, #tpu.memory_space<vmem>>, vector<1x10x46xf32>
      %231 = vector.shape_cast %230 : vector<1x10x46xf32> to vector<10x46xf32>
      %c1_139 = arith.constant 1 : index
      %c6_140 = arith.constant 6 : index
      %232 = memref.load %arg2[%c1_139, %c6_140] : memref<3x16xf32, #tpu.memory_space<smem>>
      %233 = vector.broadcast %232 : f32 to vector<10x46xf32>
      %234 = arith.mulf %231, %233 : vector<10x46xf32>
      %235 = arith.addf %229, %234 : vector<10x46xf32>
      %c2_141 = arith.constant 2 : index
      %c0_142 = arith.constant 0 : index
      %c0_143 = arith.constant 0 : index
      %236 = vector.load %arg9[%c2_141, %c0_142, %c0_143] : memref<3x10x46xf32, #tpu.memory_space<vmem>>, vector<1x10x46xf32>
      %237 = vector.shape_cast %236 : vector<1x10x46xf32> to vector<10x46xf32>
      %c2_144 = arith.constant 2 : index
      %c6_145 = arith.constant 6 : index
      %238 = memref.load %arg2[%c2_144, %c6_145] : memref<3x16xf32, #tpu.memory_space<smem>>
      %239 = vector.broadcast %238 : f32 to vector<10x46xf32>
      %240 = arith.mulf %237, %239 : vector<10x46xf32>
      %241 = arith.addf %235, %240 : vector<10x46xf32>
      %c6_146 = arith.constant 6 : index
      %242 = memref.load %arg3[%c6_146] : memref<16xf32, #tpu.memory_space<smem>>
      %243 = vector.broadcast %242 : f32 to vector<10x46xf32>
      %244 = arith.addf %241, %243 : vector<10x46xf32>
      %245 = vector.extract_strided_slice %244 {offsets = [0, 2], sizes = [10, 41], strides = [1, 1]} : vector<10x46xf32> to vector<10x41xf32>
      %246 = vector.extract_strided_slice %244 {offsets = [0, 3], sizes = [10, 41], strides = [1, 1]} : vector<10x46xf32> to vector<10x41xf32>
      %247 = arith.maximumf %245, %246 : vector<10x41xf32>
      %248 = vector.extract_strided_slice %247 {offsets = [0, 0], sizes = [9, 41], strides = [1, 1]} : vector<10x41xf32> to vector<9x41xf32>
      %249 = vector.extract_strided_slice %247 {offsets = [1, 0], sizes = [9, 41], strides = [1, 1]} : vector<10x41xf32> to vector<9x41xf32>
      %250 = arith.maximumf %248, %249 : vector<9x41xf32>
      %251 = vector.extract_strided_slice %245 {offsets = [0, 0], sizes = [9, 41], strides = [1, 1]} : vector<10x41xf32> to vector<9x41xf32>
      %cst_147 = arith.constant 0.000000e+00 : f32
      %252 = vector.broadcast %cst_147 : f32 to vector<9x41xf32>
      %253 = arith.maximumf %250, %252 : vector<9x41xf32>
      %254 = arith.addf %251, %253 : vector<9x41xf32>
      %c6_148 = arith.constant 6 : index
      %c0_149 = arith.constant 0 : index
      %c0_150 = arith.constant 0 : index
      %255 = vector.load %arg10[%c6_148, %c0_149, %c0_150] : memref<16x9x41xf32, #tpu.memory_space<vmem>>, vector<1x9x41xf32>
      %256 = vector.shape_cast %255 : vector<1x9x41xf32> to vector<9x41xf32>
      %257 = vector.shape_cast %254 : vector<9x41xf32> to vector<1x9x41xf32>
      tpu.vector_store %arg10[%c6_148, %c0_149, %c0_150], %257 {strides = array<i32>} : memref<16x9x41xf32, #tpu.memory_space<vmem>>, vector<1x9x41xf32>,
      %c0_151 = arith.constant 0 : index
      %c0_152 = arith.constant 0 : index
      %c0_153 = arith.constant 0 : index
      %258 = vector.load %arg9[%c0_151, %c0_152, %c0_153] : memref<3x10x46xf32, #tpu.memory_space<vmem>>, vector<1x10x46xf32>
      %259 = vector.shape_cast %258 : vector<1x10x46xf32> to vector<10x46xf32>
      %c0_154 = arith.constant 0 : index
      %c7 = arith.constant 7 : index
      %260 = memref.load %arg2[%c0_154, %c7] : memref<3x16xf32, #tpu.memory_space<smem>>
      %261 = vector.broadcast %260 : f32 to vector<10x46xf32>
      %262 = arith.mulf %259, %261 : vector<10x46xf32>
      %c1_155 = arith.constant 1 : index
      %c0_156 = arith.constant 0 : index
      %c0_157 = arith.constant 0 : index
      %263 = vector.load %arg9[%c1_155, %c0_156, %c0_157] : memref<3x10x46xf32, #tpu.memory_space<vmem>>, vector<1x10x46xf32>
      %264 = vector.shape_cast %263 : vector<1x10x46xf32> to vector<10x46xf32>
      %c1_158 = arith.constant 1 : index
      %c7_159 = arith.constant 7 : index
      %265 = memref.load %arg2[%c1_158, %c7_159] : memref<3x16xf32, #tpu.memory_space<smem>>
      %266 = vector.broadcast %265 : f32 to vector<10x46xf32>
      %267 = arith.mulf %264, %266 : vector<10x46xf32>
      %268 = arith.addf %262, %267 : vector<10x46xf32>
      %c2_160 = arith.constant 2 : index
      %c0_161 = arith.constant 0 : index
      %c0_162 = arith.constant 0 : index
      %269 = vector.load %arg9[%c2_160, %c0_161, %c0_162] : memref<3x10x46xf32, #tpu.memory_space<vmem>>, vector<1x10x46xf32>
      %270 = vector.shape_cast %269 : vector<1x10x46xf32> to vector<10x46xf32>
      %c2_163 = arith.constant 2 : index
      %c7_164 = arith.constant 7 : index
      %271 = memref.load %arg2[%c2_163, %c7_164] : memref<3x16xf32, #tpu.memory_space<smem>>
      %272 = vector.broadcast %271 : f32 to vector<10x46xf32>
      %273 = arith.mulf %270, %272 : vector<10x46xf32>
      %274 = arith.addf %268, %273 : vector<10x46xf32>
      %c7_165 = arith.constant 7 : index
      %275 = memref.load %arg3[%c7_165] : memref<16xf32, #tpu.memory_space<smem>>
      %276 = vector.broadcast %275 : f32 to vector<10x46xf32>
      %277 = arith.addf %274, %276 : vector<10x46xf32>
      %278 = vector.extract_strided_slice %277 {offsets = [0, 2], sizes = [10, 41], strides = [1, 1]} : vector<10x46xf32> to vector<10x41xf32>
      %279 = vector.extract_strided_slice %277 {offsets = [0, 3], sizes = [10, 41], strides = [1, 1]} : vector<10x46xf32> to vector<10x41xf32>
      %280 = arith.maximumf %278, %279 : vector<10x41xf32>
      %281 = vector.extract_strided_slice %280 {offsets = [0, 0], sizes = [9, 41], strides = [1, 1]} : vector<10x41xf32> to vector<9x41xf32>
      %282 = vector.extract_strided_slice %280 {offsets = [1, 0], sizes = [9, 41], strides = [1, 1]} : vector<10x41xf32> to vector<9x41xf32>
      %283 = arith.maximumf %281, %282 : vector<9x41xf32>
      %284 = vector.extract_strided_slice %278 {offsets = [0, 0], sizes = [9, 41], strides = [1, 1]} : vector<10x41xf32> to vector<9x41xf32>
      %cst_166 = arith.constant 0.000000e+00 : f32
      %285 = vector.broadcast %cst_166 : f32 to vector<9x41xf32>
      %286 = arith.maximumf %283, %285 : vector<9x41xf32>
      %287 = arith.addf %284, %286 : vector<9x41xf32>
      %c7_167 = arith.constant 7 : index
      %c0_168 = arith.constant 0 : index
      %c0_169 = arith.constant 0 : index
      %288 = vector.load %arg10[%c7_167, %c0_168, %c0_169] : memref<16x9x41xf32, #tpu.memory_space<vmem>>, vector<1x9x41xf32>
      %289 = vector.shape_cast %288 : vector<1x9x41xf32> to vector<9x41xf32>
      %290 = vector.shape_cast %287 : vector<9x41xf32> to vector<1x9x41xf32>
      tpu.vector_store %arg10[%c7_167, %c0_168, %c0_169], %290 {strides = array<i32>} : memref<16x9x41xf32, #tpu.memory_space<vmem>>, vector<1x9x41xf32>,
      %c0_170 = arith.constant 0 : index
      %c0_171 = arith.constant 0 : index
      %c0_172 = arith.constant 0 : index
      %291 = vector.load %arg9[%c0_170, %c0_171, %c0_172] : memref<3x10x46xf32, #tpu.memory_space<vmem>>, vector<1x10x46xf32>
      %292 = vector.shape_cast %291 : vector<1x10x46xf32> to vector<10x46xf32>
      %c0_173 = arith.constant 0 : index
      %c8 = arith.constant 8 : index
      %293 = memref.load %arg2[%c0_173, %c8] : memref<3x16xf32, #tpu.memory_space<smem>>
      %294 = vector.broadcast %293 : f32 to vector<10x46xf32>
      %295 = arith.mulf %292, %294 : vector<10x46xf32>
      %c1_174 = arith.constant 1 : index
      %c0_175 = arith.constant 0 : index
      %c0_176 = arith.constant 0 : index
      %296 = vector.load %arg9[%c1_174, %c0_175, %c0_176] : memref<3x10x46xf32, #tpu.memory_space<vmem>>, vector<1x10x46xf32>
      %297 = vector.shape_cast %296 : vector<1x10x46xf32> to vector<10x46xf32>
      %c1_177 = arith.constant 1 : index
      %c8_178 = arith.constant 8 : index
      %298 = memref.load %arg2[%c1_177, %c8_178] : memref<3x16xf32, #tpu.memory_space<smem>>
      %299 = vector.broadcast %298 : f32 to vector<10x46xf32>
      %300 = arith.mulf %297, %299 : vector<10x46xf32>
      %301 = arith.addf %295, %300 : vector<10x46xf32>
      %c2_179 = arith.constant 2 : index
      %c0_180 = arith.constant 0 : index
      %c0_181 = arith.constant 0 : index
      %302 = vector.load %arg9[%c2_179, %c0_180, %c0_181] : memref<3x10x46xf32, #tpu.memory_space<vmem>>, vector<1x10x46xf32>
      %303 = vector.shape_cast %302 : vector<1x10x46xf32> to vector<10x46xf32>
      %c2_182 = arith.constant 2 : index
      %c8_183 = arith.constant 8 : index
      %304 = memref.load %arg2[%c2_182, %c8_183] : memref<3x16xf32, #tpu.memory_space<smem>>
      %305 = vector.broadcast %304 : f32 to vector<10x46xf32>
      %306 = arith.mulf %303, %305 : vector<10x46xf32>
      %307 = arith.addf %301, %306 : vector<10x46xf32>
      %c8_184 = arith.constant 8 : index
      %308 = memref.load %arg3[%c8_184] : memref<16xf32, #tpu.memory_space<smem>>
      %309 = vector.broadcast %308 : f32 to vector<10x46xf32>
      %310 = arith.addf %307, %309 : vector<10x46xf32>
      %311 = vector.extract_strided_slice %310 {offsets = [0, 2], sizes = [10, 41], strides = [1, 1]} : vector<10x46xf32> to vector<10x41xf32>
      %312 = vector.extract_strided_slice %310 {offsets = [0, 3], sizes = [10, 41], strides = [1, 1]} : vector<10x46xf32> to vector<10x41xf32>
      %313 = arith.maximumf %311, %312 : vector<10x41xf32>
      %314 = vector.extract_strided_slice %313 {offsets = [0, 0], sizes = [9, 41], strides = [1, 1]} : vector<10x41xf32> to vector<9x41xf32>
      %315 = vector.extract_strided_slice %313 {offsets = [1, 0], sizes = [9, 41], strides = [1, 1]} : vector<10x41xf32> to vector<9x41xf32>
      %316 = arith.maximumf %314, %315 : vector<9x41xf32>
      %317 = vector.extract_strided_slice %311 {offsets = [0, 0], sizes = [9, 41], strides = [1, 1]} : vector<10x41xf32> to vector<9x41xf32>
      %cst_185 = arith.constant 0.000000e+00 : f32
      %318 = vector.broadcast %cst_185 : f32 to vector<9x41xf32>
      %319 = arith.maximumf %316, %318 : vector<9x41xf32>
      %320 = arith.addf %317, %319 : vector<9x41xf32>
      %c8_186 = arith.constant 8 : index
      %c0_187 = arith.constant 0 : index
      %c0_188 = arith.constant 0 : index
      %321 = vector.load %arg10[%c8_186, %c0_187, %c0_188] : memref<16x9x41xf32, #tpu.memory_space<vmem>>, vector<1x9x41xf32>
      %322 = vector.shape_cast %321 : vector<1x9x41xf32> to vector<9x41xf32>
      %323 = vector.shape_cast %320 : vector<9x41xf32> to vector<1x9x41xf32>
      tpu.vector_store %arg10[%c8_186, %c0_187, %c0_188], %323 {strides = array<i32>} : memref<16x9x41xf32, #tpu.memory_space<vmem>>, vector<1x9x41xf32>,
      %c0_189 = arith.constant 0 : index
      %c0_190 = arith.constant 0 : index
      %c0_191 = arith.constant 0 : index
      %324 = vector.load %arg9[%c0_189, %c0_190, %c0_191] : memref<3x10x46xf32, #tpu.memory_space<vmem>>, vector<1x10x46xf32>
      %325 = vector.shape_cast %324 : vector<1x10x46xf32> to vector<10x46xf32>
      %c0_192 = arith.constant 0 : index
      %c9 = arith.constant 9 : index
      %326 = memref.load %arg2[%c0_192, %c9] : memref<3x16xf32, #tpu.memory_space<smem>>
      %327 = vector.broadcast %326 : f32 to vector<10x46xf32>
      %328 = arith.mulf %325, %327 : vector<10x46xf32>
      %c1_193 = arith.constant 1 : index
      %c0_194 = arith.constant 0 : index
      %c0_195 = arith.constant 0 : index
      %329 = vector.load %arg9[%c1_193, %c0_194, %c0_195] : memref<3x10x46xf32, #tpu.memory_space<vmem>>, vector<1x10x46xf32>
      %330 = vector.shape_cast %329 : vector<1x10x46xf32> to vector<10x46xf32>
      %c1_196 = arith.constant 1 : index
      %c9_197 = arith.constant 9 : index
      %331 = memref.load %arg2[%c1_196, %c9_197] : memref<3x16xf32, #tpu.memory_space<smem>>
      %332 = vector.broadcast %331 : f32 to vector<10x46xf32>
      %333 = arith.mulf %330, %332 : vector<10x46xf32>
      %334 = arith.addf %328, %333 : vector<10x46xf32>
      %c2_198 = arith.constant 2 : index
      %c0_199 = arith.constant 0 : index
      %c0_200 = arith.constant 0 : index
      %335 = vector.load %arg9[%c2_198, %c0_199, %c0_200] : memref<3x10x46xf32, #tpu.memory_space<vmem>>, vector<1x10x46xf32>
      %336 = vector.shape_cast %335 : vector<1x10x46xf32> to vector<10x46xf32>
      %c2_201 = arith.constant 2 : index
      %c9_202 = arith.constant 9 : index
      %337 = memref.load %arg2[%c2_201, %c9_202] : memref<3x16xf32, #tpu.memory_space<smem>>
      %338 = vector.broadcast %337 : f32 to vector<10x46xf32>
      %339 = arith.mulf %336, %338 : vector<10x46xf32>
      %340 = arith.addf %334, %339 : vector<10x46xf32>
      %c9_203 = arith.constant 9 : index
      %341 = memref.load %arg3[%c9_203] : memref<16xf32, #tpu.memory_space<smem>>
      %342 = vector.broadcast %341 : f32 to vector<10x46xf32>
      %343 = arith.addf %340, %342 : vector<10x46xf32>
      %344 = vector.extract_strided_slice %343 {offsets = [0, 2], sizes = [10, 41], strides = [1, 1]} : vector<10x46xf32> to vector<10x41xf32>
      %345 = vector.extract_strided_slice %343 {offsets = [0, 3], sizes = [10, 41], strides = [1, 1]} : vector<10x46xf32> to vector<10x41xf32>
      %346 = arith.maximumf %344, %345 : vector<10x41xf32>
      %347 = vector.extract_strided_slice %346 {offsets = [0, 0], sizes = [9, 41], strides = [1, 1]} : vector<10x41xf32> to vector<9x41xf32>
      %348 = vector.extract_strided_slice %346 {offsets = [1, 0], sizes = [9, 41], strides = [1, 1]} : vector<10x41xf32> to vector<9x41xf32>
      %349 = arith.maximumf %347, %348 : vector<9x41xf32>
      %350 = vector.extract_strided_slice %344 {offsets = [0, 0], sizes = [9, 41], strides = [1, 1]} : vector<10x41xf32> to vector<9x41xf32>
      %cst_204 = arith.constant 0.000000e+00 : f32
      %351 = vector.broadcast %cst_204 : f32 to vector<9x41xf32>
      %352 = arith.maximumf %349, %351 : vector<9x41xf32>
      %353 = arith.addf %350, %352 : vector<9x41xf32>
      %c9_205 = arith.constant 9 : index
      %c0_206 = arith.constant 0 : index
      %c0_207 = arith.constant 0 : index
      %354 = vector.load %arg10[%c9_205, %c0_206, %c0_207] : memref<16x9x41xf32, #tpu.memory_space<vmem>>, vector<1x9x41xf32>
      %355 = vector.shape_cast %354 : vector<1x9x41xf32> to vector<9x41xf32>
      %356 = vector.shape_cast %353 : vector<9x41xf32> to vector<1x9x41xf32>
      tpu.vector_store %arg10[%c9_205, %c0_206, %c0_207], %356 {strides = array<i32>} : memref<16x9x41xf32, #tpu.memory_space<vmem>>, vector<1x9x41xf32>,
      %c0_208 = arith.constant 0 : index
      %c0_209 = arith.constant 0 : index
      %c0_210 = arith.constant 0 : index
      %357 = vector.load %arg9[%c0_208, %c0_209, %c0_210] : memref<3x10x46xf32, #tpu.memory_space<vmem>>, vector<1x10x46xf32>
      %358 = vector.shape_cast %357 : vector<1x10x46xf32> to vector<10x46xf32>
      %c0_211 = arith.constant 0 : index
      %c10 = arith.constant 10 : index
      %359 = memref.load %arg2[%c0_211, %c10] : memref<3x16xf32, #tpu.memory_space<smem>>
      %360 = vector.broadcast %359 : f32 to vector<10x46xf32>
      %361 = arith.mulf %358, %360 : vector<10x46xf32>
      %c1_212 = arith.constant 1 : index
      %c0_213 = arith.constant 0 : index
      %c0_214 = arith.constant 0 : index
      %362 = vector.load %arg9[%c1_212, %c0_213, %c0_214] : memref<3x10x46xf32, #tpu.memory_space<vmem>>, vector<1x10x46xf32>
      %363 = vector.shape_cast %362 : vector<1x10x46xf32> to vector<10x46xf32>
      %c1_215 = arith.constant 1 : index
      %c10_216 = arith.constant 10 : index
      %364 = memref.load %arg2[%c1_215, %c10_216] : memref<3x16xf32, #tpu.memory_space<smem>>
      %365 = vector.broadcast %364 : f32 to vector<10x46xf32>
      %366 = arith.mulf %363, %365 : vector<10x46xf32>
      %367 = arith.addf %361, %366 : vector<10x46xf32>
      %c2_217 = arith.constant 2 : index
      %c0_218 = arith.constant 0 : index
      %c0_219 = arith.constant 0 : index
      %368 = vector.load %arg9[%c2_217, %c0_218, %c0_219] : memref<3x10x46xf32, #tpu.memory_space<vmem>>, vector<1x10x46xf32>
      %369 = vector.shape_cast %368 : vector<1x10x46xf32> to vector<10x46xf32>
      %c2_220 = arith.constant 2 : index
      %c10_221 = arith.constant 10 : index
      %370 = memref.load %arg2[%c2_220, %c10_221] : memref<3x16xf32, #tpu.memory_space<smem>>
      %371 = vector.broadcast %370 : f32 to vector<10x46xf32>
      %372 = arith.mulf %369, %371 : vector<10x46xf32>
      %373 = arith.addf %367, %372 : vector<10x46xf32>
      %c10_222 = arith.constant 10 : index
      %374 = memref.load %arg3[%c10_222] : memref<16xf32, #tpu.memory_space<smem>>
      %375 = vector.broadcast %374 : f32 to vector<10x46xf32>
      %376 = arith.addf %373, %375 : vector<10x46xf32>
      %377 = vector.extract_strided_slice %376 {offsets = [0, 2], sizes = [10, 41], strides = [1, 1]} : vector<10x46xf32> to vector<10x41xf32>
      %378 = vector.extract_strided_slice %376 {offsets = [0, 3], sizes = [10, 41], strides = [1, 1]} : vector<10x46xf32> to vector<10x41xf32>
      %379 = arith.maximumf %377, %378 : vector<10x41xf32>
      %380 = vector.extract_strided_slice %379 {offsets = [0, 0], sizes = [9, 41], strides = [1, 1]} : vector<10x41xf32> to vector<9x41xf32>
      %381 = vector.extract_strided_slice %379 {offsets = [1, 0], sizes = [9, 41], strides = [1, 1]} : vector<10x41xf32> to vector<9x41xf32>
      %382 = arith.maximumf %380, %381 : vector<9x41xf32>
      %383 = vector.extract_strided_slice %377 {offsets = [0, 0], sizes = [9, 41], strides = [1, 1]} : vector<10x41xf32> to vector<9x41xf32>
      %cst_223 = arith.constant 0.000000e+00 : f32
      %384 = vector.broadcast %cst_223 : f32 to vector<9x41xf32>
      %385 = arith.maximumf %382, %384 : vector<9x41xf32>
      %386 = arith.addf %383, %385 : vector<9x41xf32>
      %c10_224 = arith.constant 10 : index
      %c0_225 = arith.constant 0 : index
      %c0_226 = arith.constant 0 : index
      %387 = vector.load %arg10[%c10_224, %c0_225, %c0_226] : memref<16x9x41xf32, #tpu.memory_space<vmem>>, vector<1x9x41xf32>
      %388 = vector.shape_cast %387 : vector<1x9x41xf32> to vector<9x41xf32>
      %389 = vector.shape_cast %386 : vector<9x41xf32> to vector<1x9x41xf32>
      tpu.vector_store %arg10[%c10_224, %c0_225, %c0_226], %389 {strides = array<i32>} : memref<16x9x41xf32, #tpu.memory_space<vmem>>, vector<1x9x41xf32>,
      %c0_227 = arith.constant 0 : index
      %c0_228 = arith.constant 0 : index
      %c0_229 = arith.constant 0 : index
      %390 = vector.load %arg9[%c0_227, %c0_228, %c0_229] : memref<3x10x46xf32, #tpu.memory_space<vmem>>, vector<1x10x46xf32>
      %391 = vector.shape_cast %390 : vector<1x10x46xf32> to vector<10x46xf32>
      %c0_230 = arith.constant 0 : index
      %c11 = arith.constant 11 : index
      %392 = memref.load %arg2[%c0_230, %c11] : memref<3x16xf32, #tpu.memory_space<smem>>
      %393 = vector.broadcast %392 : f32 to vector<10x46xf32>
      %394 = arith.mulf %391, %393 : vector<10x46xf32>
      %c1_231 = arith.constant 1 : index
      %c0_232 = arith.constant 0 : index
      %c0_233 = arith.constant 0 : index
      %395 = vector.load %arg9[%c1_231, %c0_232, %c0_233] : memref<3x10x46xf32, #tpu.memory_space<vmem>>, vector<1x10x46xf32>
      %396 = vector.shape_cast %395 : vector<1x10x46xf32> to vector<10x46xf32>
      %c1_234 = arith.constant 1 : index
      %c11_235 = arith.constant 11 : index
      %397 = memref.load %arg2[%c1_234, %c11_235] : memref<3x16xf32, #tpu.memory_space<smem>>
      %398 = vector.broadcast %397 : f32 to vector<10x46xf32>
      %399 = arith.mulf %396, %398 : vector<10x46xf32>
      %400 = arith.addf %394, %399 : vector<10x46xf32>
      %c2_236 = arith.constant 2 : index
      %c0_237 = arith.constant 0 : index
      %c0_238 = arith.constant 0 : index
      %401 = vector.load %arg9[%c2_236, %c0_237, %c0_238] : memref<3x10x46xf32, #tpu.memory_space<vmem>>, vector<1x10x46xf32>
      %402 = vector.shape_cast %401 : vector<1x10x46xf32> to vector<10x46xf32>
      %c2_239 = arith.constant 2 : index
      %c11_240 = arith.constant 11 : index
      %403 = memref.load %arg2[%c2_239, %c11_240] : memref<3x16xf32, #tpu.memory_space<smem>>
      %404 = vector.broadcast %403 : f32 to vector<10x46xf32>
      %405 = arith.mulf %402, %404 : vector<10x46xf32>
      %406 = arith.addf %400, %405 : vector<10x46xf32>
      %c11_241 = arith.constant 11 : index
      %407 = memref.load %arg3[%c11_241] : memref<16xf32, #tpu.memory_space<smem>>
      %408 = vector.broadcast %407 : f32 to vector<10x46xf32>
      %409 = arith.addf %406, %408 : vector<10x46xf32>
      %410 = vector.extract_strided_slice %409 {offsets = [0, 2], sizes = [10, 41], strides = [1, 1]} : vector<10x46xf32> to vector<10x41xf32>
      %411 = vector.extract_strided_slice %409 {offsets = [0, 3], sizes = [10, 41], strides = [1, 1]} : vector<10x46xf32> to vector<10x41xf32>
      %412 = arith.maximumf %410, %411 : vector<10x41xf32>
      %413 = vector.extract_strided_slice %412 {offsets = [0, 0], sizes = [9, 41], strides = [1, 1]} : vector<10x41xf32> to vector<9x41xf32>
      %414 = vector.extract_strided_slice %412 {offsets = [1, 0], sizes = [9, 41], strides = [1, 1]} : vector<10x41xf32> to vector<9x41xf32>
      %415 = arith.maximumf %413, %414 : vector<9x41xf32>
      %416 = vector.extract_strided_slice %410 {offsets = [0, 0], sizes = [9, 41], strides = [1, 1]} : vector<10x41xf32> to vector<9x41xf32>
      %cst_242 = arith.constant 0.000000e+00 : f32
      %417 = vector.broadcast %cst_242 : f32 to vector<9x41xf32>
      %418 = arith.maximumf %415, %417 : vector<9x41xf32>
      %419 = arith.addf %416, %418 : vector<9x41xf32>
      %c11_243 = arith.constant 11 : index
      %c0_244 = arith.constant 0 : index
      %c0_245 = arith.constant 0 : index
      %420 = vector.load %arg10[%c11_243, %c0_244, %c0_245] : memref<16x9x41xf32, #tpu.memory_space<vmem>>, vector<1x9x41xf32>
      %421 = vector.shape_cast %420 : vector<1x9x41xf32> to vector<9x41xf32>
      %422 = vector.shape_cast %419 : vector<9x41xf32> to vector<1x9x41xf32>
      tpu.vector_store %arg10[%c11_243, %c0_244, %c0_245], %422 {strides = array<i32>} : memref<16x9x41xf32, #tpu.memory_space<vmem>>, vector<1x9x41xf32>,
      %c0_246 = arith.constant 0 : index
      %c0_247 = arith.constant 0 : index
      %c0_248 = arith.constant 0 : index
      %423 = vector.load %arg9[%c0_246, %c0_247, %c0_248] : memref<3x10x46xf32, #tpu.memory_space<vmem>>, vector<1x10x46xf32>
      %424 = vector.shape_cast %423 : vector<1x10x46xf32> to vector<10x46xf32>
      %c0_249 = arith.constant 0 : index
      %c12 = arith.constant 12 : index
      %425 = memref.load %arg2[%c0_249, %c12] : memref<3x16xf32, #tpu.memory_space<smem>>
      %426 = vector.broadcast %425 : f32 to vector<10x46xf32>
      %427 = arith.mulf %424, %426 : vector<10x46xf32>
      %c1_250 = arith.constant 1 : index
      %c0_251 = arith.constant 0 : index
      %c0_252 = arith.constant 0 : index
      %428 = vector.load %arg9[%c1_250, %c0_251, %c0_252] : memref<3x10x46xf32, #tpu.memory_space<vmem>>, vector<1x10x46xf32>
      %429 = vector.shape_cast %428 : vector<1x10x46xf32> to vector<10x46xf32>
      %c1_253 = arith.constant 1 : index
      %c12_254 = arith.constant 12 : index
      %430 = memref.load %arg2[%c1_253, %c12_254] : memref<3x16xf32, #tpu.memory_space<smem>>
      %431 = vector.broadcast %430 : f32 to vector<10x46xf32>
      %432 = arith.mulf %429, %431 : vector<10x46xf32>
      %433 = arith.addf %427, %432 : vector<10x46xf32>
      %c2_255 = arith.constant 2 : index
      %c0_256 = arith.constant 0 : index
      %c0_257 = arith.constant 0 : index
      %434 = vector.load %arg9[%c2_255, %c0_256, %c0_257] : memref<3x10x46xf32, #tpu.memory_space<vmem>>, vector<1x10x46xf32>
      %435 = vector.shape_cast %434 : vector<1x10x46xf32> to vector<10x46xf32>
      %c2_258 = arith.constant 2 : index
      %c12_259 = arith.constant 12 : index
      %436 = memref.load %arg2[%c2_258, %c12_259] : memref<3x16xf32, #tpu.memory_space<smem>>
      %437 = vector.broadcast %436 : f32 to vector<10x46xf32>
      %438 = arith.mulf %435, %437 : vector<10x46xf32>
      %439 = arith.addf %433, %438 : vector<10x46xf32>
      %c12_260 = arith.constant 12 : index
      %440 = memref.load %arg3[%c12_260] : memref<16xf32, #tpu.memory_space<smem>>
      %441 = vector.broadcast %440 : f32 to vector<10x46xf32>
      %442 = arith.addf %439, %441 : vector<10x46xf32>
      %443 = vector.extract_strided_slice %442 {offsets = [0, 2], sizes = [10, 41], strides = [1, 1]} : vector<10x46xf32> to vector<10x41xf32>
      %444 = vector.extract_strided_slice %442 {offsets = [0, 3], sizes = [10, 41], strides = [1, 1]} : vector<10x46xf32> to vector<10x41xf32>
      %445 = arith.maximumf %443, %444 : vector<10x41xf32>
      %446 = vector.extract_strided_slice %445 {offsets = [0, 0], sizes = [9, 41], strides = [1, 1]} : vector<10x41xf32> to vector<9x41xf32>
      %447 = vector.extract_strided_slice %445 {offsets = [1, 0], sizes = [9, 41], strides = [1, 1]} : vector<10x41xf32> to vector<9x41xf32>
      %448 = arith.maximumf %446, %447 : vector<9x41xf32>
      %449 = vector.extract_strided_slice %443 {offsets = [0, 0], sizes = [9, 41], strides = [1, 1]} : vector<10x41xf32> to vector<9x41xf32>
      %cst_261 = arith.constant 0.000000e+00 : f32
      %450 = vector.broadcast %cst_261 : f32 to vector<9x41xf32>
      %451 = arith.maximumf %448, %450 : vector<9x41xf32>
      %452 = arith.addf %449, %451 : vector<9x41xf32>
      %c12_262 = arith.constant 12 : index
      %c0_263 = arith.constant 0 : index
      %c0_264 = arith.constant 0 : index
      %453 = vector.load %arg10[%c12_262, %c0_263, %c0_264] : memref<16x9x41xf32, #tpu.memory_space<vmem>>, vector<1x9x41xf32>
      %454 = vector.shape_cast %453 : vector<1x9x41xf32> to vector<9x41xf32>
      %455 = vector.shape_cast %452 : vector<9x41xf32> to vector<1x9x41xf32>
      tpu.vector_store %arg10[%c12_262, %c0_263, %c0_264], %455 {strides = array<i32>} : memref<16x9x41xf32, #tpu.memory_space<vmem>>, vector<1x9x41xf32>,
      %c0_265 = arith.constant 0 : index
      %c0_266 = arith.constant 0 : index
      %c0_267 = arith.constant 0 : index
      %456 = vector.load %arg9[%c0_265, %c0_266, %c0_267] : memref<3x10x46xf32, #tpu.memory_space<vmem>>, vector<1x10x46xf32>
      %457 = vector.shape_cast %456 : vector<1x10x46xf32> to vector<10x46xf32>
      %c0_268 = arith.constant 0 : index
      %c13 = arith.constant 13 : index
      %458 = memref.load %arg2[%c0_268, %c13] : memref<3x16xf32, #tpu.memory_space<smem>>
      %459 = vector.broadcast %458 : f32 to vector<10x46xf32>
      %460 = arith.mulf %457, %459 : vector<10x46xf32>
      %c1_269 = arith.constant 1 : index
      %c0_270 = arith.constant 0 : index
      %c0_271 = arith.constant 0 : index
      %461 = vector.load %arg9[%c1_269, %c0_270, %c0_271] : memref<3x10x46xf32, #tpu.memory_space<vmem>>, vector<1x10x46xf32>
      %462 = vector.shape_cast %461 : vector<1x10x46xf32> to vector<10x46xf32>
      %c1_272 = arith.constant 1 : index
      %c13_273 = arith.constant 13 : index
      %463 = memref.load %arg2[%c1_272, %c13_273] : memref<3x16xf32, #tpu.memory_space<smem>>
      %464 = vector.broadcast %463 : f32 to vector<10x46xf32>
      %465 = arith.mulf %462, %464 : vector<10x46xf32>
      %466 = arith.addf %460, %465 : vector<10x46xf32>
      %c2_274 = arith.constant 2 : index
      %c0_275 = arith.constant 0 : index
      %c0_276 = arith.constant 0 : index
      %467 = vector.load %arg9[%c2_274, %c0_275, %c0_276] : memref<3x10x46xf32, #tpu.memory_space<vmem>>, vector<1x10x46xf32>
      %468 = vector.shape_cast %467 : vector<1x10x46xf32> to vector<10x46xf32>
      %c2_277 = arith.constant 2 : index
      %c13_278 = arith.constant 13 : index
      %469 = memref.load %arg2[%c2_277, %c13_278] : memref<3x16xf32, #tpu.memory_space<smem>>
      %470 = vector.broadcast %469 : f32 to vector<10x46xf32>
      %471 = arith.mulf %468, %470 : vector<10x46xf32>
      %472 = arith.addf %466, %471 : vector<10x46xf32>
      %c13_279 = arith.constant 13 : index
      %473 = memref.load %arg3[%c13_279] : memref<16xf32, #tpu.memory_space<smem>>
      %474 = vector.broadcast %473 : f32 to vector<10x46xf32>
      %475 = arith.addf %472, %474 : vector<10x46xf32>
      %476 = vector.extract_strided_slice %475 {offsets = [0, 2], sizes = [10, 41], strides = [1, 1]} : vector<10x46xf32> to vector<10x41xf32>
      %477 = vector.extract_strided_slice %475 {offsets = [0, 3], sizes = [10, 41], strides = [1, 1]} : vector<10x46xf32> to vector<10x41xf32>
      %478 = arith.maximumf %476, %477 : vector<10x41xf32>
      %479 = vector.extract_strided_slice %478 {offsets = [0, 0], sizes = [9, 41], strides = [1, 1]} : vector<10x41xf32> to vector<9x41xf32>
      %480 = vector.extract_strided_slice %478 {offsets = [1, 0], sizes = [9, 41], strides = [1, 1]} : vector<10x41xf32> to vector<9x41xf32>
      %481 = arith.maximumf %479, %480 : vector<9x41xf32>
      %482 = vector.extract_strided_slice %476 {offsets = [0, 0], sizes = [9, 41], strides = [1, 1]} : vector<10x41xf32> to vector<9x41xf32>
      %cst_280 = arith.constant 0.000000e+00 : f32
      %483 = vector.broadcast %cst_280 : f32 to vector<9x41xf32>
      %484 = arith.maximumf %481, %483 : vector<9x41xf32>
      %485 = arith.addf %482, %484 : vector<9x41xf32>
      %c13_281 = arith.constant 13 : index
      %c0_282 = arith.constant 0 : index
      %c0_283 = arith.constant 0 : index
      %486 = vector.load %arg10[%c13_281, %c0_282, %c0_283] : memref<16x9x41xf32, #tpu.memory_space<vmem>>, vector<1x9x41xf32>
      %487 = vector.shape_cast %486 : vector<1x9x41xf32> to vector<9x41xf32>
      %488 = vector.shape_cast %485 : vector<9x41xf32> to vector<1x9x41xf32>
      tpu.vector_store %arg10[%c13_281, %c0_282, %c0_283], %488 {strides = array<i32>} : memref<16x9x41xf32, #tpu.memory_space<vmem>>, vector<1x9x41xf32>,
      %c0_284 = arith.constant 0 : index
      %c0_285 = arith.constant 0 : index
      %c0_286 = arith.constant 0 : index
      %489 = vector.load %arg9[%c0_284, %c0_285, %c0_286] : memref<3x10x46xf32, #tpu.memory_space<vmem>>, vector<1x10x46xf32>
      %490 = vector.shape_cast %489 : vector<1x10x46xf32> to vector<10x46xf32>
      %c0_287 = arith.constant 0 : index
      %c14 = arith.constant 14 : index
      %491 = memref.load %arg2[%c0_287, %c14] : memref<3x16xf32, #tpu.memory_space<smem>>
      %492 = vector.broadcast %491 : f32 to vector<10x46xf32>
      %493 = arith.mulf %490, %492 : vector<10x46xf32>
      %c1_288 = arith.constant 1 : index
      %c0_289 = arith.constant 0 : index
      %c0_290 = arith.constant 0 : index
      %494 = vector.load %arg9[%c1_288, %c0_289, %c0_290] : memref<3x10x46xf32, #tpu.memory_space<vmem>>, vector<1x10x46xf32>
      %495 = vector.shape_cast %494 : vector<1x10x46xf32> to vector<10x46xf32>
      %c1_291 = arith.constant 1 : index
      %c14_292 = arith.constant 14 : index
      %496 = memref.load %arg2[%c1_291, %c14_292] : memref<3x16xf32, #tpu.memory_space<smem>>
      %497 = vector.broadcast %496 : f32 to vector<10x46xf32>
      %498 = arith.mulf %495, %497 : vector<10x46xf32>
      %499 = arith.addf %493, %498 : vector<10x46xf32>
      %c2_293 = arith.constant 2 : index
      %c0_294 = arith.constant 0 : index
      %c0_295 = arith.constant 0 : index
      %500 = vector.load %arg9[%c2_293, %c0_294, %c0_295] : memref<3x10x46xf32, #tpu.memory_space<vmem>>, vector<1x10x46xf32>
      %501 = vector.shape_cast %500 : vector<1x10x46xf32> to vector<10x46xf32>
      %c2_296 = arith.constant 2 : index
      %c14_297 = arith.constant 14 : index
      %502 = memref.load %arg2[%c2_296, %c14_297] : memref<3x16xf32, #tpu.memory_space<smem>>
      %503 = vector.broadcast %502 : f32 to vector<10x46xf32>
      %504 = arith.mulf %501, %503 : vector<10x46xf32>
      %505 = arith.addf %499, %504 : vector<10x46xf32>
      %c14_298 = arith.constant 14 : index
      %506 = memref.load %arg3[%c14_298] : memref<16xf32, #tpu.memory_space<smem>>
      %507 = vector.broadcast %506 : f32 to vector<10x46xf32>
      %508 = arith.addf %505, %507 : vector<10x46xf32>
      %509 = vector.extract_strided_slice %508 {offsets = [0, 2], sizes = [10, 41], strides = [1, 1]} : vector<10x46xf32> to vector<10x41xf32>
      %510 = vector.extract_strided_slice %508 {offsets = [0, 3], sizes = [10, 41], strides = [1, 1]} : vector<10x46xf32> to vector<10x41xf32>
      %511 = arith.maximumf %509, %510 : vector<10x41xf32>
      %512 = vector.extract_strided_slice %511 {offsets = [0, 0], sizes = [9, 41], strides = [1, 1]} : vector<10x41xf32> to vector<9x41xf32>
      %513 = vector.extract_strided_slice %511 {offsets = [1, 0], sizes = [9, 41], strides = [1, 1]} : vector<10x41xf32> to vector<9x41xf32>
      %514 = arith.maximumf %512, %513 : vector<9x41xf32>
      %515 = vector.extract_strided_slice %509 {offsets = [0, 0], sizes = [9, 41], strides = [1, 1]} : vector<10x41xf32> to vector<9x41xf32>
      %cst_299 = arith.constant 0.000000e+00 : f32
      %516 = vector.broadcast %cst_299 : f32 to vector<9x41xf32>
      %517 = arith.maximumf %514, %516 : vector<9x41xf32>
      %518 = arith.addf %515, %517 : vector<9x41xf32>
      %c14_300 = arith.constant 14 : index
      %c0_301 = arith.constant 0 : index
      %c0_302 = arith.constant 0 : index
      %519 = vector.load %arg10[%c14_300, %c0_301, %c0_302] : memref<16x9x41xf32, #tpu.memory_space<vmem>>, vector<1x9x41xf32>
      %520 = vector.shape_cast %519 : vector<1x9x41xf32> to vector<9x41xf32>
      %521 = vector.shape_cast %518 : vector<9x41xf32> to vector<1x9x41xf32>
      tpu.vector_store %arg10[%c14_300, %c0_301, %c0_302], %521 {strides = array<i32>} : memref<16x9x41xf32, #tpu.memory_space<vmem>>, vector<1x9x41xf32>,
      %c0_303 = arith.constant 0 : index
      %c0_304 = arith.constant 0 : index
      %c0_305 = arith.constant 0 : index
      %522 = vector.load %arg9[%c0_303, %c0_304, %c0_305] : memref<3x10x46xf32, #tpu.memory_space<vmem>>, vector<1x10x46xf32>
      %523 = vector.shape_cast %522 : vector<1x10x46xf32> to vector<10x46xf32>
      %c0_306 = arith.constant 0 : index
      %c15 = arith.constant 15 : index
      %524 = memref.load %arg2[%c0_306, %c15] : memref<3x16xf32, #tpu.memory_space<smem>>
      %525 = vector.broadcast %524 : f32 to vector<10x46xf32>
      %526 = arith.mulf %523, %525 : vector<10x46xf32>
      %c1_307 = arith.constant 1 : index
      %c0_308 = arith.constant 0 : index
      %c0_309 = arith.constant 0 : index
      %527 = vector.load %arg9[%c1_307, %c0_308, %c0_309] : memref<3x10x46xf32, #tpu.memory_space<vmem>>, vector<1x10x46xf32>
      %528 = vector.shape_cast %527 : vector<1x10x46xf32> to vector<10x46xf32>
      %c1_310 = arith.constant 1 : index
      %c15_311 = arith.constant 15 : index
      %529 = memref.load %arg2[%c1_310, %c15_311] : memref<3x16xf32, #tpu.memory_space<smem>>
      %530 = vector.broadcast %529 : f32 to vector<10x46xf32>
      %531 = arith.mulf %528, %530 : vector<10x46xf32>
      %532 = arith.addf %526, %531 : vector<10x46xf32>
      %c2_312 = arith.constant 2 : index
      %c0_313 = arith.constant 0 : index
      %c0_314 = arith.constant 0 : index
      %533 = vector.load %arg9[%c2_312, %c0_313, %c0_314] : memref<3x10x46xf32, #tpu.memory_space<vmem>>, vector<1x10x46xf32>
      %534 = vector.shape_cast %533 : vector<1x10x46xf32> to vector<10x46xf32>
      %c2_315 = arith.constant 2 : index
      %c15_316 = arith.constant 15 : index
      %535 = memref.load %arg2[%c2_315, %c15_316] : memref<3x16xf32, #tpu.memory_space<smem>>
      %536 = vector.broadcast %535 : f32 to vector<10x46xf32>
      %537 = arith.mulf %534, %536 : vector<10x46xf32>
      %538 = arith.addf %532, %537 : vector<10x46xf32>
      %c15_317 = arith.constant 15 : index
      %539 = memref.load %arg3[%c15_317] : memref<16xf32, #tpu.memory_space<smem>>
      %540 = vector.broadcast %539 : f32 to vector<10x46xf32>
      %541 = arith.addf %538, %540 : vector<10x46xf32>
      %542 = vector.extract_strided_slice %541 {offsets = [0, 2], sizes = [10, 41], strides = [1, 1]} : vector<10x46xf32> to vector<10x41xf32>
      %543 = vector.extract_strided_slice %541 {offsets = [0, 3], sizes = [10, 41], strides = [1, 1]} : vector<10x46xf32> to vector<10x41xf32>
      %544 = arith.maximumf %542, %543 : vector<10x41xf32>
      %545 = vector.extract_strided_slice %544 {offsets = [0, 0], sizes = [9, 41], strides = [1, 1]} : vector<10x41xf32> to vector<9x41xf32>
      %546 = vector.extract_strided_slice %544 {offsets = [1, 0], sizes = [9, 41], strides = [1, 1]} : vector<10x41xf32> to vector<9x41xf32>
      %547 = arith.maximumf %545, %546 : vector<9x41xf32>
      %548 = vector.extract_strided_slice %542 {offsets = [0, 0], sizes = [9, 41], strides = [1, 1]} : vector<10x41xf32> to vector<9x41xf32>
      %cst_318 = arith.constant 0.000000e+00 : f32
      %549 = vector.broadcast %cst_318 : f32 to vector<9x41xf32>
      %550 = arith.maximumf %547, %549 : vector<9x41xf32>
      %551 = arith.addf %548, %550 : vector<9x41xf32>
      %c15_319 = arith.constant 15 : index
      %c0_320 = arith.constant 0 : index
      %c0_321 = arith.constant 0 : index
      %552 = vector.load %arg10[%c15_319, %c0_320, %c0_321] : memref<16x9x41xf32, #tpu.memory_space<vmem>>, vector<1x9x41xf32>
      %553 = vector.shape_cast %552 : vector<1x9x41xf32> to vector<9x41xf32>
      %554 = vector.shape_cast %551 : vector<9x41xf32> to vector<1x9x41xf32>
      tpu.vector_store %arg10[%c15_319, %c0_320, %c0_321], %554 {strides = array<i32>} : memref<16x9x41xf32, #tpu.memory_space<vmem>>, vector<1x9x41xf32>,
      %c0_322 = arith.constant 0 : index
      %c0_323 = arith.constant 0 : index
      %c0_324 = arith.constant 0 : index
      %555 = vector.load %arg10[%c0_322, %c0_323, %c0_324] : memref<16x9x41xf32, #tpu.memory_space<vmem>>, vector<1x9x41xf32>
      %556 = vector.shape_cast %555 : vector<1x9x41xf32> to vector<9x41xf32>
      %c0_325 = arith.constant 0 : index
      %c0_326 = arith.constant 0 : index
      %557 = memref.load %arg4[%c0_325, %c0_326] : memref<16x8xf32, #tpu.memory_space<smem>>
      %558 = vector.broadcast %557 : f32 to vector<9x41xf32>
      %559 = arith.mulf %556, %558 : vector<9x41xf32>
      %c0_327 = arith.constant 0 : index
      %560 = memref.load %arg5[%c0_327] : memref<8xf32, #tpu.memory_space<smem>>
      %561 = vector.broadcast %560 : f32 to vector<9x41xf32>
      %562 = arith.addf %559, %561 : vector<9x41xf32>
      %c0_328 = arith.constant 0 : index
      %c1_329 = arith.constant 1 : index
      %563 = memref.load %arg4[%c0_328, %c1_329] : memref<16x8xf32, #tpu.memory_space<smem>>
      %564 = vector.broadcast %563 : f32 to vector<9x41xf32>
      %565 = arith.mulf %556, %564 : vector<9x41xf32>
      %c1_330 = arith.constant 1 : index
      %566 = memref.load %arg5[%c1_330] : memref<8xf32, #tpu.memory_space<smem>>
      %567 = vector.broadcast %566 : f32 to vector<9x41xf32>
      %568 = arith.addf %565, %567 : vector<9x41xf32>
      %c1_331 = arith.constant 1 : index
      %c0_332 = arith.constant 0 : index
      %c0_333 = arith.constant 0 : index
      %569 = vector.load %arg10[%c1_331, %c0_332, %c0_333] : memref<16x9x41xf32, #tpu.memory_space<vmem>>, vector<1x9x41xf32>
      %570 = vector.shape_cast %569 : vector<1x9x41xf32> to vector<9x41xf32>
      %c1_334 = arith.constant 1 : index
      %c0_335 = arith.constant 0 : index
      %571 = memref.load %arg4[%c1_334, %c0_335] : memref<16x8xf32, #tpu.memory_space<smem>>
      %572 = vector.broadcast %571 : f32 to vector<9x41xf32>
      %573 = arith.mulf %570, %572 : vector<9x41xf32>
      %574 = arith.addf %562, %573 : vector<9x41xf32>
      %c1_336 = arith.constant 1 : index
      %c1_337 = arith.constant 1 : index
      %575 = memref.load %arg4[%c1_336, %c1_337] : memref<16x8xf32, #tpu.memory_space<smem>>
      %576 = vector.broadcast %575 : f32 to vector<9x41xf32>
      %577 = arith.mulf %570, %576 : vector<9x41xf32>
      %578 = arith.addf %568, %577 : vector<9x41xf32>
      %c2_338 = arith.constant 2 : index
      %c0_339 = arith.constant 0 : index
      %c0_340 = arith.constant 0 : index
      %579 = vector.load %arg10[%c2_338, %c0_339, %c0_340] : memref<16x9x41xf32, #tpu.memory_space<vmem>>, vector<1x9x41xf32>
      %580 = vector.shape_cast %579 : vector<1x9x41xf32> to vector<9x41xf32>
      %c2_341 = arith.constant 2 : index
      %c0_342 = arith.constant 0 : index
      %581 = memref.load %arg4[%c2_341, %c0_342] : memref<16x8xf32, #tpu.memory_space<smem>>
      %582 = vector.broadcast %581 : f32 to vector<9x41xf32>
      %583 = arith.mulf %580, %582 : vector<9x41xf32>
      %584 = arith.addf %574, %583 : vector<9x41xf32>
      %c2_343 = arith.constant 2 : index
      %c1_344 = arith.constant 1 : index
      %585 = memref.load %arg4[%c2_343, %c1_344] : memref<16x8xf32, #tpu.memory_space<smem>>
      %586 = vector.broadcast %585 : f32 to vector<9x41xf32>
      %587 = arith.mulf %580, %586 : vector<9x41xf32>
      %588 = arith.addf %578, %587 : vector<9x41xf32>
      %c3_345 = arith.constant 3 : index
      %c0_346 = arith.constant 0 : index
      %c0_347 = arith.constant 0 : index
      %589 = vector.load %arg10[%c3_345, %c0_346, %c0_347] : memref<16x9x41xf32, #tpu.memory_space<vmem>>, vector<1x9x41xf32>
      %590 = vector.shape_cast %589 : vector<1x9x41xf32> to vector<9x41xf32>
      %c3_348 = arith.constant 3 : index
      %c0_349 = arith.constant 0 : index
      %591 = memref.load %arg4[%c3_348, %c0_349] : memref<16x8xf32, #tpu.memory_space<smem>>
      %592 = vector.broadcast %591 : f32 to vector<9x41xf32>
      %593 = arith.mulf %590, %592 : vector<9x41xf32>
      %594 = arith.addf %584, %593 : vector<9x41xf32>
      %c3_350 = arith.constant 3 : index
      %c1_351 = arith.constant 1 : index
      %595 = memref.load %arg4[%c3_350, %c1_351] : memref<16x8xf32, #tpu.memory_space<smem>>
      %596 = vector.broadcast %595 : f32 to vector<9x41xf32>
      %597 = arith.mulf %590, %596 : vector<9x41xf32>
      %598 = arith.addf %588, %597 : vector<9x41xf32>
      %c4_352 = arith.constant 4 : index
      %c0_353 = arith.constant 0 : index
      %c0_354 = arith.constant 0 : index
      %599 = vector.load %arg10[%c4_352, %c0_353, %c0_354] : memref<16x9x41xf32, #tpu.memory_space<vmem>>, vector<1x9x41xf32>
      %600 = vector.shape_cast %599 : vector<1x9x41xf32> to vector<9x41xf32>
      %c4_355 = arith.constant 4 : index
      %c0_356 = arith.constant 0 : index
      %601 = memref.load %arg4[%c4_355, %c0_356] : memref<16x8xf32, #tpu.memory_space<smem>>
      %602 = vector.broadcast %601 : f32 to vector<9x41xf32>
      %603 = arith.mulf %600, %602 : vector<9x41xf32>
      %604 = arith.addf %594, %603 : vector<9x41xf32>
      %c4_357 = arith.constant 4 : index
      %c1_358 = arith.constant 1 : index
      %605 = memref.load %arg4[%c4_357, %c1_358] : memref<16x8xf32, #tpu.memory_space<smem>>
      %606 = vector.broadcast %605 : f32 to vector<9x41xf32>
      %607 = arith.mulf %600, %606 : vector<9x41xf32>
      %608 = arith.addf %598, %607 : vector<9x41xf32>
      %c5_359 = arith.constant 5 : index
      %c0_360 = arith.constant 0 : index
      %c0_361 = arith.constant 0 : index
      %609 = vector.load %arg10[%c5_359, %c0_360, %c0_361] : memref<16x9x41xf32, #tpu.memory_space<vmem>>, vector<1x9x41xf32>
      %610 = vector.shape_cast %609 : vector<1x9x41xf32> to vector<9x41xf32>
      %c5_362 = arith.constant 5 : index
      %c0_363 = arith.constant 0 : index
      %611 = memref.load %arg4[%c5_362, %c0_363] : memref<16x8xf32, #tpu.memory_space<smem>>
      %612 = vector.broadcast %611 : f32 to vector<9x41xf32>
      %613 = arith.mulf %610, %612 : vector<9x41xf32>
      %614 = arith.addf %604, %613 : vector<9x41xf32>
      %c5_364 = arith.constant 5 : index
      %c1_365 = arith.constant 1 : index
      %615 = memref.load %arg4[%c5_364, %c1_365] : memref<16x8xf32, #tpu.memory_space<smem>>
      %616 = vector.broadcast %615 : f32 to vector<9x41xf32>
      %617 = arith.mulf %610, %616 : vector<9x41xf32>
      %618 = arith.addf %608, %617 : vector<9x41xf32>
      %c6_366 = arith.constant 6 : index
      %c0_367 = arith.constant 0 : index
      %c0_368 = arith.constant 0 : index
      %619 = vector.load %arg10[%c6_366, %c0_367, %c0_368] : memref<16x9x41xf32, #tpu.memory_space<vmem>>, vector<1x9x41xf32>
      %620 = vector.shape_cast %619 : vector<1x9x41xf32> to vector<9x41xf32>
      %c6_369 = arith.constant 6 : index
      %c0_370 = arith.constant 0 : index
      %621 = memref.load %arg4[%c6_369, %c0_370] : memref<16x8xf32, #tpu.memory_space<smem>>
      %622 = vector.broadcast %621 : f32 to vector<9x41xf32>
      %623 = arith.mulf %620, %622 : vector<9x41xf32>
      %624 = arith.addf %614, %623 : vector<9x41xf32>
      %c6_371 = arith.constant 6 : index
      %c1_372 = arith.constant 1 : index
      %625 = memref.load %arg4[%c6_371, %c1_372] : memref<16x8xf32, #tpu.memory_space<smem>>
      %626 = vector.broadcast %625 : f32 to vector<9x41xf32>
      %627 = arith.mulf %620, %626 : vector<9x41xf32>
      %628 = arith.addf %618, %627 : vector<9x41xf32>
      %c7_373 = arith.constant 7 : index
      %c0_374 = arith.constant 0 : index
      %c0_375 = arith.constant 0 : index
      %629 = vector.load %arg10[%c7_373, %c0_374, %c0_375] : memref<16x9x41xf32, #tpu.memory_space<vmem>>, vector<1x9x41xf32>
      %630 = vector.shape_cast %629 : vector<1x9x41xf32> to vector<9x41xf32>
      %c7_376 = arith.constant 7 : index
      %c0_377 = arith.constant 0 : index
      %631 = memref.load %arg4[%c7_376, %c0_377] : memref<16x8xf32, #tpu.memory_space<smem>>
      %632 = vector.broadcast %631 : f32 to vector<9x41xf32>
      %633 = arith.mulf %630, %632 : vector<9x41xf32>
      %634 = arith.addf %624, %633 : vector<9x41xf32>
      %c7_378 = arith.constant 7 : index
      %c1_379 = arith.constant 1 : index
      %635 = memref.load %arg4[%c7_378, %c1_379] : memref<16x8xf32, #tpu.memory_space<smem>>
      %636 = vector.broadcast %635 : f32 to vector<9x41xf32>
      %637 = arith.mulf %630, %636 : vector<9x41xf32>
      %638 = arith.addf %628, %637 : vector<9x41xf32>
      %c8_380 = arith.constant 8 : index
      %c0_381 = arith.constant 0 : index
      %c0_382 = arith.constant 0 : index
      %639 = vector.load %arg10[%c8_380, %c0_381, %c0_382] : memref<16x9x41xf32, #tpu.memory_space<vmem>>, vector<1x9x41xf32>
      %640 = vector.shape_cast %639 : vector<1x9x41xf32> to vector<9x41xf32>
      %c8_383 = arith.constant 8 : index
      %c0_384 = arith.constant 0 : index
      %641 = memref.load %arg4[%c8_383, %c0_384] : memref<16x8xf32, #tpu.memory_space<smem>>
      %642 = vector.broadcast %641 : f32 to vector<9x41xf32>
      %643 = arith.mulf %640, %642 : vector<9x41xf32>
      %644 = arith.addf %634, %643 : vector<9x41xf32>
      %c8_385 = arith.constant 8 : index
      %c1_386 = arith.constant 1 : index
      %645 = memref.load %arg4[%c8_385, %c1_386] : memref<16x8xf32, #tpu.memory_space<smem>>
      %646 = vector.broadcast %645 : f32 to vector<9x41xf32>
      %647 = arith.mulf %640, %646 : vector<9x41xf32>
      %648 = arith.addf %638, %647 : vector<9x41xf32>
      %c9_387 = arith.constant 9 : index
      %c0_388 = arith.constant 0 : index
      %c0_389 = arith.constant 0 : index
      %649 = vector.load %arg10[%c9_387, %c0_388, %c0_389] : memref<16x9x41xf32, #tpu.memory_space<vmem>>, vector<1x9x41xf32>
      %650 = vector.shape_cast %649 : vector<1x9x41xf32> to vector<9x41xf32>
      %c9_390 = arith.constant 9 : index
      %c0_391 = arith.constant 0 : index
      %651 = memref.load %arg4[%c9_390, %c0_391] : memref<16x8xf32, #tpu.memory_space<smem>>
      %652 = vector.broadcast %651 : f32 to vector<9x41xf32>
      %653 = arith.mulf %650, %652 : vector<9x41xf32>
      %654 = arith.addf %644, %653 : vector<9x41xf32>
      %c9_392 = arith.constant 9 : index
      %c1_393 = arith.constant 1 : index
      %655 = memref.load %arg4[%c9_392, %c1_393] : memref<16x8xf32, #tpu.memory_space<smem>>
      %656 = vector.broadcast %655 : f32 to vector<9x41xf32>
      %657 = arith.mulf %650, %656 : vector<9x41xf32>
      %658 = arith.addf %648, %657 : vector<9x41xf32>
      %c10_394 = arith.constant 10 : index
      %c0_395 = arith.constant 0 : index
      %c0_396 = arith.constant 0 : index
      %659 = vector.load %arg10[%c10_394, %c0_395, %c0_396] : memref<16x9x41xf32, #tpu.memory_space<vmem>>, vector<1x9x41xf32>
      %660 = vector.shape_cast %659 : vector<1x9x41xf32> to vector<9x41xf32>
      %c10_397 = arith.constant 10 : index
      %c0_398 = arith.constant 0 : index
      %661 = memref.load %arg4[%c10_397, %c0_398] : memref<16x8xf32, #tpu.memory_space<smem>>
      %662 = vector.broadcast %661 : f32 to vector<9x41xf32>
      %663 = arith.mulf %660, %662 : vector<9x41xf32>
      %664 = arith.addf %654, %663 : vector<9x41xf32>
      %c10_399 = arith.constant 10 : index
      %c1_400 = arith.constant 1 : index
      %665 = memref.load %arg4[%c10_399, %c1_400] : memref<16x8xf32, #tpu.memory_space<smem>>
      %666 = vector.broadcast %665 : f32 to vector<9x41xf32>
      %667 = arith.mulf %660, %666 : vector<9x41xf32>
      %668 = arith.addf %658, %667 : vector<9x41xf32>
      %c11_401 = arith.constant 11 : index
      %c0_402 = arith.constant 0 : index
      %c0_403 = arith.constant 0 : index
      %669 = vector.load %arg10[%c11_401, %c0_402, %c0_403] : memref<16x9x41xf32, #tpu.memory_space<vmem>>, vector<1x9x41xf32>
      %670 = vector.shape_cast %669 : vector<1x9x41xf32> to vector<9x41xf32>
      %c11_404 = arith.constant 11 : index
      %c0_405 = arith.constant 0 : index
      %671 = memref.load %arg4[%c11_404, %c0_405] : memref<16x8xf32, #tpu.memory_space<smem>>
      %672 = vector.broadcast %671 : f32 to vector<9x41xf32>
      %673 = arith.mulf %670, %672 : vector<9x41xf32>
      %674 = arith.addf %664, %673 : vector<9x41xf32>
      %c11_406 = arith.constant 11 : index
      %c1_407 = arith.constant 1 : index
      %675 = memref.load %arg4[%c11_406, %c1_407] : memref<16x8xf32, #tpu.memory_space<smem>>
      %676 = vector.broadcast %675 : f32 to vector<9x41xf32>
      %677 = arith.mulf %670, %676 : vector<9x41xf32>
      %678 = arith.addf %668, %677 : vector<9x41xf32>
      %c12_408 = arith.constant 12 : index
      %c0_409 = arith.constant 0 : index
      %c0_410 = arith.constant 0 : index
      %679 = vector.load %arg10[%c12_408, %c0_409, %c0_410] : memref<16x9x41xf32, #tpu.memory_space<vmem>>, vector<1x9x41xf32>
      %680 = vector.shape_cast %679 : vector<1x9x41xf32> to vector<9x41xf32>
      %c12_411 = arith.constant 12 : index
      %c0_412 = arith.constant 0 : index
      %681 = memref.load %arg4[%c12_411, %c0_412] : memref<16x8xf32, #tpu.memory_space<smem>>
      %682 = vector.broadcast %681 : f32 to vector<9x41xf32>
      %683 = arith.mulf %680, %682 : vector<9x41xf32>
      %684 = arith.addf %674, %683 : vector<9x41xf32>
      %c12_413 = arith.constant 12 : index
      %c1_414 = arith.constant 1 : index
      %685 = memref.load %arg4[%c12_413, %c1_414] : memref<16x8xf32, #tpu.memory_space<smem>>
      %686 = vector.broadcast %685 : f32 to vector<9x41xf32>
      %687 = arith.mulf %680, %686 : vector<9x41xf32>
      %688 = arith.addf %678, %687 : vector<9x41xf32>
      %c13_415 = arith.constant 13 : index
      %c0_416 = arith.constant 0 : index
      %c0_417 = arith.constant 0 : index
      %689 = vector.load %arg10[%c13_415, %c0_416, %c0_417] : memref<16x9x41xf32, #tpu.memory_space<vmem>>, vector<1x9x41xf32>
      %690 = vector.shape_cast %689 : vector<1x9x41xf32> to vector<9x41xf32>
      %c13_418 = arith.constant 13 : index
      %c0_419 = arith.constant 0 : index
      %691 = memref.load %arg4[%c13_418, %c0_419] : memref<16x8xf32, #tpu.memory_space<smem>>
      %692 = vector.broadcast %691 : f32 to vector<9x41xf32>
      %693 = arith.mulf %690, %692 : vector<9x41xf32>
      %694 = arith.addf %684, %693 : vector<9x41xf32>
      %c13_420 = arith.constant 13 : index
      %c1_421 = arith.constant 1 : index
      %695 = memref.load %arg4[%c13_420, %c1_421] : memref<16x8xf32, #tpu.memory_space<smem>>
      %696 = vector.broadcast %695 : f32 to vector<9x41xf32>
      %697 = arith.mulf %690, %696 : vector<9x41xf32>
      %698 = arith.addf %688, %697 : vector<9x41xf32>
      %c14_422 = arith.constant 14 : index
      %c0_423 = arith.constant 0 : index
      %c0_424 = arith.constant 0 : index
      %699 = vector.load %arg10[%c14_422, %c0_423, %c0_424] : memref<16x9x41xf32, #tpu.memory_space<vmem>>, vector<1x9x41xf32>
      %700 = vector.shape_cast %699 : vector<1x9x41xf32> to vector<9x41xf32>
      %c14_425 = arith.constant 14 : index
      %c0_426 = arith.constant 0 : index
      %701 = memref.load %arg4[%c14_425, %c0_426] : memref<16x8xf32, #tpu.memory_space<smem>>
      %702 = vector.broadcast %701 : f32 to vector<9x41xf32>
      %703 = arith.mulf %700, %702 : vector<9x41xf32>
      %704 = arith.addf %694, %703 : vector<9x41xf32>
      %c14_427 = arith.constant 14 : index
      %c1_428 = arith.constant 1 : index
      %705 = memref.load %arg4[%c14_427, %c1_428] : memref<16x8xf32, #tpu.memory_space<smem>>
      %706 = vector.broadcast %705 : f32 to vector<9x41xf32>
      %707 = arith.mulf %700, %706 : vector<9x41xf32>
      %708 = arith.addf %698, %707 : vector<9x41xf32>
      %c15_429 = arith.constant 15 : index
      %c0_430 = arith.constant 0 : index
      %c0_431 = arith.constant 0 : index
      %709 = vector.load %arg10[%c15_429, %c0_430, %c0_431] : memref<16x9x41xf32, #tpu.memory_space<vmem>>, vector<1x9x41xf32>
      %710 = vector.shape_cast %709 : vector<1x9x41xf32> to vector<9x41xf32>
      %c15_432 = arith.constant 15 : index
      %c0_433 = arith.constant 0 : index
      %711 = memref.load %arg4[%c15_432, %c0_433] : memref<16x8xf32, #tpu.memory_space<smem>>
      %712 = vector.broadcast %711 : f32 to vector<9x41xf32>
      %713 = arith.mulf %710, %712 : vector<9x41xf32>
      %714 = arith.addf %704, %713 : vector<9x41xf32>
      %c15_434 = arith.constant 15 : index
      %c1_435 = arith.constant 1 : index
      %715 = memref.load %arg4[%c15_434, %c1_435] : memref<16x8xf32, #tpu.memory_space<smem>>
      %716 = vector.broadcast %715 : f32 to vector<9x41xf32>
      %717 = arith.mulf %710, %716 : vector<9x41xf32>
      %718 = arith.addf %708, %717 : vector<9x41xf32>
      %719 = vector.extract_strided_slice %714 {offsets = [0, 0], sizes = [9, 40], strides = [1, 1]} : vector<9x41xf32> to vector<9x40xf32>
      %720 = vector.extract_strided_slice %714 {offsets = [0, 1], sizes = [9, 40], strides = [1, 1]} : vector<9x41xf32> to vector<9x40xf32>
      %721 = arith.maximumf %719, %720 : vector<9x40xf32>
      %722 = vector.extract_strided_slice %721 {offsets = [0, 0], sizes = [8, 40], strides = [1, 1]} : vector<9x40xf32> to vector<8x40xf32>
      %723 = vector.extract_strided_slice %721 {offsets = [1, 0], sizes = [8, 40], strides = [1, 1]} : vector<9x40xf32> to vector<8x40xf32>
      %724 = arith.maximumf %722, %723 : vector<8x40xf32>
      %cst_436 = arith.constant 0.000000e+00 : f32
      %725 = vector.broadcast %cst_436 : f32 to vector<8x40xf32>
      %726 = arith.maximumf %724, %725 : vector<8x40xf32>
      %c0_437 = arith.constant 0 : index
      %c0_438 = arith.constant 0 : index
      %c0_439 = arith.constant 0 : index
      %727 = vector.load %arg11[%c0_437, %c0_438, %c0_439] : memref<8x8x40xf32, #tpu.memory_space<vmem>>, vector<1x8x40xf32>
      %728 = vector.shape_cast %727 : vector<1x8x40xf32> to vector<8x40xf32>
      %729 = vector.shape_cast %726 : vector<8x40xf32> to vector<1x8x40xf32>
      tpu.vector_store %arg11[%c0_437, %c0_438, %c0_439], %729 {strides = array<i32>} : memref<8x8x40xf32, #tpu.memory_space<vmem>>, vector<1x8x40xf32>,
      %730 = vector.extract_strided_slice %718 {offsets = [0, 0], sizes = [9, 40], strides = [1, 1]} : vector<9x41xf32> to vector<9x40xf32>
      %731 = vector.extract_strided_slice %718 {offsets = [0, 1], sizes = [9, 40], strides = [1, 1]} : vector<9x41xf32> to vector<9x40xf32>
      %732 = arith.maximumf %730, %731 : vector<9x40xf32>
      %733 = vector.extract_strided_slice %732 {offsets = [0, 0], sizes = [8, 40], strides = [1, 1]} : vector<9x40xf32> to vector<8x40xf32>
      %734 = vector.extract_strided_slice %732 {offsets = [1, 0], sizes = [8, 40], strides = [1, 1]} : vector<9x40xf32> to vector<8x40xf32>
      %735 = arith.maximumf %733, %734 : vector<8x40xf32>
      %cst_440 = arith.constant 0.000000e+00 : f32
      %736 = vector.broadcast %cst_440 : f32 to vector<8x40xf32>
      %737 = arith.maximumf %735, %736 : vector<8x40xf32>
      %c1_441 = arith.constant 1 : index
      %c0_442 = arith.constant 0 : index
      %c0_443 = arith.constant 0 : index
      %738 = vector.load %arg11[%c1_441, %c0_442, %c0_443] : memref<8x8x40xf32, #tpu.memory_space<vmem>>, vector<1x8x40xf32>
      %739 = vector.shape_cast %738 : vector<1x8x40xf32> to vector<8x40xf32>
      %740 = vector.shape_cast %737 : vector<8x40xf32> to vector<1x8x40xf32>
      tpu.vector_store %arg11[%c1_441, %c0_442, %c0_443], %740 {strides = array<i32>} : memref<8x8x40xf32, #tpu.memory_space<vmem>>, vector<1x8x40xf32>,
      %c0_444 = arith.constant 0 : index
      %c0_445 = arith.constant 0 : index
      %c0_446 = arith.constant 0 : index
      %741 = vector.load %arg10[%c0_444, %c0_445, %c0_446] : memref<16x9x41xf32, #tpu.memory_space<vmem>>, vector<1x9x41xf32>
      %742 = vector.shape_cast %741 : vector<1x9x41xf32> to vector<9x41xf32>
      %c0_447 = arith.constant 0 : index
      %c2_448 = arith.constant 2 : index
      %743 = memref.load %arg4[%c0_447, %c2_448] : memref<16x8xf32, #tpu.memory_space<smem>>
      %744 = vector.broadcast %743 : f32 to vector<9x41xf32>
      %745 = arith.mulf %742, %744 : vector<9x41xf32>
      %c2_449 = arith.constant 2 : index
      %746 = memref.load %arg5[%c2_449] : memref<8xf32, #tpu.memory_space<smem>>
      %747 = vector.broadcast %746 : f32 to vector<9x41xf32>
      %748 = arith.addf %745, %747 : vector<9x41xf32>
      %c0_450 = arith.constant 0 : index
      %c3_451 = arith.constant 3 : index
      %749 = memref.load %arg4[%c0_450, %c3_451] : memref<16x8xf32, #tpu.memory_space<smem>>
      %750 = vector.broadcast %749 : f32 to vector<9x41xf32>
      %751 = arith.mulf %742, %750 : vector<9x41xf32>
      %c3_452 = arith.constant 3 : index
      %752 = memref.load %arg5[%c3_452] : memref<8xf32, #tpu.memory_space<smem>>
      %753 = vector.broadcast %752 : f32 to vector<9x41xf32>
      %754 = arith.addf %751, %753 : vector<9x41xf32>
      %c1_453 = arith.constant 1 : index
      %c0_454 = arith.constant 0 : index
      %c0_455 = arith.constant 0 : index
      %755 = vector.load %arg10[%c1_453, %c0_454, %c0_455] : memref<16x9x41xf32, #tpu.memory_space<vmem>>, vector<1x9x41xf32>
      %756 = vector.shape_cast %755 : vector<1x9x41xf32> to vector<9x41xf32>
      %c1_456 = arith.constant 1 : index
      %c2_457 = arith.constant 2 : index
      %757 = memref.load %arg4[%c1_456, %c2_457] : memref<16x8xf32, #tpu.memory_space<smem>>
      %758 = vector.broadcast %757 : f32 to vector<9x41xf32>
      %759 = arith.mulf %756, %758 : vector<9x41xf32>
      %760 = arith.addf %748, %759 : vector<9x41xf32>
      %c1_458 = arith.constant 1 : index
      %c3_459 = arith.constant 3 : index
      %761 = memref.load %arg4[%c1_458, %c3_459] : memref<16x8xf32, #tpu.memory_space<smem>>
      %762 = vector.broadcast %761 : f32 to vector<9x41xf32>
      %763 = arith.mulf %756, %762 : vector<9x41xf32>
      %764 = arith.addf %754, %763 : vector<9x41xf32>
      %c2_460 = arith.constant 2 : index
      %c0_461 = arith.constant 0 : index
      %c0_462 = arith.constant 0 : index
      %765 = vector.load %arg10[%c2_460, %c0_461, %c0_462] : memref<16x9x41xf32, #tpu.memory_space<vmem>>, vector<1x9x41xf32>
      %766 = vector.shape_cast %765 : vector<1x9x41xf32> to vector<9x41xf32>
      %c2_463 = arith.constant 2 : index
      %c2_464 = arith.constant 2 : index
      %767 = memref.load %arg4[%c2_463, %c2_464] : memref<16x8xf32, #tpu.memory_space<smem>>
      %768 = vector.broadcast %767 : f32 to vector<9x41xf32>
      %769 = arith.mulf %766, %768 : vector<9x41xf32>
      %770 = arith.addf %760, %769 : vector<9x41xf32>
      %c2_465 = arith.constant 2 : index
      %c3_466 = arith.constant 3 : index
      %771 = memref.load %arg4[%c2_465, %c3_466] : memref<16x8xf32, #tpu.memory_space<smem>>
      %772 = vector.broadcast %771 : f32 to vector<9x41xf32>
      %773 = arith.mulf %766, %772 : vector<9x41xf32>
      %774 = arith.addf %764, %773 : vector<9x41xf32>
      %c3_467 = arith.constant 3 : index
      %c0_468 = arith.constant 0 : index
      %c0_469 = arith.constant 0 : index
      %775 = vector.load %arg10[%c3_467, %c0_468, %c0_469] : memref<16x9x41xf32, #tpu.memory_space<vmem>>, vector<1x9x41xf32>
      %776 = vector.shape_cast %775 : vector<1x9x41xf32> to vector<9x41xf32>
      %c3_470 = arith.constant 3 : index
      %c2_471 = arith.constant 2 : index
      %777 = memref.load %arg4[%c3_470, %c2_471] : memref<16x8xf32, #tpu.memory_space<smem>>
      %778 = vector.broadcast %777 : f32 to vector<9x41xf32>
      %779 = arith.mulf %776, %778 : vector<9x41xf32>
      %780 = arith.addf %770, %779 : vector<9x41xf32>
      %c3_472 = arith.constant 3 : index
      %c3_473 = arith.constant 3 : index
      %781 = memref.load %arg4[%c3_472, %c3_473] : memref<16x8xf32, #tpu.memory_space<smem>>
      %782 = vector.broadcast %781 : f32 to vector<9x41xf32>
      %783 = arith.mulf %776, %782 : vector<9x41xf32>
      %784 = arith.addf %774, %783 : vector<9x41xf32>
      %c4_474 = arith.constant 4 : index
      %c0_475 = arith.constant 0 : index
      %c0_476 = arith.constant 0 : index
      %785 = vector.load %arg10[%c4_474, %c0_475, %c0_476] : memref<16x9x41xf32, #tpu.memory_space<vmem>>, vector<1x9x41xf32>
      %786 = vector.shape_cast %785 : vector<1x9x41xf32> to vector<9x41xf32>
      %c4_477 = arith.constant 4 : index
      %c2_478 = arith.constant 2 : index
      %787 = memref.load %arg4[%c4_477, %c2_478] : memref<16x8xf32, #tpu.memory_space<smem>>
      %788 = vector.broadcast %787 : f32 to vector<9x41xf32>
      %789 = arith.mulf %786, %788 : vector<9x41xf32>
      %790 = arith.addf %780, %789 : vector<9x41xf32>
      %c4_479 = arith.constant 4 : index
      %c3_480 = arith.constant 3 : index
      %791 = memref.load %arg4[%c4_479, %c3_480] : memref<16x8xf32, #tpu.memory_space<smem>>
      %792 = vector.broadcast %791 : f32 to vector<9x41xf32>
      %793 = arith.mulf %786, %792 : vector<9x41xf32>
      %794 = arith.addf %784, %793 : vector<9x41xf32>
      %c5_481 = arith.constant 5 : index
      %c0_482 = arith.constant 0 : index
      %c0_483 = arith.constant 0 : index
      %795 = vector.load %arg10[%c5_481, %c0_482, %c0_483] : memref<16x9x41xf32, #tpu.memory_space<vmem>>, vector<1x9x41xf32>
      %796 = vector.shape_cast %795 : vector<1x9x41xf32> to vector<9x41xf32>
      %c5_484 = arith.constant 5 : index
      %c2_485 = arith.constant 2 : index
      %797 = memref.load %arg4[%c5_484, %c2_485] : memref<16x8xf32, #tpu.memory_space<smem>>
      %798 = vector.broadcast %797 : f32 to vector<9x41xf32>
      %799 = arith.mulf %796, %798 : vector<9x41xf32>
      %800 = arith.addf %790, %799 : vector<9x41xf32>
      %c5_486 = arith.constant 5 : index
      %c3_487 = arith.constant 3 : index
      %801 = memref.load %arg4[%c5_486, %c3_487] : memref<16x8xf32, #tpu.memory_space<smem>>
      %802 = vector.broadcast %801 : f32 to vector<9x41xf32>
      %803 = arith.mulf %796, %802 : vector<9x41xf32>
      %804 = arith.addf %794, %803 : vector<9x41xf32>
      %c6_488 = arith.constant 6 : index
      %c0_489 = arith.constant 0 : index
      %c0_490 = arith.constant 0 : index
      %805 = vector.load %arg10[%c6_488, %c0_489, %c0_490] : memref<16x9x41xf32, #tpu.memory_space<vmem>>, vector<1x9x41xf32>
      %806 = vector.shape_cast %805 : vector<1x9x41xf32> to vector<9x41xf32>
      %c6_491 = arith.constant 6 : index
      %c2_492 = arith.constant 2 : index
      %807 = memref.load %arg4[%c6_491, %c2_492] : memref<16x8xf32, #tpu.memory_space<smem>>
      %808 = vector.broadcast %807 : f32 to vector<9x41xf32>
      %809 = arith.mulf %806, %808 : vector<9x41xf32>
      %810 = arith.addf %800, %809 : vector<9x41xf32>
      %c6_493 = arith.constant 6 : index
      %c3_494 = arith.constant 3 : index
      %811 = memref.load %arg4[%c6_493, %c3_494] : memref<16x8xf32, #tpu.memory_space<smem>>
      %812 = vector.broadcast %811 : f32 to vector<9x41xf32>
      %813 = arith.mulf %806, %812 : vector<9x41xf32>
      %814 = arith.addf %804, %813 : vector<9x41xf32>
      %c7_495 = arith.constant 7 : index
      %c0_496 = arith.constant 0 : index
      %c0_497 = arith.constant 0 : index
      %815 = vector.load %arg10[%c7_495, %c0_496, %c0_497] : memref<16x9x41xf32, #tpu.memory_space<vmem>>, vector<1x9x41xf32>
      %816 = vector.shape_cast %815 : vector<1x9x41xf32> to vector<9x41xf32>
      %c7_498 = arith.constant 7 : index
      %c2_499 = arith.constant 2 : index
      %817 = memref.load %arg4[%c7_498, %c2_499] : memref<16x8xf32, #tpu.memory_space<smem>>
      %818 = vector.broadcast %817 : f32 to vector<9x41xf32>
      %819 = arith.mulf %816, %818 : vector<9x41xf32>
      %820 = arith.addf %810, %819 : vector<9x41xf32>
      %c7_500 = arith.constant 7 : index
      %c3_501 = arith.constant 3 : index
      %821 = memref.load %arg4[%c7_500, %c3_501] : memref<16x8xf32, #tpu.memory_space<smem>>
      %822 = vector.broadcast %821 : f32 to vector<9x41xf32>
      %823 = arith.mulf %816, %822 : vector<9x41xf32>
      %824 = arith.addf %814, %823 : vector<9x41xf32>
      %c8_502 = arith.constant 8 : index
      %c0_503 = arith.constant 0 : index
      %c0_504 = arith.constant 0 : index
      %825 = vector.load %arg10[%c8_502, %c0_503, %c0_504] : memref<16x9x41xf32, #tpu.memory_space<vmem>>, vector<1x9x41xf32>
      %826 = vector.shape_cast %825 : vector<1x9x41xf32> to vector<9x41xf32>
      %c8_505 = arith.constant 8 : index
      %c2_506 = arith.constant 2 : index
      %827 = memref.load %arg4[%c8_505, %c2_506] : memref<16x8xf32, #tpu.memory_space<smem>>
      %828 = vector.broadcast %827 : f32 to vector<9x41xf32>
      %829 = arith.mulf %826, %828 : vector<9x41xf32>
      %830 = arith.addf %820, %829 : vector<9x41xf32>
      %c8_507 = arith.constant 8 : index
      %c3_508 = arith.constant 3 : index
      %831 = memref.load %arg4[%c8_507, %c3_508] : memref<16x8xf32, #tpu.memory_space<smem>>
      %832 = vector.broadcast %831 : f32 to vector<9x41xf32>
      %833 = arith.mulf %826, %832 : vector<9x41xf32>
      %834 = arith.addf %824, %833 : vector<9x41xf32>
      %c9_509 = arith.constant 9 : index
      %c0_510 = arith.constant 0 : index
      %c0_511 = arith.constant 0 : index
      %835 = vector.load %arg10[%c9_509, %c0_510, %c0_511] : memref<16x9x41xf32, #tpu.memory_space<vmem>>, vector<1x9x41xf32>
      %836 = vector.shape_cast %835 : vector<1x9x41xf32> to vector<9x41xf32>
      %c9_512 = arith.constant 9 : index
      %c2_513 = arith.constant 2 : index
      %837 = memref.load %arg4[%c9_512, %c2_513] : memref<16x8xf32, #tpu.memory_space<smem>>
      %838 = vector.broadcast %837 : f32 to vector<9x41xf32>
      %839 = arith.mulf %836, %838 : vector<9x41xf32>
      %840 = arith.addf %830, %839 : vector<9x41xf32>
      %c9_514 = arith.constant 9 : index
      %c3_515 = arith.constant 3 : index
      %841 = memref.load %arg4[%c9_514, %c3_515] : memref<16x8xf32, #tpu.memory_space<smem>>
      %842 = vector.broadcast %841 : f32 to vector<9x41xf32>
      %843 = arith.mulf %836, %842 : vector<9x41xf32>
      %844 = arith.addf %834, %843 : vector<9x41xf32>
      %c10_516 = arith.constant 10 : index
      %c0_517 = arith.constant 0 : index
      %c0_518 = arith.constant 0 : index
      %845 = vector.load %arg10[%c10_516, %c0_517, %c0_518] : memref<16x9x41xf32, #tpu.memory_space<vmem>>, vector<1x9x41xf32>
      %846 = vector.shape_cast %845 : vector<1x9x41xf32> to vector<9x41xf32>
      %c10_519 = arith.constant 10 : index
      %c2_520 = arith.constant 2 : index
      %847 = memref.load %arg4[%c10_519, %c2_520] : memref<16x8xf32, #tpu.memory_space<smem>>
      %848 = vector.broadcast %847 : f32 to vector<9x41xf32>
      %849 = arith.mulf %846, %848 : vector<9x41xf32>
      %850 = arith.addf %840, %849 : vector<9x41xf32>
      %c10_521 = arith.constant 10 : index
      %c3_522 = arith.constant 3 : index
      %851 = memref.load %arg4[%c10_521, %c3_522] : memref<16x8xf32, #tpu.memory_space<smem>>
      %852 = vector.broadcast %851 : f32 to vector<9x41xf32>
      %853 = arith.mulf %846, %852 : vector<9x41xf32>
      %854 = arith.addf %844, %853 : vector<9x41xf32>
      %c11_523 = arith.constant 11 : index
      %c0_524 = arith.constant 0 : index
      %c0_525 = arith.constant 0 : index
      %855 = vector.load %arg10[%c11_523, %c0_524, %c0_525] : memref<16x9x41xf32, #tpu.memory_space<vmem>>, vector<1x9x41xf32>
      %856 = vector.shape_cast %855 : vector<1x9x41xf32> to vector<9x41xf32>
      %c11_526 = arith.constant 11 : index
      %c2_527 = arith.constant 2 : index
      %857 = memref.load %arg4[%c11_526, %c2_527] : memref<16x8xf32, #tpu.memory_space<smem>>
      %858 = vector.broadcast %857 : f32 to vector<9x41xf32>
      %859 = arith.mulf %856, %858 : vector<9x41xf32>
      %860 = arith.addf %850, %859 : vector<9x41xf32>
      %c11_528 = arith.constant 11 : index
      %c3_529 = arith.constant 3 : index
      %861 = memref.load %arg4[%c11_528, %c3_529] : memref<16x8xf32, #tpu.memory_space<smem>>
      %862 = vector.broadcast %861 : f32 to vector<9x41xf32>
      %863 = arith.mulf %856, %862 : vector<9x41xf32>
      %864 = arith.addf %854, %863 : vector<9x41xf32>
      %c12_530 = arith.constant 12 : index
      %c0_531 = arith.constant 0 : index
      %c0_532 = arith.constant 0 : index
      %865 = vector.load %arg10[%c12_530, %c0_531, %c0_532] : memref<16x9x41xf32, #tpu.memory_space<vmem>>, vector<1x9x41xf32>
      %866 = vector.shape_cast %865 : vector<1x9x41xf32> to vector<9x41xf32>
      %c12_533 = arith.constant 12 : index
      %c2_534 = arith.constant 2 : index
      %867 = memref.load %arg4[%c12_533, %c2_534] : memref<16x8xf32, #tpu.memory_space<smem>>
      %868 = vector.broadcast %867 : f32 to vector<9x41xf32>
      %869 = arith.mulf %866, %868 : vector<9x41xf32>
      %870 = arith.addf %860, %869 : vector<9x41xf32>
      %c12_535 = arith.constant 12 : index
      %c3_536 = arith.constant 3 : index
      %871 = memref.load %arg4[%c12_535, %c3_536] : memref<16x8xf32, #tpu.memory_space<smem>>
      %872 = vector.broadcast %871 : f32 to vector<9x41xf32>
      %873 = arith.mulf %866, %872 : vector<9x41xf32>
      %874 = arith.addf %864, %873 : vector<9x41xf32>
      %c13_537 = arith.constant 13 : index
      %c0_538 = arith.constant 0 : index
      %c0_539 = arith.constant 0 : index
      %875 = vector.load %arg10[%c13_537, %c0_538, %c0_539] : memref<16x9x41xf32, #tpu.memory_space<vmem>>, vector<1x9x41xf32>
      %876 = vector.shape_cast %875 : vector<1x9x41xf32> to vector<9x41xf32>
      %c13_540 = arith.constant 13 : index
      %c2_541 = arith.constant 2 : index
      %877 = memref.load %arg4[%c13_540, %c2_541] : memref<16x8xf32, #tpu.memory_space<smem>>
      %878 = vector.broadcast %877 : f32 to vector<9x41xf32>
      %879 = arith.mulf %876, %878 : vector<9x41xf32>
      %880 = arith.addf %870, %879 : vector<9x41xf32>
      %c13_542 = arith.constant 13 : index
      %c3_543 = arith.constant 3 : index
      %881 = memref.load %arg4[%c13_542, %c3_543] : memref<16x8xf32, #tpu.memory_space<smem>>
      %882 = vector.broadcast %881 : f32 to vector<9x41xf32>
      %883 = arith.mulf %876, %882 : vector<9x41xf32>
      %884 = arith.addf %874, %883 : vector<9x41xf32>
      %c14_544 = arith.constant 14 : index
      %c0_545 = arith.constant 0 : index
      %c0_546 = arith.constant 0 : index
      %885 = vector.load %arg10[%c14_544, %c0_545, %c0_546] : memref<16x9x41xf32, #tpu.memory_space<vmem>>, vector<1x9x41xf32>
      %886 = vector.shape_cast %885 : vector<1x9x41xf32> to vector<9x41xf32>
      %c14_547 = arith.constant 14 : index
      %c2_548 = arith.constant 2 : index
      %887 = memref.load %arg4[%c14_547, %c2_548] : memref<16x8xf32, #tpu.memory_space<smem>>
      %888 = vector.broadcast %887 : f32 to vector<9x41xf32>
      %889 = arith.mulf %886, %888 : vector<9x41xf32>
      %890 = arith.addf %880, %889 : vector<9x41xf32>
      %c14_549 = arith.constant 14 : index
      %c3_550 = arith.constant 3 : index
      %891 = memref.load %arg4[%c14_549, %c3_550] : memref<16x8xf32, #tpu.memory_space<smem>>
      %892 = vector.broadcast %891 : f32 to vector<9x41xf32>
      %893 = arith.mulf %886, %892 : vector<9x41xf32>
      %894 = arith.addf %884, %893 : vector<9x41xf32>
      %c15_551 = arith.constant 15 : index
      %c0_552 = arith.constant 0 : index
      %c0_553 = arith.constant 0 : index
      %895 = vector.load %arg10[%c15_551, %c0_552, %c0_553] : memref<16x9x41xf32, #tpu.memory_space<vmem>>, vector<1x9x41xf32>
      %896 = vector.shape_cast %895 : vector<1x9x41xf32> to vector<9x41xf32>
      %c15_554 = arith.constant 15 : index
      %c2_555 = arith.constant 2 : index
      %897 = memref.load %arg4[%c15_554, %c2_555] : memref<16x8xf32, #tpu.memory_space<smem>>
      %898 = vector.broadcast %897 : f32 to vector<9x41xf32>
      %899 = arith.mulf %896, %898 : vector<9x41xf32>
      %900 = arith.addf %890, %899 : vector<9x41xf32>
      %c15_556 = arith.constant 15 : index
      %c3_557 = arith.constant 3 : index
      %901 = memref.load %arg4[%c15_556, %c3_557] : memref<16x8xf32, #tpu.memory_space<smem>>
      %902 = vector.broadcast %901 : f32 to vector<9x41xf32>
      %903 = arith.mulf %896, %902 : vector<9x41xf32>
      %904 = arith.addf %894, %903 : vector<9x41xf32>
      %905 = vector.extract_strided_slice %900 {offsets = [0, 0], sizes = [9, 40], strides = [1, 1]} : vector<9x41xf32> to vector<9x40xf32>
      %906 = vector.extract_strided_slice %900 {offsets = [0, 1], sizes = [9, 40], strides = [1, 1]} : vector<9x41xf32> to vector<9x40xf32>
      %907 = arith.maximumf %905, %906 : vector<9x40xf32>
      %908 = vector.extract_strided_slice %907 {offsets = [0, 0], sizes = [8, 40], strides = [1, 1]} : vector<9x40xf32> to vector<8x40xf32>
      %909 = vector.extract_strided_slice %907 {offsets = [1, 0], sizes = [8, 40], strides = [1, 1]} : vector<9x40xf32> to vector<8x40xf32>
      %910 = arith.maximumf %908, %909 : vector<8x40xf32>
      %cst_558 = arith.constant 0.000000e+00 : f32
      %911 = vector.broadcast %cst_558 : f32 to vector<8x40xf32>
      %912 = arith.maximumf %910, %911 : vector<8x40xf32>
      %c2_559 = arith.constant 2 : index
      %c0_560 = arith.constant 0 : index
      %c0_561 = arith.constant 0 : index
      %913 = vector.load %arg11[%c2_559, %c0_560, %c0_561] : memref<8x8x40xf32, #tpu.memory_space<vmem>>, vector<1x8x40xf32>
      %914 = vector.shape_cast %913 : vector<1x8x40xf32> to vector<8x40xf32>
      %915 = vector.shape_cast %912 : vector<8x40xf32> to vector<1x8x40xf32>
      tpu.vector_store %arg11[%c2_559, %c0_560, %c0_561], %915 {strides = array<i32>} : memref<8x8x40xf32, #tpu.memory_space<vmem>>, vector<1x8x40xf32>,
      %916 = vector.extract_strided_slice %904 {offsets = [0, 0], sizes = [9, 40], strides = [1, 1]} : vector<9x41xf32> to vector<9x40xf32>
      %917 = vector.extract_strided_slice %904 {offsets = [0, 1], sizes = [9, 40], strides = [1, 1]} : vector<9x41xf32> to vector<9x40xf32>
      %918 = arith.maximumf %916, %917 : vector<9x40xf32>
      %919 = vector.extract_strided_slice %918 {offsets = [0, 0], sizes = [8, 40], strides = [1, 1]} : vector<9x40xf32> to vector<8x40xf32>
      %920 = vector.extract_strided_slice %918 {offsets = [1, 0], sizes = [8, 40], strides = [1, 1]} : vector<9x40xf32> to vector<8x40xf32>
      %921 = arith.maximumf %919, %920 : vector<8x40xf32>
      %cst_562 = arith.constant 0.000000e+00 : f32
      %922 = vector.broadcast %cst_562 : f32 to vector<8x40xf32>
      %923 = arith.maximumf %921, %922 : vector<8x40xf32>
      %c3_563 = arith.constant 3 : index
      %c0_564 = arith.constant 0 : index
      %c0_565 = arith.constant 0 : index
      %924 = vector.load %arg11[%c3_563, %c0_564, %c0_565] : memref<8x8x40xf32, #tpu.memory_space<vmem>>, vector<1x8x40xf32>
      %925 = vector.shape_cast %924 : vector<1x8x40xf32> to vector<8x40xf32>
      %926 = vector.shape_cast %923 : vector<8x40xf32> to vector<1x8x40xf32>
      tpu.vector_store %arg11[%c3_563, %c0_564, %c0_565], %926 {strides = array<i32>} : memref<8x8x40xf32, #tpu.memory_space<vmem>>, vector<1x8x40xf32>,
      %c0_566 = arith.constant 0 : index
      %c0_567 = arith.constant 0 : index
      %c0_568 = arith.constant 0 : index
      %927 = vector.load %arg10[%c0_566, %c0_567, %c0_568] : memref<16x9x41xf32, #tpu.memory_space<vmem>>, vector<1x9x41xf32>
      %928 = vector.shape_cast %927 : vector<1x9x41xf32> to vector<9x41xf32>
      %c0_569 = arith.constant 0 : index
      %c4_570 = arith.constant 4 : index
      %929 = memref.load %arg4[%c0_569, %c4_570] : memref<16x8xf32, #tpu.memory_space<smem>>
      %930 = vector.broadcast %929 : f32 to vector<9x41xf32>
      %931 = arith.mulf %928, %930 : vector<9x41xf32>
      %c4_571 = arith.constant 4 : index
      %932 = memref.load %arg5[%c4_571] : memref<8xf32, #tpu.memory_space<smem>>
      %933 = vector.broadcast %932 : f32 to vector<9x41xf32>
      %934 = arith.addf %931, %933 : vector<9x41xf32>
      %c0_572 = arith.constant 0 : index
      %c5_573 = arith.constant 5 : index
      %935 = memref.load %arg4[%c0_572, %c5_573] : memref<16x8xf32, #tpu.memory_space<smem>>
      %936 = vector.broadcast %935 : f32 to vector<9x41xf32>
      %937 = arith.mulf %928, %936 : vector<9x41xf32>
      %c5_574 = arith.constant 5 : index
      %938 = memref.load %arg5[%c5_574] : memref<8xf32, #tpu.memory_space<smem>>
      %939 = vector.broadcast %938 : f32 to vector<9x41xf32>
      %940 = arith.addf %937, %939 : vector<9x41xf32>
      %c1_575 = arith.constant 1 : index
      %c0_576 = arith.constant 0 : index
      %c0_577 = arith.constant 0 : index
      %941 = vector.load %arg10[%c1_575, %c0_576, %c0_577] : memref<16x9x41xf32, #tpu.memory_space<vmem>>, vector<1x9x41xf32>
      %942 = vector.shape_cast %941 : vector<1x9x41xf32> to vector<9x41xf32>
      %c1_578 = arith.constant 1 : index
      %c4_579 = arith.constant 4 : index
      %943 = memref.load %arg4[%c1_578, %c4_579] : memref<16x8xf32, #tpu.memory_space<smem>>
      %944 = vector.broadcast %943 : f32 to vector<9x41xf32>
      %945 = arith.mulf %942, %944 : vector<9x41xf32>
      %946 = arith.addf %934, %945 : vector<9x41xf32>
      %c1_580 = arith.constant 1 : index
      %c5_581 = arith.constant 5 : index
      %947 = memref.load %arg4[%c1_580, %c5_581] : memref<16x8xf32, #tpu.memory_space<smem>>
      %948 = vector.broadcast %947 : f32 to vector<9x41xf32>
      %949 = arith.mulf %942, %948 : vector<9x41xf32>
      %950 = arith.addf %940, %949 : vector<9x41xf32>
      %c2_582 = arith.constant 2 : index
      %c0_583 = arith.constant 0 : index
      %c0_584 = arith.constant 0 : index
      %951 = vector.load %arg10[%c2_582, %c0_583, %c0_584] : memref<16x9x41xf32, #tpu.memory_space<vmem>>, vector<1x9x41xf32>
      %952 = vector.shape_cast %951 : vector<1x9x41xf32> to vector<9x41xf32>
      %c2_585 = arith.constant 2 : index
      %c4_586 = arith.constant 4 : index
      %953 = memref.load %arg4[%c2_585, %c4_586] : memref<16x8xf32, #tpu.memory_space<smem>>
      %954 = vector.broadcast %953 : f32 to vector<9x41xf32>
      %955 = arith.mulf %952, %954 : vector<9x41xf32>
      %956 = arith.addf %946, %955 : vector<9x41xf32>
      %c2_587 = arith.constant 2 : index
      %c5_588 = arith.constant 5 : index
      %957 = memref.load %arg4[%c2_587, %c5_588] : memref<16x8xf32, #tpu.memory_space<smem>>
      %958 = vector.broadcast %957 : f32 to vector<9x41xf32>
      %959 = arith.mulf %952, %958 : vector<9x41xf32>
      %960 = arith.addf %950, %959 : vector<9x41xf32>
      %c3_589 = arith.constant 3 : index
      %c0_590 = arith.constant 0 : index
      %c0_591 = arith.constant 0 : index
      %961 = vector.load %arg10[%c3_589, %c0_590, %c0_591] : memref<16x9x41xf32, #tpu.memory_space<vmem>>, vector<1x9x41xf32>
      %962 = vector.shape_cast %961 : vector<1x9x41xf32> to vector<9x41xf32>
      %c3_592 = arith.constant 3 : index
      %c4_593 = arith.constant 4 : index
      %963 = memref.load %arg4[%c3_592, %c4_593] : memref<16x8xf32, #tpu.memory_space<smem>>
      %964 = vector.broadcast %963 : f32 to vector<9x41xf32>
      %965 = arith.mulf %962, %964 : vector<9x41xf32>
      %966 = arith.addf %956, %965 : vector<9x41xf32>
      %c3_594 = arith.constant 3 : index
      %c5_595 = arith.constant 5 : index
      %967 = memref.load %arg4[%c3_594, %c5_595] : memref<16x8xf32, #tpu.memory_space<smem>>
      %968 = vector.broadcast %967 : f32 to vector<9x41xf32>
      %969 = arith.mulf %962, %968 : vector<9x41xf32>
      %970 = arith.addf %960, %969 : vector<9x41xf32>
      %c4_596 = arith.constant 4 : index
      %c0_597 = arith.constant 0 : index
      %c0_598 = arith.constant 0 : index
      %971 = vector.load %arg10[%c4_596, %c0_597, %c0_598] : memref<16x9x41xf32, #tpu.memory_space<vmem>>, vector<1x9x41xf32>
      %972 = vector.shape_cast %971 : vector<1x9x41xf32> to vector<9x41xf32>
      %c4_599 = arith.constant 4 : index
      %c4_600 = arith.constant 4 : index
      %973 = memref.load %arg4[%c4_599, %c4_600] : memref<16x8xf32, #tpu.memory_space<smem>>
      %974 = vector.broadcast %973 : f32 to vector<9x41xf32>
      %975 = arith.mulf %972, %974 : vector<9x41xf32>
      %976 = arith.addf %966, %975 : vector<9x41xf32>
      %c4_601 = arith.constant 4 : index
      %c5_602 = arith.constant 5 : index
      %977 = memref.load %arg4[%c4_601, %c5_602] : memref<16x8xf32, #tpu.memory_space<smem>>
      %978 = vector.broadcast %977 : f32 to vector<9x41xf32>
      %979 = arith.mulf %972, %978 : vector<9x41xf32>
      %980 = arith.addf %970, %979 : vector<9x41xf32>
      %c5_603 = arith.constant 5 : index
      %c0_604 = arith.constant 0 : index
      %c0_605 = arith.constant 0 : index
      %981 = vector.load %arg10[%c5_603, %c0_604, %c0_605] : memref<16x9x41xf32, #tpu.memory_space<vmem>>, vector<1x9x41xf32>
      %982 = vector.shape_cast %981 : vector<1x9x41xf32> to vector<9x41xf32>
      %c5_606 = arith.constant 5 : index
      %c4_607 = arith.constant 4 : index
      %983 = memref.load %arg4[%c5_606, %c4_607] : memref<16x8xf32, #tpu.memory_space<smem>>
      %984 = vector.broadcast %983 : f32 to vector<9x41xf32>
      %985 = arith.mulf %982, %984 : vector<9x41xf32>
      %986 = arith.addf %976, %985 : vector<9x41xf32>
      %c5_608 = arith.constant 5 : index
      %c5_609 = arith.constant 5 : index
      %987 = memref.load %arg4[%c5_608, %c5_609] : memref<16x8xf32, #tpu.memory_space<smem>>
      %988 = vector.broadcast %987 : f32 to vector<9x41xf32>
      %989 = arith.mulf %982, %988 : vector<9x41xf32>
      %990 = arith.addf %980, %989 : vector<9x41xf32>
      %c6_610 = arith.constant 6 : index
      %c0_611 = arith.constant 0 : index
      %c0_612 = arith.constant 0 : index
      %991 = vector.load %arg10[%c6_610, %c0_611, %c0_612] : memref<16x9x41xf32, #tpu.memory_space<vmem>>, vector<1x9x41xf32>
      %992 = vector.shape_cast %991 : vector<1x9x41xf32> to vector<9x41xf32>
      %c6_613 = arith.constant 6 : index
      %c4_614 = arith.constant 4 : index
      %993 = memref.load %arg4[%c6_613, %c4_614] : memref<16x8xf32, #tpu.memory_space<smem>>
      %994 = vector.broadcast %993 : f32 to vector<9x41xf32>
      %995 = arith.mulf %992, %994 : vector<9x41xf32>
      %996 = arith.addf %986, %995 : vector<9x41xf32>
      %c6_615 = arith.constant 6 : index
      %c5_616 = arith.constant 5 : index
      %997 = memref.load %arg4[%c6_615, %c5_616] : memref<16x8xf32, #tpu.memory_space<smem>>
      %998 = vector.broadcast %997 : f32 to vector<9x41xf32>
      %999 = arith.mulf %992, %998 : vector<9x41xf32>
      %1000 = arith.addf %990, %999 : vector<9x41xf32>
      %c7_617 = arith.constant 7 : index
      %c0_618 = arith.constant 0 : index
      %c0_619 = arith.constant 0 : index
      %1001 = vector.load %arg10[%c7_617, %c0_618, %c0_619] : memref<16x9x41xf32, #tpu.memory_space<vmem>>, vector<1x9x41xf32>
      %1002 = vector.shape_cast %1001 : vector<1x9x41xf32> to vector<9x41xf32>
      %c7_620 = arith.constant 7 : index
      %c4_621 = arith.constant 4 : index
      %1003 = memref.load %arg4[%c7_620, %c4_621] : memref<16x8xf32, #tpu.memory_space<smem>>
      %1004 = vector.broadcast %1003 : f32 to vector<9x41xf32>
      %1005 = arith.mulf %1002, %1004 : vector<9x41xf32>
      %1006 = arith.addf %996, %1005 : vector<9x41xf32>
      %c7_622 = arith.constant 7 : index
      %c5_623 = arith.constant 5 : index
      %1007 = memref.load %arg4[%c7_622, %c5_623] : memref<16x8xf32, #tpu.memory_space<smem>>
      %1008 = vector.broadcast %1007 : f32 to vector<9x41xf32>
      %1009 = arith.mulf %1002, %1008 : vector<9x41xf32>
      %1010 = arith.addf %1000, %1009 : vector<9x41xf32>
      %c8_624 = arith.constant 8 : index
      %c0_625 = arith.constant 0 : index
      %c0_626 = arith.constant 0 : index
      %1011 = vector.load %arg10[%c8_624, %c0_625, %c0_626] : memref<16x9x41xf32, #tpu.memory_space<vmem>>, vector<1x9x41xf32>
      %1012 = vector.shape_cast %1011 : vector<1x9x41xf32> to vector<9x41xf32>
      %c8_627 = arith.constant 8 : index
      %c4_628 = arith.constant 4 : index
      %1013 = memref.load %arg4[%c8_627, %c4_628] : memref<16x8xf32, #tpu.memory_space<smem>>
      %1014 = vector.broadcast %1013 : f32 to vector<9x41xf32>
      %1015 = arith.mulf %1012, %1014 : vector<9x41xf32>
      %1016 = arith.addf %1006, %1015 : vector<9x41xf32>
      %c8_629 = arith.constant 8 : index
      %c5_630 = arith.constant 5 : index
      %1017 = memref.load %arg4[%c8_629, %c5_630] : memref<16x8xf32, #tpu.memory_space<smem>>
      %1018 = vector.broadcast %1017 : f32 to vector<9x41xf32>
      %1019 = arith.mulf %1012, %1018 : vector<9x41xf32>
      %1020 = arith.addf %1010, %1019 : vector<9x41xf32>
      %c9_631 = arith.constant 9 : index
      %c0_632 = arith.constant 0 : index
      %c0_633 = arith.constant 0 : index
      %1021 = vector.load %arg10[%c9_631, %c0_632, %c0_633] : memref<16x9x41xf32, #tpu.memory_space<vmem>>, vector<1x9x41xf32>
      %1022 = vector.shape_cast %1021 : vector<1x9x41xf32> to vector<9x41xf32>
      %c9_634 = arith.constant 9 : index
      %c4_635 = arith.constant 4 : index
      %1023 = memref.load %arg4[%c9_634, %c4_635] : memref<16x8xf32, #tpu.memory_space<smem>>
      %1024 = vector.broadcast %1023 : f32 to vector<9x41xf32>
      %1025 = arith.mulf %1022, %1024 : vector<9x41xf32>
      %1026 = arith.addf %1016, %1025 : vector<9x41xf32>
      %c9_636 = arith.constant 9 : index
      %c5_637 = arith.constant 5 : index
      %1027 = memref.load %arg4[%c9_636, %c5_637] : memref<16x8xf32, #tpu.memory_space<smem>>
      %1028 = vector.broadcast %1027 : f32 to vector<9x41xf32>
      %1029 = arith.mulf %1022, %1028 : vector<9x41xf32>
      %1030 = arith.addf %1020, %1029 : vector<9x41xf32>
      %c10_638 = arith.constant 10 : index
      %c0_639 = arith.constant 0 : index
      %c0_640 = arith.constant 0 : index
      %1031 = vector.load %arg10[%c10_638, %c0_639, %c0_640] : memref<16x9x41xf32, #tpu.memory_space<vmem>>, vector<1x9x41xf32>
      %1032 = vector.shape_cast %1031 : vector<1x9x41xf32> to vector<9x41xf32>
      %c10_641 = arith.constant 10 : index
      %c4_642 = arith.constant 4 : index
      %1033 = memref.load %arg4[%c10_641, %c4_642] : memref<16x8xf32, #tpu.memory_space<smem>>
      %1034 = vector.broadcast %1033 : f32 to vector<9x41xf32>
      %1035 = arith.mulf %1032, %1034 : vector<9x41xf32>
      %1036 = arith.addf %1026, %1035 : vector<9x41xf32>
      %c10_643 = arith.constant 10 : index
      %c5_644 = arith.constant 5 : index
      %1037 = memref.load %arg4[%c10_643, %c5_644] : memref<16x8xf32, #tpu.memory_space<smem>>
      %1038 = vector.broadcast %1037 : f32 to vector<9x41xf32>
      %1039 = arith.mulf %1032, %1038 : vector<9x41xf32>
      %1040 = arith.addf %1030, %1039 : vector<9x41xf32>
      %c11_645 = arith.constant 11 : index
      %c0_646 = arith.constant 0 : index
      %c0_647 = arith.constant 0 : index
      %1041 = vector.load %arg10[%c11_645, %c0_646, %c0_647] : memref<16x9x41xf32, #tpu.memory_space<vmem>>, vector<1x9x41xf32>
      %1042 = vector.shape_cast %1041 : vector<1x9x41xf32> to vector<9x41xf32>
      %c11_648 = arith.constant 11 : index
      %c4_649 = arith.constant 4 : index
      %1043 = memref.load %arg4[%c11_648, %c4_649] : memref<16x8xf32, #tpu.memory_space<smem>>
      %1044 = vector.broadcast %1043 : f32 to vector<9x41xf32>
      %1045 = arith.mulf %1042, %1044 : vector<9x41xf32>
      %1046 = arith.addf %1036, %1045 : vector<9x41xf32>
      %c11_650 = arith.constant 11 : index
      %c5_651 = arith.constant 5 : index
      %1047 = memref.load %arg4[%c11_650, %c5_651] : memref<16x8xf32, #tpu.memory_space<smem>>
      %1048 = vector.broadcast %1047 : f32 to vector<9x41xf32>
      %1049 = arith.mulf %1042, %1048 : vector<9x41xf32>
      %1050 = arith.addf %1040, %1049 : vector<9x41xf32>
      %c12_652 = arith.constant 12 : index
      %c0_653 = arith.constant 0 : index
      %c0_654 = arith.constant 0 : index
      %1051 = vector.load %arg10[%c12_652, %c0_653, %c0_654] : memref<16x9x41xf32, #tpu.memory_space<vmem>>, vector<1x9x41xf32>
      %1052 = vector.shape_cast %1051 : vector<1x9x41xf32> to vector<9x41xf32>
      %c12_655 = arith.constant 12 : index
      %c4_656 = arith.constant 4 : index
      %1053 = memref.load %arg4[%c12_655, %c4_656] : memref<16x8xf32, #tpu.memory_space<smem>>
      %1054 = vector.broadcast %1053 : f32 to vector<9x41xf32>
      %1055 = arith.mulf %1052, %1054 : vector<9x41xf32>
      %1056 = arith.addf %1046, %1055 : vector<9x41xf32>
      %c12_657 = arith.constant 12 : index
      %c5_658 = arith.constant 5 : index
      %1057 = memref.load %arg4[%c12_657, %c5_658] : memref<16x8xf32, #tpu.memory_space<smem>>
      %1058 = vector.broadcast %1057 : f32 to vector<9x41xf32>
      %1059 = arith.mulf %1052, %1058 : vector<9x41xf32>
      %1060 = arith.addf %1050, %1059 : vector<9x41xf32>
      %c13_659 = arith.constant 13 : index
      %c0_660 = arith.constant 0 : index
      %c0_661 = arith.constant 0 : index
      %1061 = vector.load %arg10[%c13_659, %c0_660, %c0_661] : memref<16x9x41xf32, #tpu.memory_space<vmem>>, vector<1x9x41xf32>
      %1062 = vector.shape_cast %1061 : vector<1x9x41xf32> to vector<9x41xf32>
      %c13_662 = arith.constant 13 : index
      %c4_663 = arith.constant 4 : index
      %1063 = memref.load %arg4[%c13_662, %c4_663] : memref<16x8xf32, #tpu.memory_space<smem>>
      %1064 = vector.broadcast %1063 : f32 to vector<9x41xf32>
      %1065 = arith.mulf %1062, %1064 : vector<9x41xf32>
      %1066 = arith.addf %1056, %1065 : vector<9x41xf32>
      %c13_664 = arith.constant 13 : index
      %c5_665 = arith.constant 5 : index
      %1067 = memref.load %arg4[%c13_664, %c5_665] : memref<16x8xf32, #tpu.memory_space<smem>>
      %1068 = vector.broadcast %1067 : f32 to vector<9x41xf32>
      %1069 = arith.mulf %1062, %1068 : vector<9x41xf32>
      %1070 = arith.addf %1060, %1069 : vector<9x41xf32>
      %c14_666 = arith.constant 14 : index
      %c0_667 = arith.constant 0 : index
      %c0_668 = arith.constant 0 : index
      %1071 = vector.load %arg10[%c14_666, %c0_667, %c0_668] : memref<16x9x41xf32, #tpu.memory_space<vmem>>, vector<1x9x41xf32>
      %1072 = vector.shape_cast %1071 : vector<1x9x41xf32> to vector<9x41xf32>
      %c14_669 = arith.constant 14 : index
      %c4_670 = arith.constant 4 : index
      %1073 = memref.load %arg4[%c14_669, %c4_670] : memref<16x8xf32, #tpu.memory_space<smem>>
      %1074 = vector.broadcast %1073 : f32 to vector<9x41xf32>
      %1075 = arith.mulf %1072, %1074 : vector<9x41xf32>
      %1076 = arith.addf %1066, %1075 : vector<9x41xf32>
      %c14_671 = arith.constant 14 : index
      %c5_672 = arith.constant 5 : index
      %1077 = memref.load %arg4[%c14_671, %c5_672] : memref<16x8xf32, #tpu.memory_space<smem>>
      %1078 = vector.broadcast %1077 : f32 to vector<9x41xf32>
      %1079 = arith.mulf %1072, %1078 : vector<9x41xf32>
      %1080 = arith.addf %1070, %1079 : vector<9x41xf32>
      %c15_673 = arith.constant 15 : index
      %c0_674 = arith.constant 0 : index
      %c0_675 = arith.constant 0 : index
      %1081 = vector.load %arg10[%c15_673, %c0_674, %c0_675] : memref<16x9x41xf32, #tpu.memory_space<vmem>>, vector<1x9x41xf32>
      %1082 = vector.shape_cast %1081 : vector<1x9x41xf32> to vector<9x41xf32>
      %c15_676 = arith.constant 15 : index
      %c4_677 = arith.constant 4 : index
      %1083 = memref.load %arg4[%c15_676, %c4_677] : memref<16x8xf32, #tpu.memory_space<smem>>
      %1084 = vector.broadcast %1083 : f32 to vector<9x41xf32>
      %1085 = arith.mulf %1082, %1084 : vector<9x41xf32>
      %1086 = arith.addf %1076, %1085 : vector<9x41xf32>
      %c15_678 = arith.constant 15 : index
      %c5_679 = arith.constant 5 : index
      %1087 = memref.load %arg4[%c15_678, %c5_679] : memref<16x8xf32, #tpu.memory_space<smem>>
      %1088 = vector.broadcast %1087 : f32 to vector<9x41xf32>
      %1089 = arith.mulf %1082, %1088 : vector<9x41xf32>
      %1090 = arith.addf %1080, %1089 : vector<9x41xf32>
      %1091 = vector.extract_strided_slice %1086 {offsets = [0, 0], sizes = [9, 40], strides = [1, 1]} : vector<9x41xf32> to vector<9x40xf32>
      %1092 = vector.extract_strided_slice %1086 {offsets = [0, 1], sizes = [9, 40], strides = [1, 1]} : vector<9x41xf32> to vector<9x40xf32>
      %1093 = arith.maximumf %1091, %1092 : vector<9x40xf32>
      %1094 = vector.extract_strided_slice %1093 {offsets = [0, 0], sizes = [8, 40], strides = [1, 1]} : vector<9x40xf32> to vector<8x40xf32>
      %1095 = vector.extract_strided_slice %1093 {offsets = [1, 0], sizes = [8, 40], strides = [1, 1]} : vector<9x40xf32> to vector<8x40xf32>
      %1096 = arith.maximumf %1094, %1095 : vector<8x40xf32>
      %cst_680 = arith.constant 0.000000e+00 : f32
      %1097 = vector.broadcast %cst_680 : f32 to vector<8x40xf32>
      %1098 = arith.maximumf %1096, %1097 : vector<8x40xf32>
      %c4_681 = arith.constant 4 : index
      %c0_682 = arith.constant 0 : index
      %c0_683 = arith.constant 0 : index
      %1099 = vector.load %arg11[%c4_681, %c0_682, %c0_683] : memref<8x8x40xf32, #tpu.memory_space<vmem>>, vector<1x8x40xf32>
      %1100 = vector.shape_cast %1099 : vector<1x8x40xf32> to vector<8x40xf32>
      %1101 = vector.shape_cast %1098 : vector<8x40xf32> to vector<1x8x40xf32>
      tpu.vector_store %arg11[%c4_681, %c0_682, %c0_683], %1101 {strides = array<i32>} : memref<8x8x40xf32, #tpu.memory_space<vmem>>, vector<1x8x40xf32>,
      %1102 = vector.extract_strided_slice %1090 {offsets = [0, 0], sizes = [9, 40], strides = [1, 1]} : vector<9x41xf32> to vector<9x40xf32>
      %1103 = vector.extract_strided_slice %1090 {offsets = [0, 1], sizes = [9, 40], strides = [1, 1]} : vector<9x41xf32> to vector<9x40xf32>
      %1104 = arith.maximumf %1102, %1103 : vector<9x40xf32>
      %1105 = vector.extract_strided_slice %1104 {offsets = [0, 0], sizes = [8, 40], strides = [1, 1]} : vector<9x40xf32> to vector<8x40xf32>
      %1106 = vector.extract_strided_slice %1104 {offsets = [1, 0], sizes = [8, 40], strides = [1, 1]} : vector<9x40xf32> to vector<8x40xf32>
      %1107 = arith.maximumf %1105, %1106 : vector<8x40xf32>
      %cst_684 = arith.constant 0.000000e+00 : f32
      %1108 = vector.broadcast %cst_684 : f32 to vector<8x40xf32>
      %1109 = arith.maximumf %1107, %1108 : vector<8x40xf32>
      %c5_685 = arith.constant 5 : index
      %c0_686 = arith.constant 0 : index
      %c0_687 = arith.constant 0 : index
      %1110 = vector.load %arg11[%c5_685, %c0_686, %c0_687] : memref<8x8x40xf32, #tpu.memory_space<vmem>>, vector<1x8x40xf32>
      %1111 = vector.shape_cast %1110 : vector<1x8x40xf32> to vector<8x40xf32>
      %1112 = vector.shape_cast %1109 : vector<8x40xf32> to vector<1x8x40xf32>
      tpu.vector_store %arg11[%c5_685, %c0_686, %c0_687], %1112 {strides = array<i32>} : memref<8x8x40xf32, #tpu.memory_space<vmem>>, vector<1x8x40xf32>,
      %c0_688 = arith.constant 0 : index
      %c0_689 = arith.constant 0 : index
      %c0_690 = arith.constant 0 : index
      %1113 = vector.load %arg10[%c0_688, %c0_689, %c0_690] : memref<16x9x41xf32, #tpu.memory_space<vmem>>, vector<1x9x41xf32>
      %1114 = vector.shape_cast %1113 : vector<1x9x41xf32> to vector<9x41xf32>
      %c0_691 = arith.constant 0 : index
      %c6_692 = arith.constant 6 : index
      %1115 = memref.load %arg4[%c0_691, %c6_692] : memref<16x8xf32, #tpu.memory_space<smem>>
      %1116 = vector.broadcast %1115 : f32 to vector<9x41xf32>
      %1117 = arith.mulf %1114, %1116 : vector<9x41xf32>
      %c6_693 = arith.constant 6 : index
      %1118 = memref.load %arg5[%c6_693] : memref<8xf32, #tpu.memory_space<smem>>
      %1119 = vector.broadcast %1118 : f32 to vector<9x41xf32>
      %1120 = arith.addf %1117, %1119 : vector<9x41xf32>
      %c0_694 = arith.constant 0 : index
      %c7_695 = arith.constant 7 : index
      %1121 = memref.load %arg4[%c0_694, %c7_695] : memref<16x8xf32, #tpu.memory_space<smem>>
      %1122 = vector.broadcast %1121 : f32 to vector<9x41xf32>
      %1123 = arith.mulf %1114, %1122 : vector<9x41xf32>
      %c7_696 = arith.constant 7 : index
      %1124 = memref.load %arg5[%c7_696] : memref<8xf32, #tpu.memory_space<smem>>
      %1125 = vector.broadcast %1124 : f32 to vector<9x41xf32>
      %1126 = arith.addf %1123, %1125 : vector<9x41xf32>
      %c1_697 = arith.constant 1 : index
      %c0_698 = arith.constant 0 : index
      %c0_699 = arith.constant 0 : index
      %1127 = vector.load %arg10[%c1_697, %c0_698, %c0_699] : memref<16x9x41xf32, #tpu.memory_space<vmem>>, vector<1x9x41xf32>
      %1128 = vector.shape_cast %1127 : vector<1x9x41xf32> to vector<9x41xf32>
      %c1_700 = arith.constant 1 : index
      %c6_701 = arith.constant 6 : index
      %1129 = memref.load %arg4[%c1_700, %c6_701] : memref<16x8xf32, #tpu.memory_space<smem>>
      %1130 = vector.broadcast %1129 : f32 to vector<9x41xf32>
      %1131 = arith.mulf %1128, %1130 : vector<9x41xf32>
      %1132 = arith.addf %1120, %1131 : vector<9x41xf32>
      %c1_702 = arith.constant 1 : index
      %c7_703 = arith.constant 7 : index
      %1133 = memref.load %arg4[%c1_702, %c7_703] : memref<16x8xf32, #tpu.memory_space<smem>>
      %1134 = vector.broadcast %1133 : f32 to vector<9x41xf32>
      %1135 = arith.mulf %1128, %1134 : vector<9x41xf32>
      %1136 = arith.addf %1126, %1135 : vector<9x41xf32>
      %c2_704 = arith.constant 2 : index
      %c0_705 = arith.constant 0 : index
      %c0_706 = arith.constant 0 : index
      %1137 = vector.load %arg10[%c2_704, %c0_705, %c0_706] : memref<16x9x41xf32, #tpu.memory_space<vmem>>, vector<1x9x41xf32>
      %1138 = vector.shape_cast %1137 : vector<1x9x41xf32> to vector<9x41xf32>
      %c2_707 = arith.constant 2 : index
      %c6_708 = arith.constant 6 : index
      %1139 = memref.load %arg4[%c2_707, %c6_708] : memref<16x8xf32, #tpu.memory_space<smem>>
      %1140 = vector.broadcast %1139 : f32 to vector<9x41xf32>
      %1141 = arith.mulf %1138, %1140 : vector<9x41xf32>
      %1142 = arith.addf %1132, %1141 : vector<9x41xf32>
      %c2_709 = arith.constant 2 : index
      %c7_710 = arith.constant 7 : index
      %1143 = memref.load %arg4[%c2_709, %c7_710] : memref<16x8xf32, #tpu.memory_space<smem>>
      %1144 = vector.broadcast %1143 : f32 to vector<9x41xf32>
      %1145 = arith.mulf %1138, %1144 : vector<9x41xf32>
      %1146 = arith.addf %1136, %1145 : vector<9x41xf32>
      %c3_711 = arith.constant 3 : index
      %c0_712 = arith.constant 0 : index
      %c0_713 = arith.constant 0 : index
      %1147 = vector.load %arg10[%c3_711, %c0_712, %c0_713] : memref<16x9x41xf32, #tpu.memory_space<vmem>>, vector<1x9x41xf32>
      %1148 = vector.shape_cast %1147 : vector<1x9x41xf32> to vector<9x41xf32>
      %c3_714 = arith.constant 3 : index
      %c6_715 = arith.constant 6 : index
      %1149 = memref.load %arg4[%c3_714, %c6_715] : memref<16x8xf32, #tpu.memory_space<smem>>
      %1150 = vector.broadcast %1149 : f32 to vector<9x41xf32>
      %1151 = arith.mulf %1148, %1150 : vector<9x41xf32>
      %1152 = arith.addf %1142, %1151 : vector<9x41xf32>
      %c3_716 = arith.constant 3 : index
      %c7_717 = arith.constant 7 : index
      %1153 = memref.load %arg4[%c3_716, %c7_717] : memref<16x8xf32, #tpu.memory_space<smem>>
      %1154 = vector.broadcast %1153 : f32 to vector<9x41xf32>
      %1155 = arith.mulf %1148, %1154 : vector<9x41xf32>
      %1156 = arith.addf %1146, %1155 : vector<9x41xf32>
      %c4_718 = arith.constant 4 : index
      %c0_719 = arith.constant 0 : index
      %c0_720 = arith.constant 0 : index
      %1157 = vector.load %arg10[%c4_718, %c0_719, %c0_720] : memref<16x9x41xf32, #tpu.memory_space<vmem>>, vector<1x9x41xf32>
      %1158 = vector.shape_cast %1157 : vector<1x9x41xf32> to vector<9x41xf32>
      %c4_721 = arith.constant 4 : index
      %c6_722 = arith.constant 6 : index
      %1159 = memref.load %arg4[%c4_721, %c6_722] : memref<16x8xf32, #tpu.memory_space<smem>>
      %1160 = vector.broadcast %1159 : f32 to vector<9x41xf32>
      %1161 = arith.mulf %1158, %1160 : vector<9x41xf32>
      %1162 = arith.addf %1152, %1161 : vector<9x41xf32>
      %c4_723 = arith.constant 4 : index
      %c7_724 = arith.constant 7 : index
      %1163 = memref.load %arg4[%c4_723, %c7_724] : memref<16x8xf32, #tpu.memory_space<smem>>
      %1164 = vector.broadcast %1163 : f32 to vector<9x41xf32>
      %1165 = arith.mulf %1158, %1164 : vector<9x41xf32>
      %1166 = arith.addf %1156, %1165 : vector<9x41xf32>
      %c5_725 = arith.constant 5 : index
      %c0_726 = arith.constant 0 : index
      %c0_727 = arith.constant 0 : index
      %1167 = vector.load %arg10[%c5_725, %c0_726, %c0_727] : memref<16x9x41xf32, #tpu.memory_space<vmem>>, vector<1x9x41xf32>
      %1168 = vector.shape_cast %1167 : vector<1x9x41xf32> to vector<9x41xf32>
      %c5_728 = arith.constant 5 : index
      %c6_729 = arith.constant 6 : index
      %1169 = memref.load %arg4[%c5_728, %c6_729] : memref<16x8xf32, #tpu.memory_space<smem>>
      %1170 = vector.broadcast %1169 : f32 to vector<9x41xf32>
      %1171 = arith.mulf %1168, %1170 : vector<9x41xf32>
      %1172 = arith.addf %1162, %1171 : vector<9x41xf32>
      %c5_730 = arith.constant 5 : index
      %c7_731 = arith.constant 7 : index
      %1173 = memref.load %arg4[%c5_730, %c7_731] : memref<16x8xf32, #tpu.memory_space<smem>>
      %1174 = vector.broadcast %1173 : f32 to vector<9x41xf32>
      %1175 = arith.mulf %1168, %1174 : vector<9x41xf32>
      %1176 = arith.addf %1166, %1175 : vector<9x41xf32>
      %c6_732 = arith.constant 6 : index
      %c0_733 = arith.constant 0 : index
      %c0_734 = arith.constant 0 : index
      %1177 = vector.load %arg10[%c6_732, %c0_733, %c0_734] : memref<16x9x41xf32, #tpu.memory_space<vmem>>, vector<1x9x41xf32>
      %1178 = vector.shape_cast %1177 : vector<1x9x41xf32> to vector<9x41xf32>
      %c6_735 = arith.constant 6 : index
      %c6_736 = arith.constant 6 : index
      %1179 = memref.load %arg4[%c6_735, %c6_736] : memref<16x8xf32, #tpu.memory_space<smem>>
      %1180 = vector.broadcast %1179 : f32 to vector<9x41xf32>
      %1181 = arith.mulf %1178, %1180 : vector<9x41xf32>
      %1182 = arith.addf %1172, %1181 : vector<9x41xf32>
      %c6_737 = arith.constant 6 : index
      %c7_738 = arith.constant 7 : index
      %1183 = memref.load %arg4[%c6_737, %c7_738] : memref<16x8xf32, #tpu.memory_space<smem>>
      %1184 = vector.broadcast %1183 : f32 to vector<9x41xf32>
      %1185 = arith.mulf %1178, %1184 : vector<9x41xf32>
      %1186 = arith.addf %1176, %1185 : vector<9x41xf32>
      %c7_739 = arith.constant 7 : index
      %c0_740 = arith.constant 0 : index
      %c0_741 = arith.constant 0 : index
      %1187 = vector.load %arg10[%c7_739, %c0_740, %c0_741] : memref<16x9x41xf32, #tpu.memory_space<vmem>>, vector<1x9x41xf32>
      %1188 = vector.shape_cast %1187 : vector<1x9x41xf32> to vector<9x41xf32>
      %c7_742 = arith.constant 7 : index
      %c6_743 = arith.constant 6 : index
      %1189 = memref.load %arg4[%c7_742, %c6_743] : memref<16x8xf32, #tpu.memory_space<smem>>
      %1190 = vector.broadcast %1189 : f32 to vector<9x41xf32>
      %1191 = arith.mulf %1188, %1190 : vector<9x41xf32>
      %1192 = arith.addf %1182, %1191 : vector<9x41xf32>
      %c7_744 = arith.constant 7 : index
      %c7_745 = arith.constant 7 : index
      %1193 = memref.load %arg4[%c7_744, %c7_745] : memref<16x8xf32, #tpu.memory_space<smem>>
      %1194 = vector.broadcast %1193 : f32 to vector<9x41xf32>
      %1195 = arith.mulf %1188, %1194 : vector<9x41xf32>
      %1196 = arith.addf %1186, %1195 : vector<9x41xf32>
      %c8_746 = arith.constant 8 : index
      %c0_747 = arith.constant 0 : index
      %c0_748 = arith.constant 0 : index
      %1197 = vector.load %arg10[%c8_746, %c0_747, %c0_748] : memref<16x9x41xf32, #tpu.memory_space<vmem>>, vector<1x9x41xf32>
      %1198 = vector.shape_cast %1197 : vector<1x9x41xf32> to vector<9x41xf32>
      %c8_749 = arith.constant 8 : index
      %c6_750 = arith.constant 6 : index
      %1199 = memref.load %arg4[%c8_749, %c6_750] : memref<16x8xf32, #tpu.memory_space<smem>>
      %1200 = vector.broadcast %1199 : f32 to vector<9x41xf32>
      %1201 = arith.mulf %1198, %1200 : vector<9x41xf32>
      %1202 = arith.addf %1192, %1201 : vector<9x41xf32>
      %c8_751 = arith.constant 8 : index
      %c7_752 = arith.constant 7 : index
      %1203 = memref.load %arg4[%c8_751, %c7_752] : memref<16x8xf32, #tpu.memory_space<smem>>
      %1204 = vector.broadcast %1203 : f32 to vector<9x41xf32>
      %1205 = arith.mulf %1198, %1204 : vector<9x41xf32>
      %1206 = arith.addf %1196, %1205 : vector<9x41xf32>
      %c9_753 = arith.constant 9 : index
      %c0_754 = arith.constant 0 : index
      %c0_755 = arith.constant 0 : index
      %1207 = vector.load %arg10[%c9_753, %c0_754, %c0_755] : memref<16x9x41xf32, #tpu.memory_space<vmem>>, vector<1x9x41xf32>
      %1208 = vector.shape_cast %1207 : vector<1x9x41xf32> to vector<9x41xf32>
      %c9_756 = arith.constant 9 : index
      %c6_757 = arith.constant 6 : index
      %1209 = memref.load %arg4[%c9_756, %c6_757] : memref<16x8xf32, #tpu.memory_space<smem>>
      %1210 = vector.broadcast %1209 : f32 to vector<9x41xf32>
      %1211 = arith.mulf %1208, %1210 : vector<9x41xf32>
      %1212 = arith.addf %1202, %1211 : vector<9x41xf32>
      %c9_758 = arith.constant 9 : index
      %c7_759 = arith.constant 7 : index
      %1213 = memref.load %arg4[%c9_758, %c7_759] : memref<16x8xf32, #tpu.memory_space<smem>>
      %1214 = vector.broadcast %1213 : f32 to vector<9x41xf32>
      %1215 = arith.mulf %1208, %1214 : vector<9x41xf32>
      %1216 = arith.addf %1206, %1215 : vector<9x41xf32>
      %c10_760 = arith.constant 10 : index
      %c0_761 = arith.constant 0 : index
      %c0_762 = arith.constant 0 : index
      %1217 = vector.load %arg10[%c10_760, %c0_761, %c0_762] : memref<16x9x41xf32, #tpu.memory_space<vmem>>, vector<1x9x41xf32>
      %1218 = vector.shape_cast %1217 : vector<1x9x41xf32> to vector<9x41xf32>
      %c10_763 = arith.constant 10 : index
      %c6_764 = arith.constant 6 : index
      %1219 = memref.load %arg4[%c10_763, %c6_764] : memref<16x8xf32, #tpu.memory_space<smem>>
      %1220 = vector.broadcast %1219 : f32 to vector<9x41xf32>
      %1221 = arith.mulf %1218, %1220 : vector<9x41xf32>
      %1222 = arith.addf %1212, %1221 : vector<9x41xf32>
      %c10_765 = arith.constant 10 : index
      %c7_766 = arith.constant 7 : index
      %1223 = memref.load %arg4[%c10_765, %c7_766] : memref<16x8xf32, #tpu.memory_space<smem>>
      %1224 = vector.broadcast %1223 : f32 to vector<9x41xf32>
      %1225 = arith.mulf %1218, %1224 : vector<9x41xf32>
      %1226 = arith.addf %1216, %1225 : vector<9x41xf32>
      %c11_767 = arith.constant 11 : index
      %c0_768 = arith.constant 0 : index
      %c0_769 = arith.constant 0 : index
      %1227 = vector.load %arg10[%c11_767, %c0_768, %c0_769] : memref<16x9x41xf32, #tpu.memory_space<vmem>>, vector<1x9x41xf32>
      %1228 = vector.shape_cast %1227 : vector<1x9x41xf32> to vector<9x41xf32>
      %c11_770 = arith.constant 11 : index
      %c6_771 = arith.constant 6 : index
      %1229 = memref.load %arg4[%c11_770, %c6_771] : memref<16x8xf32, #tpu.memory_space<smem>>
      %1230 = vector.broadcast %1229 : f32 to vector<9x41xf32>
      %1231 = arith.mulf %1228, %1230 : vector<9x41xf32>
      %1232 = arith.addf %1222, %1231 : vector<9x41xf32>
      %c11_772 = arith.constant 11 : index
      %c7_773 = arith.constant 7 : index
      %1233 = memref.load %arg4[%c11_772, %c7_773] : memref<16x8xf32, #tpu.memory_space<smem>>
      %1234 = vector.broadcast %1233 : f32 to vector<9x41xf32>
      %1235 = arith.mulf %1228, %1234 : vector<9x41xf32>
      %1236 = arith.addf %1226, %1235 : vector<9x41xf32>
      %c12_774 = arith.constant 12 : index
      %c0_775 = arith.constant 0 : index
      %c0_776 = arith.constant 0 : index
      %1237 = vector.load %arg10[%c12_774, %c0_775, %c0_776] : memref<16x9x41xf32, #tpu.memory_space<vmem>>, vector<1x9x41xf32>
      %1238 = vector.shape_cast %1237 : vector<1x9x41xf32> to vector<9x41xf32>
      %c12_777 = arith.constant 12 : index
      %c6_778 = arith.constant 6 : index
      %1239 = memref.load %arg4[%c12_777, %c6_778] : memref<16x8xf32, #tpu.memory_space<smem>>
      %1240 = vector.broadcast %1239 : f32 to vector<9x41xf32>
      %1241 = arith.mulf %1238, %1240 : vector<9x41xf32>
      %1242 = arith.addf %1232, %1241 : vector<9x41xf32>
      %c12_779 = arith.constant 12 : index
      %c7_780 = arith.constant 7 : index
      %1243 = memref.load %arg4[%c12_779, %c7_780] : memref<16x8xf32, #tpu.memory_space<smem>>
      %1244 = vector.broadcast %1243 : f32 to vector<9x41xf32>
      %1245 = arith.mulf %1238, %1244 : vector<9x41xf32>
      %1246 = arith.addf %1236, %1245 : vector<9x41xf32>
      %c13_781 = arith.constant 13 : index
      %c0_782 = arith.constant 0 : index
      %c0_783 = arith.constant 0 : index
      %1247 = vector.load %arg10[%c13_781, %c0_782, %c0_783] : memref<16x9x41xf32, #tpu.memory_space<vmem>>, vector<1x9x41xf32>
      %1248 = vector.shape_cast %1247 : vector<1x9x41xf32> to vector<9x41xf32>
      %c13_784 = arith.constant 13 : index
      %c6_785 = arith.constant 6 : index
      %1249 = memref.load %arg4[%c13_784, %c6_785] : memref<16x8xf32, #tpu.memory_space<smem>>
      %1250 = vector.broadcast %1249 : f32 to vector<9x41xf32>
      %1251 = arith.mulf %1248, %1250 : vector<9x41xf32>
      %1252 = arith.addf %1242, %1251 : vector<9x41xf32>
      %c13_786 = arith.constant 13 : index
      %c7_787 = arith.constant 7 : index
      %1253 = memref.load %arg4[%c13_786, %c7_787] : memref<16x8xf32, #tpu.memory_space<smem>>
      %1254 = vector.broadcast %1253 : f32 to vector<9x41xf32>
      %1255 = arith.mulf %1248, %1254 : vector<9x41xf32>
      %1256 = arith.addf %1246, %1255 : vector<9x41xf32>
      %c14_788 = arith.constant 14 : index
      %c0_789 = arith.constant 0 : index
      %c0_790 = arith.constant 0 : index
      %1257 = vector.load %arg10[%c14_788, %c0_789, %c0_790] : memref<16x9x41xf32, #tpu.memory_space<vmem>>, vector<1x9x41xf32>
      %1258 = vector.shape_cast %1257 : vector<1x9x41xf32> to vector<9x41xf32>
      %c14_791 = arith.constant 14 : index
      %c6_792 = arith.constant 6 : index
      %1259 = memref.load %arg4[%c14_791, %c6_792] : memref<16x8xf32, #tpu.memory_space<smem>>
      %1260 = vector.broadcast %1259 : f32 to vector<9x41xf32>
      %1261 = arith.mulf %1258, %1260 : vector<9x41xf32>
      %1262 = arith.addf %1252, %1261 : vector<9x41xf32>
      %c14_793 = arith.constant 14 : index
      %c7_794 = arith.constant 7 : index
      %1263 = memref.load %arg4[%c14_793, %c7_794] : memref<16x8xf32, #tpu.memory_space<smem>>
      %1264 = vector.broadcast %1263 : f32 to vector<9x41xf32>
      %1265 = arith.mulf %1258, %1264 : vector<9x41xf32>
      %1266 = arith.addf %1256, %1265 : vector<9x41xf32>
      %c15_795 = arith.constant 15 : index
      %c0_796 = arith.constant 0 : index
      %c0_797 = arith.constant 0 : index
      %1267 = vector.load %arg10[%c15_795, %c0_796, %c0_797] : memref<16x9x41xf32, #tpu.memory_space<vmem>>, vector<1x9x41xf32>
      %1268 = vector.shape_cast %1267 : vector<1x9x41xf32> to vector<9x41xf32>
      %c15_798 = arith.constant 15 : index
      %c6_799 = arith.constant 6 : index
      %1269 = memref.load %arg4[%c15_798, %c6_799] : memref<16x8xf32, #tpu.memory_space<smem>>
      %1270 = vector.broadcast %1269 : f32 to vector<9x41xf32>
      %1271 = arith.mulf %1268, %1270 : vector<9x41xf32>
      %1272 = arith.addf %1262, %1271 : vector<9x41xf32>
      %c15_800 = arith.constant 15 : index
      %c7_801 = arith.constant 7 : index
      %1273 = memref.load %arg4[%c15_800, %c7_801] : memref<16x8xf32, #tpu.memory_space<smem>>
      %1274 = vector.broadcast %1273 : f32 to vector<9x41xf32>
      %1275 = arith.mulf %1268, %1274 : vector<9x41xf32>
      %1276 = arith.addf %1266, %1275 : vector<9x41xf32>
      %1277 = vector.extract_strided_slice %1272 {offsets = [0, 0], sizes = [9, 40], strides = [1, 1]} : vector<9x41xf32> to vector<9x40xf32>
      %1278 = vector.extract_strided_slice %1272 {offsets = [0, 1], sizes = [9, 40], strides = [1, 1]} : vector<9x41xf32> to vector<9x40xf32>
      %1279 = arith.maximumf %1277, %1278 : vector<9x40xf32>
      %1280 = vector.extract_strided_slice %1279 {offsets = [0, 0], sizes = [8, 40], strides = [1, 1]} : vector<9x40xf32> to vector<8x40xf32>
      %1281 = vector.extract_strided_slice %1279 {offsets = [1, 0], sizes = [8, 40], strides = [1, 1]} : vector<9x40xf32> to vector<8x40xf32>
      %1282 = arith.maximumf %1280, %1281 : vector<8x40xf32>
      %cst_802 = arith.constant 0.000000e+00 : f32
      %1283 = vector.broadcast %cst_802 : f32 to vector<8x40xf32>
      %1284 = arith.maximumf %1282, %1283 : vector<8x40xf32>
      %c6_803 = arith.constant 6 : index
      %c0_804 = arith.constant 0 : index
      %c0_805 = arith.constant 0 : index
      %1285 = vector.load %arg11[%c6_803, %c0_804, %c0_805] : memref<8x8x40xf32, #tpu.memory_space<vmem>>, vector<1x8x40xf32>
      %1286 = vector.shape_cast %1285 : vector<1x8x40xf32> to vector<8x40xf32>
      %1287 = vector.shape_cast %1284 : vector<8x40xf32> to vector<1x8x40xf32>
      tpu.vector_store %arg11[%c6_803, %c0_804, %c0_805], %1287 {strides = array<i32>} : memref<8x8x40xf32, #tpu.memory_space<vmem>>, vector<1x8x40xf32>,
      %1288 = vector.extract_strided_slice %1276 {offsets = [0, 0], sizes = [9, 40], strides = [1, 1]} : vector<9x41xf32> to vector<9x40xf32>
      %1289 = vector.extract_strided_slice %1276 {offsets = [0, 1], sizes = [9, 40], strides = [1, 1]} : vector<9x41xf32> to vector<9x40xf32>
      %1290 = arith.maximumf %1288, %1289 : vector<9x40xf32>
      %1291 = vector.extract_strided_slice %1290 {offsets = [0, 0], sizes = [8, 40], strides = [1, 1]} : vector<9x40xf32> to vector<8x40xf32>
      %1292 = vector.extract_strided_slice %1290 {offsets = [1, 0], sizes = [8, 40], strides = [1, 1]} : vector<9x40xf32> to vector<8x40xf32>
      %1293 = arith.maximumf %1291, %1292 : vector<8x40xf32>
      %cst_806 = arith.constant 0.000000e+00 : f32
      %1294 = vector.broadcast %cst_806 : f32 to vector<8x40xf32>
      %1295 = arith.maximumf %1293, %1294 : vector<8x40xf32>
      %c7_807 = arith.constant 7 : index
      %c0_808 = arith.constant 0 : index
      %c0_809 = arith.constant 0 : index
      %1296 = vector.load %arg11[%c7_807, %c0_808, %c0_809] : memref<8x8x40xf32, #tpu.memory_space<vmem>>, vector<1x8x40xf32>
      %1297 = vector.shape_cast %1296 : vector<1x8x40xf32> to vector<8x40xf32>
      %1298 = vector.shape_cast %1295 : vector<8x40xf32> to vector<1x8x40xf32>
      tpu.vector_store %arg11[%c7_807, %c0_808, %c0_809], %1298 {strides = array<i32>} : memref<8x8x40xf32, #tpu.memory_space<vmem>>, vector<1x8x40xf32>,
      %c0_810 = arith.constant 0 : index
      %c0_811 = arith.constant 0 : index
      %c0_812 = arith.constant 0 : index
      %1299 = vector.load %arg11[%c0_810, %c0_811, %c0_812] : memref<8x8x40xf32, #tpu.memory_space<vmem>>, vector<1x8x40xf32>
      %1300 = vector.shape_cast %1299 : vector<1x8x40xf32> to vector<8x40xf32>
      %c0_813 = arith.constant 0 : index
      %c0_814 = arith.constant 0 : index
      %1301 = memref.load %arg6[%c0_813, %c0_814] : memref<8x8xf32, #tpu.memory_space<smem>>
      %1302 = vector.broadcast %1301 : f32 to vector<8x40xf32>
      %1303 = arith.mulf %1300, %1302 : vector<8x40xf32>
      %c0_815 = arith.constant 0 : index
      %1304 = memref.load %arg7[%c0_815] : memref<8xf32, #tpu.memory_space<smem>>
      %1305 = vector.broadcast %1304 : f32 to vector<8x40xf32>
      %1306 = arith.addf %1303, %1305 : vector<8x40xf32>
      %c0_816 = arith.constant 0 : index
      %c1_817 = arith.constant 1 : index
      %1307 = memref.load %arg6[%c0_816, %c1_817] : memref<8x8xf32, #tpu.memory_space<smem>>
      %1308 = vector.broadcast %1307 : f32 to vector<8x40xf32>
      %1309 = arith.mulf %1300, %1308 : vector<8x40xf32>
      %c1_818 = arith.constant 1 : index
      %1310 = memref.load %arg7[%c1_818] : memref<8xf32, #tpu.memory_space<smem>>
      %1311 = vector.broadcast %1310 : f32 to vector<8x40xf32>
      %1312 = arith.addf %1309, %1311 : vector<8x40xf32>
      %c1_819 = arith.constant 1 : index
      %c0_820 = arith.constant 0 : index
      %c0_821 = arith.constant 0 : index
      %1313 = vector.load %arg11[%c1_819, %c0_820, %c0_821] : memref<8x8x40xf32, #tpu.memory_space<vmem>>, vector<1x8x40xf32>
      %1314 = vector.shape_cast %1313 : vector<1x8x40xf32> to vector<8x40xf32>
      %c1_822 = arith.constant 1 : index
      %c0_823 = arith.constant 0 : index
      %1315 = memref.load %arg6[%c1_822, %c0_823] : memref<8x8xf32, #tpu.memory_space<smem>>
      %1316 = vector.broadcast %1315 : f32 to vector<8x40xf32>
      %1317 = arith.mulf %1314, %1316 : vector<8x40xf32>
      %1318 = arith.addf %1306, %1317 : vector<8x40xf32>
      %c1_824 = arith.constant 1 : index
      %c1_825 = arith.constant 1 : index
      %1319 = memref.load %arg6[%c1_824, %c1_825] : memref<8x8xf32, #tpu.memory_space<smem>>
      %1320 = vector.broadcast %1319 : f32 to vector<8x40xf32>
      %1321 = arith.mulf %1314, %1320 : vector<8x40xf32>
      %1322 = arith.addf %1312, %1321 : vector<8x40xf32>
      %c2_826 = arith.constant 2 : index
      %c0_827 = arith.constant 0 : index
      %c0_828 = arith.constant 0 : index
      %1323 = vector.load %arg11[%c2_826, %c0_827, %c0_828] : memref<8x8x40xf32, #tpu.memory_space<vmem>>, vector<1x8x40xf32>
      %1324 = vector.shape_cast %1323 : vector<1x8x40xf32> to vector<8x40xf32>
      %c2_829 = arith.constant 2 : index
      %c0_830 = arith.constant 0 : index
      %1325 = memref.load %arg6[%c2_829, %c0_830] : memref<8x8xf32, #tpu.memory_space<smem>>
      %1326 = vector.broadcast %1325 : f32 to vector<8x40xf32>
      %1327 = arith.mulf %1324, %1326 : vector<8x40xf32>
      %1328 = arith.addf %1318, %1327 : vector<8x40xf32>
      %c2_831 = arith.constant 2 : index
      %c1_832 = arith.constant 1 : index
      %1329 = memref.load %arg6[%c2_831, %c1_832] : memref<8x8xf32, #tpu.memory_space<smem>>
      %1330 = vector.broadcast %1329 : f32 to vector<8x40xf32>
      %1331 = arith.mulf %1324, %1330 : vector<8x40xf32>
      %1332 = arith.addf %1322, %1331 : vector<8x40xf32>
      %c3_833 = arith.constant 3 : index
      %c0_834 = arith.constant 0 : index
      %c0_835 = arith.constant 0 : index
      %1333 = vector.load %arg11[%c3_833, %c0_834, %c0_835] : memref<8x8x40xf32, #tpu.memory_space<vmem>>, vector<1x8x40xf32>
      %1334 = vector.shape_cast %1333 : vector<1x8x40xf32> to vector<8x40xf32>
      %c3_836 = arith.constant 3 : index
      %c0_837 = arith.constant 0 : index
      %1335 = memref.load %arg6[%c3_836, %c0_837] : memref<8x8xf32, #tpu.memory_space<smem>>
      %1336 = vector.broadcast %1335 : f32 to vector<8x40xf32>
      %1337 = arith.mulf %1334, %1336 : vector<8x40xf32>
      %1338 = arith.addf %1328, %1337 : vector<8x40xf32>
      %c3_838 = arith.constant 3 : index
      %c1_839 = arith.constant 1 : index
      %1339 = memref.load %arg6[%c3_838, %c1_839] : memref<8x8xf32, #tpu.memory_space<smem>>
      %1340 = vector.broadcast %1339 : f32 to vector<8x40xf32>
      %1341 = arith.mulf %1334, %1340 : vector<8x40xf32>
      %1342 = arith.addf %1332, %1341 : vector<8x40xf32>
      %c4_840 = arith.constant 4 : index
      %c0_841 = arith.constant 0 : index
      %c0_842 = arith.constant 0 : index
      %1343 = vector.load %arg11[%c4_840, %c0_841, %c0_842] : memref<8x8x40xf32, #tpu.memory_space<vmem>>, vector<1x8x40xf32>
      %1344 = vector.shape_cast %1343 : vector<1x8x40xf32> to vector<8x40xf32>
      %c4_843 = arith.constant 4 : index
      %c0_844 = arith.constant 0 : index
      %1345 = memref.load %arg6[%c4_843, %c0_844] : memref<8x8xf32, #tpu.memory_space<smem>>
      %1346 = vector.broadcast %1345 : f32 to vector<8x40xf32>
      %1347 = arith.mulf %1344, %1346 : vector<8x40xf32>
      %1348 = arith.addf %1338, %1347 : vector<8x40xf32>
      %c4_845 = arith.constant 4 : index
      %c1_846 = arith.constant 1 : index
      %1349 = memref.load %arg6[%c4_845, %c1_846] : memref<8x8xf32, #tpu.memory_space<smem>>
      %1350 = vector.broadcast %1349 : f32 to vector<8x40xf32>
      %1351 = arith.mulf %1344, %1350 : vector<8x40xf32>
      %1352 = arith.addf %1342, %1351 : vector<8x40xf32>
      %c5_847 = arith.constant 5 : index
      %c0_848 = arith.constant 0 : index
      %c0_849 = arith.constant 0 : index
      %1353 = vector.load %arg11[%c5_847, %c0_848, %c0_849] : memref<8x8x40xf32, #tpu.memory_space<vmem>>, vector<1x8x40xf32>
      %1354 = vector.shape_cast %1353 : vector<1x8x40xf32> to vector<8x40xf32>
      %c5_850 = arith.constant 5 : index
      %c0_851 = arith.constant 0 : index
      %1355 = memref.load %arg6[%c5_850, %c0_851] : memref<8x8xf32, #tpu.memory_space<smem>>
      %1356 = vector.broadcast %1355 : f32 to vector<8x40xf32>
      %1357 = arith.mulf %1354, %1356 : vector<8x40xf32>
      %1358 = arith.addf %1348, %1357 : vector<8x40xf32>
      %c5_852 = arith.constant 5 : index
      %c1_853 = arith.constant 1 : index
      %1359 = memref.load %arg6[%c5_852, %c1_853] : memref<8x8xf32, #tpu.memory_space<smem>>
      %1360 = vector.broadcast %1359 : f32 to vector<8x40xf32>
      %1361 = arith.mulf %1354, %1360 : vector<8x40xf32>
      %1362 = arith.addf %1352, %1361 : vector<8x40xf32>
      %c6_854 = arith.constant 6 : index
      %c0_855 = arith.constant 0 : index
      %c0_856 = arith.constant 0 : index
      %1363 = vector.load %arg11[%c6_854, %c0_855, %c0_856] : memref<8x8x40xf32, #tpu.memory_space<vmem>>, vector<1x8x40xf32>
      %1364 = vector.shape_cast %1363 : vector<1x8x40xf32> to vector<8x40xf32>
      %c6_857 = arith.constant 6 : index
      %c0_858 = arith.constant 0 : index
      %1365 = memref.load %arg6[%c6_857, %c0_858] : memref<8x8xf32, #tpu.memory_space<smem>>
      %1366 = vector.broadcast %1365 : f32 to vector<8x40xf32>
      %1367 = arith.mulf %1364, %1366 : vector<8x40xf32>
      %1368 = arith.addf %1358, %1367 : vector<8x40xf32>
      %c6_859 = arith.constant 6 : index
      %c1_860 = arith.constant 1 : index
      %1369 = memref.load %arg6[%c6_859, %c1_860] : memref<8x8xf32, #tpu.memory_space<smem>>
      %1370 = vector.broadcast %1369 : f32 to vector<8x40xf32>
      %1371 = arith.mulf %1364, %1370 : vector<8x40xf32>
      %1372 = arith.addf %1362, %1371 : vector<8x40xf32>
      %c7_861 = arith.constant 7 : index
      %c0_862 = arith.constant 0 : index
      %c0_863 = arith.constant 0 : index
      %1373 = vector.load %arg11[%c7_861, %c0_862, %c0_863] : memref<8x8x40xf32, #tpu.memory_space<vmem>>, vector<1x8x40xf32>
      %1374 = vector.shape_cast %1373 : vector<1x8x40xf32> to vector<8x40xf32>
      %c7_864 = arith.constant 7 : index
      %c0_865 = arith.constant 0 : index
      %1375 = memref.load %arg6[%c7_864, %c0_865] : memref<8x8xf32, #tpu.memory_space<smem>>
      %1376 = vector.broadcast %1375 : f32 to vector<8x40xf32>
      %1377 = arith.mulf %1374, %1376 : vector<8x40xf32>
      %1378 = arith.addf %1368, %1377 : vector<8x40xf32>
      %c7_866 = arith.constant 7 : index
      %c1_867 = arith.constant 1 : index
      %1379 = memref.load %arg6[%c7_866, %c1_867] : memref<8x8xf32, #tpu.memory_space<smem>>
      %1380 = vector.broadcast %1379 : f32 to vector<8x40xf32>
      %1381 = arith.mulf %1374, %1380 : vector<8x40xf32>
      %1382 = arith.addf %1372, %1381 : vector<8x40xf32>
      %cst_868 = arith.constant -1.000000e-01 : f32
      %cst_869 = arith.constant 3.000000e-01 : f32
      %1383 = vector.broadcast %cst_868 : f32 to vector<8x40xf32>
      %1384 = arith.maximumf %1383, %1378 : vector<8x40xf32>
      %1385 = vector.broadcast %cst_869 : f32 to vector<8x40xf32>
      %1386 = arith.minimumf %1385, %1384 : vector<8x40xf32>
      %c0_870 = arith.constant 0 : index
      %1387 = arith.index_cast %5 : i32 to index
      %c0_871 = arith.constant 0 : index
      %1388 = vector.load %arg8[%c0_870, %1387, %c0_871] : memref<8x16x40xf32, #tpu.memory_space<vmem>>, vector<1x8x40xf32>
      %1389 = vector.shape_cast %1388 : vector<1x8x40xf32> to vector<8x40xf32>
      %1390 = vector.shape_cast %1386 : vector<8x40xf32> to vector<1x8x40xf32>
      tpu.vector_store %arg8[%c0_870, %1387, %c0_871], %1390 {strides = array<i32>} : memref<8x16x40xf32, #tpu.memory_space<vmem>>, vector<1x8x40xf32>,
      %cst_872 = arith.constant -1.000000e-01 : f32
      %cst_873 = arith.constant 3.000000e-01 : f32
      %1391 = vector.broadcast %cst_872 : f32 to vector<8x40xf32>
      %1392 = arith.maximumf %1391, %1382 : vector<8x40xf32>
      %1393 = vector.broadcast %cst_873 : f32 to vector<8x40xf32>
      %1394 = arith.minimumf %1393, %1392 : vector<8x40xf32>
      %c1_874 = arith.constant 1 : index
      %1395 = arith.index_cast %5 : i32 to index
      %c0_875 = arith.constant 0 : index
      %1396 = vector.load %arg8[%c1_874, %1395, %c0_875] : memref<8x16x40xf32, #tpu.memory_space<vmem>>, vector<1x8x40xf32>
      %1397 = vector.shape_cast %1396 : vector<1x8x40xf32> to vector<8x40xf32>
      %1398 = vector.shape_cast %1394 : vector<8x40xf32> to vector<1x8x40xf32>
      tpu.vector_store %arg8[%c1_874, %1395, %c0_875], %1398 {strides = array<i32>} : memref<8x16x40xf32, #tpu.memory_space<vmem>>, vector<1x8x40xf32>,
      %c0_876 = arith.constant 0 : index
      %c0_877 = arith.constant 0 : index
      %c0_878 = arith.constant 0 : index
      %1399 = vector.load %arg11[%c0_876, %c0_877, %c0_878] : memref<8x8x40xf32, #tpu.memory_space<vmem>>, vector<1x8x40xf32>
      %1400 = vector.shape_cast %1399 : vector<1x8x40xf32> to vector<8x40xf32>
      %c0_879 = arith.constant 0 : index
      %c2_880 = arith.constant 2 : index
      %1401 = memref.load %arg6[%c0_879, %c2_880] : memref<8x8xf32, #tpu.memory_space<smem>>
      %1402 = vector.broadcast %1401 : f32 to vector<8x40xf32>
      %1403 = arith.mulf %1400, %1402 : vector<8x40xf32>
      %c2_881 = arith.constant 2 : index
      %1404 = memref.load %arg7[%c2_881] : memref<8xf32, #tpu.memory_space<smem>>
      %1405 = vector.broadcast %1404 : f32 to vector<8x40xf32>
      %1406 = arith.addf %1403, %1405 : vector<8x40xf32>
      %c0_882 = arith.constant 0 : index
      %c3_883 = arith.constant 3 : index
      %1407 = memref.load %arg6[%c0_882, %c3_883] : memref<8x8xf32, #tpu.memory_space<smem>>
      %1408 = vector.broadcast %1407 : f32 to vector<8x40xf32>
      %1409 = arith.mulf %1400, %1408 : vector<8x40xf32>
      %c3_884 = arith.constant 3 : index
      %1410 = memref.load %arg7[%c3_884] : memref<8xf32, #tpu.memory_space<smem>>
      %1411 = vector.broadcast %1410 : f32 to vector<8x40xf32>
      %1412 = arith.addf %1409, %1411 : vector<8x40xf32>
      %c1_885 = arith.constant 1 : index
      %c0_886 = arith.constant 0 : index
      %c0_887 = arith.constant 0 : index
      %1413 = vector.load %arg11[%c1_885, %c0_886, %c0_887] : memref<8x8x40xf32, #tpu.memory_space<vmem>>, vector<1x8x40xf32>
      %1414 = vector.shape_cast %1413 : vector<1x8x40xf32> to vector<8x40xf32>
      %c1_888 = arith.constant 1 : index
      %c2_889 = arith.constant 2 : index
      %1415 = memref.load %arg6[%c1_888, %c2_889] : memref<8x8xf32, #tpu.memory_space<smem>>
      %1416 = vector.broadcast %1415 : f32 to vector<8x40xf32>
      %1417 = arith.mulf %1414, %1416 : vector<8x40xf32>
      %1418 = arith.addf %1406, %1417 : vector<8x40xf32>
      %c1_890 = arith.constant 1 : index
      %c3_891 = arith.constant 3 : index
      %1419 = memref.load %arg6[%c1_890, %c3_891] : memref<8x8xf32, #tpu.memory_space<smem>>
      %1420 = vector.broadcast %1419 : f32 to vector<8x40xf32>
      %1421 = arith.mulf %1414, %1420 : vector<8x40xf32>
      %1422 = arith.addf %1412, %1421 : vector<8x40xf32>
      %c2_892 = arith.constant 2 : index
      %c0_893 = arith.constant 0 : index
      %c0_894 = arith.constant 0 : index
      %1423 = vector.load %arg11[%c2_892, %c0_893, %c0_894] : memref<8x8x40xf32, #tpu.memory_space<vmem>>, vector<1x8x40xf32>
      %1424 = vector.shape_cast %1423 : vector<1x8x40xf32> to vector<8x40xf32>
      %c2_895 = arith.constant 2 : index
      %c2_896 = arith.constant 2 : index
      %1425 = memref.load %arg6[%c2_895, %c2_896] : memref<8x8xf32, #tpu.memory_space<smem>>
      %1426 = vector.broadcast %1425 : f32 to vector<8x40xf32>
      %1427 = arith.mulf %1424, %1426 : vector<8x40xf32>
      %1428 = arith.addf %1418, %1427 : vector<8x40xf32>
      %c2_897 = arith.constant 2 : index
      %c3_898 = arith.constant 3 : index
      %1429 = memref.load %arg6[%c2_897, %c3_898] : memref<8x8xf32, #tpu.memory_space<smem>>
      %1430 = vector.broadcast %1429 : f32 to vector<8x40xf32>
      %1431 = arith.mulf %1424, %1430 : vector<8x40xf32>
      %1432 = arith.addf %1422, %1431 : vector<8x40xf32>
      %c3_899 = arith.constant 3 : index
      %c0_900 = arith.constant 0 : index
      %c0_901 = arith.constant 0 : index
      %1433 = vector.load %arg11[%c3_899, %c0_900, %c0_901] : memref<8x8x40xf32, #tpu.memory_space<vmem>>, vector<1x8x40xf32>
      %1434 = vector.shape_cast %1433 : vector<1x8x40xf32> to vector<8x40xf32>
      %c3_902 = arith.constant 3 : index
      %c2_903 = arith.constant 2 : index
      %1435 = memref.load %arg6[%c3_902, %c2_903] : memref<8x8xf32, #tpu.memory_space<smem>>
      %1436 = vector.broadcast %1435 : f32 to vector<8x40xf32>
      %1437 = arith.mulf %1434, %1436 : vector<8x40xf32>
      %1438 = arith.addf %1428, %1437 : vector<8x40xf32>
      %c3_904 = arith.constant 3 : index
      %c3_905 = arith.constant 3 : index
      %1439 = memref.load %arg6[%c3_904, %c3_905] : memref<8x8xf32, #tpu.memory_space<smem>>
      %1440 = vector.broadcast %1439 : f32 to vector<8x40xf32>
      %1441 = arith.mulf %1434, %1440 : vector<8x40xf32>
      %1442 = arith.addf %1432, %1441 : vector<8x40xf32>
      %c4_906 = arith.constant 4 : index
      %c0_907 = arith.constant 0 : index
      %c0_908 = arith.constant 0 : index
      %1443 = vector.load %arg11[%c4_906, %c0_907, %c0_908] : memref<8x8x40xf32, #tpu.memory_space<vmem>>, vector<1x8x40xf32>
      %1444 = vector.shape_cast %1443 : vector<1x8x40xf32> to vector<8x40xf32>
      %c4_909 = arith.constant 4 : index
      %c2_910 = arith.constant 2 : index
      %1445 = memref.load %arg6[%c4_909, %c2_910] : memref<8x8xf32, #tpu.memory_space<smem>>
      %1446 = vector.broadcast %1445 : f32 to vector<8x40xf32>
      %1447 = arith.mulf %1444, %1446 : vector<8x40xf32>
      %1448 = arith.addf %1438, %1447 : vector<8x40xf32>
      %c4_911 = arith.constant 4 : index
      %c3_912 = arith.constant 3 : index
      %1449 = memref.load %arg6[%c4_911, %c3_912] : memref<8x8xf32, #tpu.memory_space<smem>>
      %1450 = vector.broadcast %1449 : f32 to vector<8x40xf32>
      %1451 = arith.mulf %1444, %1450 : vector<8x40xf32>
      %1452 = arith.addf %1442, %1451 : vector<8x40xf32>
      %c5_913 = arith.constant 5 : index
      %c0_914 = arith.constant 0 : index
      %c0_915 = arith.constant 0 : index
      %1453 = vector.load %arg11[%c5_913, %c0_914, %c0_915] : memref<8x8x40xf32, #tpu.memory_space<vmem>>, vector<1x8x40xf32>
      %1454 = vector.shape_cast %1453 : vector<1x8x40xf32> to vector<8x40xf32>
      %c5_916 = arith.constant 5 : index
      %c2_917 = arith.constant 2 : index
      %1455 = memref.load %arg6[%c5_916, %c2_917] : memref<8x8xf32, #tpu.memory_space<smem>>
      %1456 = vector.broadcast %1455 : f32 to vector<8x40xf32>
      %1457 = arith.mulf %1454, %1456 : vector<8x40xf32>
      %1458 = arith.addf %1448, %1457 : vector<8x40xf32>
      %c5_918 = arith.constant 5 : index
      %c3_919 = arith.constant 3 : index
      %1459 = memref.load %arg6[%c5_918, %c3_919] : memref<8x8xf32, #tpu.memory_space<smem>>
      %1460 = vector.broadcast %1459 : f32 to vector<8x40xf32>
      %1461 = arith.mulf %1454, %1460 : vector<8x40xf32>
      %1462 = arith.addf %1452, %1461 : vector<8x40xf32>
      %c6_920 = arith.constant 6 : index
      %c0_921 = arith.constant 0 : index
      %c0_922 = arith.constant 0 : index
      %1463 = vector.load %arg11[%c6_920, %c0_921, %c0_922] : memref<8x8x40xf32, #tpu.memory_space<vmem>>, vector<1x8x40xf32>
      %1464 = vector.shape_cast %1463 : vector<1x8x40xf32> to vector<8x40xf32>
      %c6_923 = arith.constant 6 : index
      %c2_924 = arith.constant 2 : index
      %1465 = memref.load %arg6[%c6_923, %c2_924] : memref<8x8xf32, #tpu.memory_space<smem>>
      %1466 = vector.broadcast %1465 : f32 to vector<8x40xf32>
      %1467 = arith.mulf %1464, %1466 : vector<8x40xf32>
      %1468 = arith.addf %1458, %1467 : vector<8x40xf32>
      %c6_925 = arith.constant 6 : index
      %c3_926 = arith.constant 3 : index
      %1469 = memref.load %arg6[%c6_925, %c3_926] : memref<8x8xf32, #tpu.memory_space<smem>>
      %1470 = vector.broadcast %1469 : f32 to vector<8x40xf32>
      %1471 = arith.mulf %1464, %1470 : vector<8x40xf32>
      %1472 = arith.addf %1462, %1471 : vector<8x40xf32>
      %c7_927 = arith.constant 7 : index
      %c0_928 = arith.constant 0 : index
      %c0_929 = arith.constant 0 : index
      %1473 = vector.load %arg11[%c7_927, %c0_928, %c0_929] : memref<8x8x40xf32, #tpu.memory_space<vmem>>, vector<1x8x40xf32>
      %1474 = vector.shape_cast %1473 : vector<1x8x40xf32> to vector<8x40xf32>
      %c7_930 = arith.constant 7 : index
      %c2_931 = arith.constant 2 : index
      %1475 = memref.load %arg6[%c7_930, %c2_931] : memref<8x8xf32, #tpu.memory_space<smem>>
      %1476 = vector.broadcast %1475 : f32 to vector<8x40xf32>
      %1477 = arith.mulf %1474, %1476 : vector<8x40xf32>
      %1478 = arith.addf %1468, %1477 : vector<8x40xf32>
      %c7_932 = arith.constant 7 : index
      %c3_933 = arith.constant 3 : index
      %1479 = memref.load %arg6[%c7_932, %c3_933] : memref<8x8xf32, #tpu.memory_space<smem>>
      %1480 = vector.broadcast %1479 : f32 to vector<8x40xf32>
      %1481 = arith.mulf %1474, %1480 : vector<8x40xf32>
      %1482 = arith.addf %1472, %1481 : vector<8x40xf32>
      %cst_934 = arith.constant -1.000000e-01 : f32
      %cst_935 = arith.constant 3.000000e-01 : f32
      %1483 = vector.broadcast %cst_934 : f32 to vector<8x40xf32>
      %1484 = arith.maximumf %1483, %1478 : vector<8x40xf32>
      %1485 = vector.broadcast %cst_935 : f32 to vector<8x40xf32>
      %1486 = arith.minimumf %1485, %1484 : vector<8x40xf32>
      %c2_936 = arith.constant 2 : index
      %1487 = arith.index_cast %5 : i32 to index
      %c0_937 = arith.constant 0 : index
      %1488 = vector.load %arg8[%c2_936, %1487, %c0_937] : memref<8x16x40xf32, #tpu.memory_space<vmem>>, vector<1x8x40xf32>
      %1489 = vector.shape_cast %1488 : vector<1x8x40xf32> to vector<8x40xf32>
      %1490 = vector.shape_cast %1486 : vector<8x40xf32> to vector<1x8x40xf32>
      tpu.vector_store %arg8[%c2_936, %1487, %c0_937], %1490 {strides = array<i32>} : memref<8x16x40xf32, #tpu.memory_space<vmem>>, vector<1x8x40xf32>,
      %cst_938 = arith.constant -1.000000e-01 : f32
      %cst_939 = arith.constant 3.000000e-01 : f32
      %1491 = vector.broadcast %cst_938 : f32 to vector<8x40xf32>
      %1492 = arith.maximumf %1491, %1482 : vector<8x40xf32>
      %1493 = vector.broadcast %cst_939 : f32 to vector<8x40xf32>
      %1494 = arith.minimumf %1493, %1492 : vector<8x40xf32>
      %c3_940 = arith.constant 3 : index
      %1495 = arith.index_cast %5 : i32 to index
      %c0_941 = arith.constant 0 : index
      %1496 = vector.load %arg8[%c3_940, %1495, %c0_941] : memref<8x16x40xf32, #tpu.memory_space<vmem>>, vector<1x8x40xf32>
      %1497 = vector.shape_cast %1496 : vector<1x8x40xf32> to vector<8x40xf32>
      %1498 = vector.shape_cast %1494 : vector<8x40xf32> to vector<1x8x40xf32>
      tpu.vector_store %arg8[%c3_940, %1495, %c0_941], %1498 {strides = array<i32>} : memref<8x16x40xf32, #tpu.memory_space<vmem>>, vector<1x8x40xf32>,
      %c0_942 = arith.constant 0 : index
      %c0_943 = arith.constant 0 : index
      %c0_944 = arith.constant 0 : index
      %1499 = vector.load %arg11[%c0_942, %c0_943, %c0_944] : memref<8x8x40xf32, #tpu.memory_space<vmem>>, vector<1x8x40xf32>
      %1500 = vector.shape_cast %1499 : vector<1x8x40xf32> to vector<8x40xf32>
      %c0_945 = arith.constant 0 : index
      %c4_946 = arith.constant 4 : index
      %1501 = memref.load %arg6[%c0_945, %c4_946] : memref<8x8xf32, #tpu.memory_space<smem>>
      %1502 = vector.broadcast %1501 : f32 to vector<8x40xf32>
      %1503 = arith.mulf %1500, %1502 : vector<8x40xf32>
      %c4_947 = arith.constant 4 : index
      %1504 = memref.load %arg7[%c4_947] : memref<8xf32, #tpu.memory_space<smem>>
      %1505 = vector.broadcast %1504 : f32 to vector<8x40xf32>
      %1506 = arith.addf %1503, %1505 : vector<8x40xf32>
      %c0_948 = arith.constant 0 : index
      %c5_949 = arith.constant 5 : index
      %1507 = memref.load %arg6[%c0_948, %c5_949] : memref<8x8xf32, #tpu.memory_space<smem>>
      %1508 = vector.broadcast %1507 : f32 to vector<8x40xf32>
      %1509 = arith.mulf %1500, %1508 : vector<8x40xf32>
      %c5_950 = arith.constant 5 : index
      %1510 = memref.load %arg7[%c5_950] : memref<8xf32, #tpu.memory_space<smem>>
      %1511 = vector.broadcast %1510 : f32 to vector<8x40xf32>
      %1512 = arith.addf %1509, %1511 : vector<8x40xf32>
      %c1_951 = arith.constant 1 : index
      %c0_952 = arith.constant 0 : index
      %c0_953 = arith.constant 0 : index
      %1513 = vector.load %arg11[%c1_951, %c0_952, %c0_953] : memref<8x8x40xf32, #tpu.memory_space<vmem>>, vector<1x8x40xf32>
      %1514 = vector.shape_cast %1513 : vector<1x8x40xf32> to vector<8x40xf32>
      %c1_954 = arith.constant 1 : index
      %c4_955 = arith.constant 4 : index
      %1515 = memref.load %arg6[%c1_954, %c4_955] : memref<8x8xf32, #tpu.memory_space<smem>>
      %1516 = vector.broadcast %1515 : f32 to vector<8x40xf32>
      %1517 = arith.mulf %1514, %1516 : vector<8x40xf32>
      %1518 = arith.addf %1506, %1517 : vector<8x40xf32>
      %c1_956 = arith.constant 1 : index
      %c5_957 = arith.constant 5 : index
      %1519 = memref.load %arg6[%c1_956, %c5_957] : memref<8x8xf32, #tpu.memory_space<smem>>
      %1520 = vector.broadcast %1519 : f32 to vector<8x40xf32>
      %1521 = arith.mulf %1514, %1520 : vector<8x40xf32>
      %1522 = arith.addf %1512, %1521 : vector<8x40xf32>
      %c2_958 = arith.constant 2 : index
      %c0_959 = arith.constant 0 : index
      %c0_960 = arith.constant 0 : index
      %1523 = vector.load %arg11[%c2_958, %c0_959, %c0_960] : memref<8x8x40xf32, #tpu.memory_space<vmem>>, vector<1x8x40xf32>
      %1524 = vector.shape_cast %1523 : vector<1x8x40xf32> to vector<8x40xf32>
      %c2_961 = arith.constant 2 : index
      %c4_962 = arith.constant 4 : index
      %1525 = memref.load %arg6[%c2_961, %c4_962] : memref<8x8xf32, #tpu.memory_space<smem>>
      %1526 = vector.broadcast %1525 : f32 to vector<8x40xf32>
      %1527 = arith.mulf %1524, %1526 : vector<8x40xf32>
      %1528 = arith.addf %1518, %1527 : vector<8x40xf32>
      %c2_963 = arith.constant 2 : index
      %c5_964 = arith.constant 5 : index
      %1529 = memref.load %arg6[%c2_963, %c5_964] : memref<8x8xf32, #tpu.memory_space<smem>>
      %1530 = vector.broadcast %1529 : f32 to vector<8x40xf32>
      %1531 = arith.mulf %1524, %1530 : vector<8x40xf32>
      %1532 = arith.addf %1522, %1531 : vector<8x40xf32>
      %c3_965 = arith.constant 3 : index
      %c0_966 = arith.constant 0 : index
      %c0_967 = arith.constant 0 : index
      %1533 = vector.load %arg11[%c3_965, %c0_966, %c0_967] : memref<8x8x40xf32, #tpu.memory_space<vmem>>, vector<1x8x40xf32>
      %1534 = vector.shape_cast %1533 : vector<1x8x40xf32> to vector<8x40xf32>
      %c3_968 = arith.constant 3 : index
      %c4_969 = arith.constant 4 : index
      %1535 = memref.load %arg6[%c3_968, %c4_969] : memref<8x8xf32, #tpu.memory_space<smem>>
      %1536 = vector.broadcast %1535 : f32 to vector<8x40xf32>
      %1537 = arith.mulf %1534, %1536 : vector<8x40xf32>
      %1538 = arith.addf %1528, %1537 : vector<8x40xf32>
      %c3_970 = arith.constant 3 : index
      %c5_971 = arith.constant 5 : index
      %1539 = memref.load %arg6[%c3_970, %c5_971] : memref<8x8xf32, #tpu.memory_space<smem>>
      %1540 = vector.broadcast %1539 : f32 to vector<8x40xf32>
      %1541 = arith.mulf %1534, %1540 : vector<8x40xf32>
      %1542 = arith.addf %1532, %1541 : vector<8x40xf32>
      %c4_972 = arith.constant 4 : index
      %c0_973 = arith.constant 0 : index
      %c0_974 = arith.constant 0 : index
      %1543 = vector.load %arg11[%c4_972, %c0_973, %c0_974] : memref<8x8x40xf32, #tpu.memory_space<vmem>>, vector<1x8x40xf32>
      %1544 = vector.shape_cast %1543 : vector<1x8x40xf32> to vector<8x40xf32>
      %c4_975 = arith.constant 4 : index
      %c4_976 = arith.constant 4 : index
      %1545 = memref.load %arg6[%c4_975, %c4_976] : memref<8x8xf32, #tpu.memory_space<smem>>
      %1546 = vector.broadcast %1545 : f32 to vector<8x40xf32>
      %1547 = arith.mulf %1544, %1546 : vector<8x40xf32>
      %1548 = arith.addf %1538, %1547 : vector<8x40xf32>
      %c4_977 = arith.constant 4 : index
      %c5_978 = arith.constant 5 : index
      %1549 = memref.load %arg6[%c4_977, %c5_978] : memref<8x8xf32, #tpu.memory_space<smem>>
      %1550 = vector.broadcast %1549 : f32 to vector<8x40xf32>
      %1551 = arith.mulf %1544, %1550 : vector<8x40xf32>
      %1552 = arith.addf %1542, %1551 : vector<8x40xf32>
      %c5_979 = arith.constant 5 : index
      %c0_980 = arith.constant 0 : index
      %c0_981 = arith.constant 0 : index
      %1553 = vector.load %arg11[%c5_979, %c0_980, %c0_981] : memref<8x8x40xf32, #tpu.memory_space<vmem>>, vector<1x8x40xf32>
      %1554 = vector.shape_cast %1553 : vector<1x8x40xf32> to vector<8x40xf32>
      %c5_982 = arith.constant 5 : index
      %c4_983 = arith.constant 4 : index
      %1555 = memref.load %arg6[%c5_982, %c4_983] : memref<8x8xf32, #tpu.memory_space<smem>>
      %1556 = vector.broadcast %1555 : f32 to vector<8x40xf32>
      %1557 = arith.mulf %1554, %1556 : vector<8x40xf32>
      %1558 = arith.addf %1548, %1557 : vector<8x40xf32>
      %c5_984 = arith.constant 5 : index
      %c5_985 = arith.constant 5 : index
      %1559 = memref.load %arg6[%c5_984, %c5_985] : memref<8x8xf32, #tpu.memory_space<smem>>
      %1560 = vector.broadcast %1559 : f32 to vector<8x40xf32>
      %1561 = arith.mulf %1554, %1560 : vector<8x40xf32>
      %1562 = arith.addf %1552, %1561 : vector<8x40xf32>
      %c6_986 = arith.constant 6 : index
      %c0_987 = arith.constant 0 : index
      %c0_988 = arith.constant 0 : index
      %1563 = vector.load %arg11[%c6_986, %c0_987, %c0_988] : memref<8x8x40xf32, #tpu.memory_space<vmem>>, vector<1x8x40xf32>
      %1564 = vector.shape_cast %1563 : vector<1x8x40xf32> to vector<8x40xf32>
      %c6_989 = arith.constant 6 : index
      %c4_990 = arith.constant 4 : index
      %1565 = memref.load %arg6[%c6_989, %c4_990] : memref<8x8xf32, #tpu.memory_space<smem>>
      %1566 = vector.broadcast %1565 : f32 to vector<8x40xf32>
      %1567 = arith.mulf %1564, %1566 : vector<8x40xf32>
      %1568 = arith.addf %1558, %1567 : vector<8x40xf32>
      %c6_991 = arith.constant 6 : index
      %c5_992 = arith.constant 5 : index
      %1569 = memref.load %arg6[%c6_991, %c5_992] : memref<8x8xf32, #tpu.memory_space<smem>>
      %1570 = vector.broadcast %1569 : f32 to vector<8x40xf32>
      %1571 = arith.mulf %1564, %1570 : vector<8x40xf32>
      %1572 = arith.addf %1562, %1571 : vector<8x40xf32>
      %c7_993 = arith.constant 7 : index
      %c0_994 = arith.constant 0 : index
      %c0_995 = arith.constant 0 : index
      %1573 = vector.load %arg11[%c7_993, %c0_994, %c0_995] : memref<8x8x40xf32, #tpu.memory_space<vmem>>, vector<1x8x40xf32>
      %1574 = vector.shape_cast %1573 : vector<1x8x40xf32> to vector<8x40xf32>
      %c7_996 = arith.constant 7 : index
      %c4_997 = arith.constant 4 : index
      %1575 = memref.load %arg6[%c7_996, %c4_997] : memref<8x8xf32, #tpu.memory_space<smem>>
      %1576 = vector.broadcast %1575 : f32 to vector<8x40xf32>
      %1577 = arith.mulf %1574, %1576 : vector<8x40xf32>
      %1578 = arith.addf %1568, %1577 : vector<8x40xf32>
      %c7_998 = arith.constant 7 : index
      %c5_999 = arith.constant 5 : index
      %1579 = memref.load %arg6[%c7_998, %c5_999] : memref<8x8xf32, #tpu.memory_space<smem>>
      %1580 = vector.broadcast %1579 : f32 to vector<8x40xf32>
      %1581 = arith.mulf %1574, %1580 : vector<8x40xf32>
      %1582 = arith.addf %1572, %1581 : vector<8x40xf32>
      %cst_1000 = arith.constant -1.000000e-01 : f32
      %cst_1001 = arith.constant 3.000000e-01 : f32
      %1583 = vector.broadcast %cst_1000 : f32 to vector<8x40xf32>
      %1584 = arith.maximumf %1583, %1578 : vector<8x40xf32>
      %1585 = vector.broadcast %cst_1001 : f32 to vector<8x40xf32>
      %1586 = arith.minimumf %1585, %1584 : vector<8x40xf32>
      %c4_1002 = arith.constant 4 : index
      %1587 = arith.index_cast %5 : i32 to index
      %c0_1003 = arith.constant 0 : index
      %1588 = vector.load %arg8[%c4_1002, %1587, %c0_1003] : memref<8x16x40xf32, #tpu.memory_space<vmem>>, vector<1x8x40xf32>
      %1589 = vector.shape_cast %1588 : vector<1x8x40xf32> to vector<8x40xf32>
      %1590 = vector.shape_cast %1586 : vector<8x40xf32> to vector<1x8x40xf32>
      tpu.vector_store %arg8[%c4_1002, %1587, %c0_1003], %1590 {strides = array<i32>} : memref<8x16x40xf32, #tpu.memory_space<vmem>>, vector<1x8x40xf32>,
      %cst_1004 = arith.constant -1.000000e-01 : f32
      %cst_1005 = arith.constant 3.000000e-01 : f32
      %1591 = vector.broadcast %cst_1004 : f32 to vector<8x40xf32>
      %1592 = arith.maximumf %1591, %1582 : vector<8x40xf32>
      %1593 = vector.broadcast %cst_1005 : f32 to vector<8x40xf32>
      %1594 = arith.minimumf %1593, %1592 : vector<8x40xf32>
      %c5_1006 = arith.constant 5 : index
      %1595 = arith.index_cast %5 : i32 to index
      %c0_1007 = arith.constant 0 : index
      %1596 = vector.load %arg8[%c5_1006, %1595, %c0_1007] : memref<8x16x40xf32, #tpu.memory_space<vmem>>, vector<1x8x40xf32>
      %1597 = vector.shape_cast %1596 : vector<1x8x40xf32> to vector<8x40xf32>
      %1598 = vector.shape_cast %1594 : vector<8x40xf32> to vector<1x8x40xf32>
      tpu.vector_store %arg8[%c5_1006, %1595, %c0_1007], %1598 {strides = array<i32>} : memref<8x16x40xf32, #tpu.memory_space<vmem>>, vector<1x8x40xf32>,
      %c0_1008 = arith.constant 0 : index
      %c0_1009 = arith.constant 0 : index
      %c0_1010 = arith.constant 0 : index
      %1599 = vector.load %arg11[%c0_1008, %c0_1009, %c0_1010] : memref<8x8x40xf32, #tpu.memory_space<vmem>>, vector<1x8x40xf32>
      %1600 = vector.shape_cast %1599 : vector<1x8x40xf32> to vector<8x40xf32>
      %c0_1011 = arith.constant 0 : index
      %c6_1012 = arith.constant 6 : index
      %1601 = memref.load %arg6[%c0_1011, %c6_1012] : memref<8x8xf32, #tpu.memory_space<smem>>
      %1602 = vector.broadcast %1601 : f32 to vector<8x40xf32>
      %1603 = arith.mulf %1600, %1602 : vector<8x40xf32>
      %c6_1013 = arith.constant 6 : index
      %1604 = memref.load %arg7[%c6_1013] : memref<8xf32, #tpu.memory_space<smem>>
      %1605 = vector.broadcast %1604 : f32 to vector<8x40xf32>
      %1606 = arith.addf %1603, %1605 : vector<8x40xf32>
      %c0_1014 = arith.constant 0 : index
      %c7_1015 = arith.constant 7 : index
      %1607 = memref.load %arg6[%c0_1014, %c7_1015] : memref<8x8xf32, #tpu.memory_space<smem>>
      %1608 = vector.broadcast %1607 : f32 to vector<8x40xf32>
      %1609 = arith.mulf %1600, %1608 : vector<8x40xf32>
      %c7_1016 = arith.constant 7 : index
      %1610 = memref.load %arg7[%c7_1016] : memref<8xf32, #tpu.memory_space<smem>>
      %1611 = vector.broadcast %1610 : f32 to vector<8x40xf32>
      %1612 = arith.addf %1609, %1611 : vector<8x40xf32>
      %c1_1017 = arith.constant 1 : index
      %c0_1018 = arith.constant 0 : index
      %c0_1019 = arith.constant 0 : index
      %1613 = vector.load %arg11[%c1_1017, %c0_1018, %c0_1019] : memref<8x8x40xf32, #tpu.memory_space<vmem>>, vector<1x8x40xf32>
      %1614 = vector.shape_cast %1613 : vector<1x8x40xf32> to vector<8x40xf32>
      %c1_1020 = arith.constant 1 : index
      %c6_1021 = arith.constant 6 : index
      %1615 = memref.load %arg6[%c1_1020, %c6_1021] : memref<8x8xf32, #tpu.memory_space<smem>>
      %1616 = vector.broadcast %1615 : f32 to vector<8x40xf32>
      %1617 = arith.mulf %1614, %1616 : vector<8x40xf32>
      %1618 = arith.addf %1606, %1617 : vector<8x40xf32>
      %c1_1022 = arith.constant 1 : index
      %c7_1023 = arith.constant 7 : index
      %1619 = memref.load %arg6[%c1_1022, %c7_1023] : memref<8x8xf32, #tpu.memory_space<smem>>
      %1620 = vector.broadcast %1619 : f32 to vector<8x40xf32>
      %1621 = arith.mulf %1614, %1620 : vector<8x40xf32>
      %1622 = arith.addf %1612, %1621 : vector<8x40xf32>
      %c2_1024 = arith.constant 2 : index
      %c0_1025 = arith.constant 0 : index
      %c0_1026 = arith.constant 0 : index
      %1623 = vector.load %arg11[%c2_1024, %c0_1025, %c0_1026] : memref<8x8x40xf32, #tpu.memory_space<vmem>>, vector<1x8x40xf32>
      %1624 = vector.shape_cast %1623 : vector<1x8x40xf32> to vector<8x40xf32>
      %c2_1027 = arith.constant 2 : index
      %c6_1028 = arith.constant 6 : index
      %1625 = memref.load %arg6[%c2_1027, %c6_1028] : memref<8x8xf32, #tpu.memory_space<smem>>
      %1626 = vector.broadcast %1625 : f32 to vector<8x40xf32>
      %1627 = arith.mulf %1624, %1626 : vector<8x40xf32>
      %1628 = arith.addf %1618, %1627 : vector<8x40xf32>
      %c2_1029 = arith.constant 2 : index
      %c7_1030 = arith.constant 7 : index
      %1629 = memref.load %arg6[%c2_1029, %c7_1030] : memref<8x8xf32, #tpu.memory_space<smem>>
      %1630 = vector.broadcast %1629 : f32 to vector<8x40xf32>
      %1631 = arith.mulf %1624, %1630 : vector<8x40xf32>
      %1632 = arith.addf %1622, %1631 : vector<8x40xf32>
      %c3_1031 = arith.constant 3 : index
      %c0_1032 = arith.constant 0 : index
      %c0_1033 = arith.constant 0 : index
      %1633 = vector.load %arg11[%c3_1031, %c0_1032, %c0_1033] : memref<8x8x40xf32, #tpu.memory_space<vmem>>, vector<1x8x40xf32>
      %1634 = vector.shape_cast %1633 : vector<1x8x40xf32> to vector<8x40xf32>
      %c3_1034 = arith.constant 3 : index
      %c6_1035 = arith.constant 6 : index
      %1635 = memref.load %arg6[%c3_1034, %c6_1035] : memref<8x8xf32, #tpu.memory_space<smem>>
      %1636 = vector.broadcast %1635 : f32 to vector<8x40xf32>
      %1637 = arith.mulf %1634, %1636 : vector<8x40xf32>
      %1638 = arith.addf %1628, %1637 : vector<8x40xf32>
      %c3_1036 = arith.constant 3 : index
      %c7_1037 = arith.constant 7 : index
      %1639 = memref.load %arg6[%c3_1036, %c7_1037] : memref<8x8xf32, #tpu.memory_space<smem>>
      %1640 = vector.broadcast %1639 : f32 to vector<8x40xf32>
      %1641 = arith.mulf %1634, %1640 : vector<8x40xf32>
      %1642 = arith.addf %1632, %1641 : vector<8x40xf32>
      %c4_1038 = arith.constant 4 : index
      %c0_1039 = arith.constant 0 : index
      %c0_1040 = arith.constant 0 : index
      %1643 = vector.load %arg11[%c4_1038, %c0_1039, %c0_1040] : memref<8x8x40xf32, #tpu.memory_space<vmem>>, vector<1x8x40xf32>
      %1644 = vector.shape_cast %1643 : vector<1x8x40xf32> to vector<8x40xf32>
      %c4_1041 = arith.constant 4 : index
      %c6_1042 = arith.constant 6 : index
      %1645 = memref.load %arg6[%c4_1041, %c6_1042] : memref<8x8xf32, #tpu.memory_space<smem>>
      %1646 = vector.broadcast %1645 : f32 to vector<8x40xf32>
      %1647 = arith.mulf %1644, %1646 : vector<8x40xf32>
      %1648 = arith.addf %1638, %1647 : vector<8x40xf32>
      %c4_1043 = arith.constant 4 : index
      %c7_1044 = arith.constant 7 : index
      %1649 = memref.load %arg6[%c4_1043, %c7_1044] : memref<8x8xf32, #tpu.memory_space<smem>>
      %1650 = vector.broadcast %1649 : f32 to vector<8x40xf32>
      %1651 = arith.mulf %1644, %1650 : vector<8x40xf32>
      %1652 = arith.addf %1642, %1651 : vector<8x40xf32>
      %c5_1045 = arith.constant 5 : index
      %c0_1046 = arith.constant 0 : index
      %c0_1047 = arith.constant 0 : index
      %1653 = vector.load %arg11[%c5_1045, %c0_1046, %c0_1047] : memref<8x8x40xf32, #tpu.memory_space<vmem>>, vector<1x8x40xf32>
      %1654 = vector.shape_cast %1653 : vector<1x8x40xf32> to vector<8x40xf32>
      %c5_1048 = arith.constant 5 : index
      %c6_1049 = arith.constant 6 : index
      %1655 = memref.load %arg6[%c5_1048, %c6_1049] : memref<8x8xf32, #tpu.memory_space<smem>>
      %1656 = vector.broadcast %1655 : f32 to vector<8x40xf32>
      %1657 = arith.mulf %1654, %1656 : vector<8x40xf32>
      %1658 = arith.addf %1648, %1657 : vector<8x40xf32>
      %c5_1050 = arith.constant 5 : index
      %c7_1051 = arith.constant 7 : index
      %1659 = memref.load %arg6[%c5_1050, %c7_1051] : memref<8x8xf32, #tpu.memory_space<smem>>
      %1660 = vector.broadcast %1659 : f32 to vector<8x40xf32>
      %1661 = arith.mulf %1654, %1660 : vector<8x40xf32>
      %1662 = arith.addf %1652, %1661 : vector<8x40xf32>
      %c6_1052 = arith.constant 6 : index
      %c0_1053 = arith.constant 0 : index
      %c0_1054 = arith.constant 0 : index
      %1663 = vector.load %arg11[%c6_1052, %c0_1053, %c0_1054] : memref<8x8x40xf32, #tpu.memory_space<vmem>>, vector<1x8x40xf32>
      %1664 = vector.shape_cast %1663 : vector<1x8x40xf32> to vector<8x40xf32>
      %c6_1055 = arith.constant 6 : index
      %c6_1056 = arith.constant 6 : index
      %1665 = memref.load %arg6[%c6_1055, %c6_1056] : memref<8x8xf32, #tpu.memory_space<smem>>
      %1666 = vector.broadcast %1665 : f32 to vector<8x40xf32>
      %1667 = arith.mulf %1664, %1666 : vector<8x40xf32>
      %1668 = arith.addf %1658, %1667 : vector<8x40xf32>
      %c6_1057 = arith.constant 6 : index
      %c7_1058 = arith.constant 7 : index
      %1669 = memref.load %arg6[%c6_1057, %c7_1058] : memref<8x8xf32, #tpu.memory_space<smem>>
      %1670 = vector.broadcast %1669 : f32 to vector<8x40xf32>
      %1671 = arith.mulf %1664, %1670 : vector<8x40xf32>
      %1672 = arith.addf %1662, %1671 : vector<8x40xf32>
      %c7_1059 = arith.constant 7 : index
      %c0_1060 = arith.constant 0 : index
      %c0_1061 = arith.constant 0 : index
      %1673 = vector.load %arg11[%c7_1059, %c0_1060, %c0_1061] : memref<8x8x40xf32, #tpu.memory_space<vmem>>, vector<1x8x40xf32>
      %1674 = vector.shape_cast %1673 : vector<1x8x40xf32> to vector<8x40xf32>
      %c7_1062 = arith.constant 7 : index
      %c6_1063 = arith.constant 6 : index
      %1675 = memref.load %arg6[%c7_1062, %c6_1063] : memref<8x8xf32, #tpu.memory_space<smem>>
      %1676 = vector.broadcast %1675 : f32 to vector<8x40xf32>
      %1677 = arith.mulf %1674, %1676 : vector<8x40xf32>
      %1678 = arith.addf %1668, %1677 : vector<8x40xf32>
      %c7_1064 = arith.constant 7 : index
      %c7_1065 = arith.constant 7 : index
      %1679 = memref.load %arg6[%c7_1064, %c7_1065] : memref<8x8xf32, #tpu.memory_space<smem>>
      %1680 = vector.broadcast %1679 : f32 to vector<8x40xf32>
      %1681 = arith.mulf %1674, %1680 : vector<8x40xf32>
      %1682 = arith.addf %1672, %1681 : vector<8x40xf32>
      %cst_1066 = arith.constant -1.000000e-01 : f32
      %cst_1067 = arith.constant 3.000000e-01 : f32
      %1683 = vector.broadcast %cst_1066 : f32 to vector<8x40xf32>
      %1684 = arith.maximumf %1683, %1678 : vector<8x40xf32>
      %1685 = vector.broadcast %cst_1067 : f32 to vector<8x40xf32>
      %1686 = arith.minimumf %1685, %1684 : vector<8x40xf32>
      %c6_1068 = arith.constant 6 : index
      %1687 = arith.index_cast %5 : i32 to index
      %c0_1069 = arith.constant 0 : index
      %1688 = vector.load %arg8[%c6_1068, %1687, %c0_1069] : memref<8x16x40xf32, #tpu.memory_space<vmem>>, vector<1x8x40xf32>
      %1689 = vector.shape_cast %1688 : vector<1x8x40xf32> to vector<8x40xf32>
      %1690 = vector.shape_cast %1686 : vector<8x40xf32> to vector<1x8x40xf32>
      tpu.vector_store %arg8[%c6_1068, %1687, %c0_1069], %1690 {strides = array<i32>} : memref<8x16x40xf32, #tpu.memory_space<vmem>>, vector<1x8x40xf32>,
      %cst_1070 = arith.constant -1.000000e-01 : f32
      %cst_1071 = arith.constant 3.000000e-01 : f32
      %1691 = vector.broadcast %cst_1070 : f32 to vector<8x40xf32>
      %1692 = arith.maximumf %1691, %1682 : vector<8x40xf32>
      %1693 = vector.broadcast %cst_1071 : f32 to vector<8x40xf32>
      %1694 = arith.minimumf %1693, %1692 : vector<8x40xf32>
      %c7_1072 = arith.constant 7 : index
      %1695 = arith.index_cast %5 : i32 to index
      %c0_1073 = arith.constant 0 : index
      %1696 = vector.load %arg8[%c7_1072, %1695, %c0_1073] : memref<8x16x40xf32, #tpu.memory_space<vmem>>, vector<1x8x40xf32>
      %1697 = vector.shape_cast %1696 : vector<1x8x40xf32> to vector<8x40xf32>
      %1698 = vector.shape_cast %1694 : vector<8x40xf32> to vector<1x8x40xf32>
      tpu.vector_store %arg8[%c7_1072, %1695, %c0_1073], %1698 {strides = array<i32>} : memref<8x16x40xf32, #tpu.memory_space<vmem>>, vector<1x8x40xf32>,
    }
    %c2_i32_0 = arith.constant 2 : i32
    return
  }
  func.func @transform_0(%arg0: i32) -> (i32, i32, i32) {
    %c0_i32 = arith.constant 0 : i32
    %c0_i32_0 = arith.constant 0 : i32
    %c0_i32_1 = arith.constant 0 : i32
    %c0_i32_2 = arith.constant 0 : i32
    return %c0_i32, %c0_i32_0, %c0_i32_1 : i32, i32, i32
  }
  func.func @transform_1(%arg0: i32) -> (i32, i32) {
    %c0_i32 = arith.constant 0 : i32
    %c0_i32_0 = arith.constant 0 : i32
    %c0_i32_1 = arith.constant 0 : i32
    return %c0_i32, %c0_i32_0 : i32, i32
  }
  func.func @transform_2(%arg0: i32) -> i32 {
    %c0_i32 = arith.constant 0 : i32
    %c0_i32_0 = arith.constant 0 : i32
    return %c0_i32 : i32
  }
  func.func @transform_3(%arg0: i32) -> (i32, i32) {
    %c0_i32 = arith.constant 0 : i32
    %c0_i32_0 = arith.constant 0 : i32
    %c0_i32_1 = arith.constant 0 : i32
    return %c0_i32, %c0_i32_0 : i32, i32
  }
  func.func @transform_4(%arg0: i32) -> i32 {
    %c0_i32 = arith.constant 0 : i32
    %c0_i32_0 = arith.constant 0 : i32
    return %c0_i32 : i32
  }
  func.func @transform_5(%arg0: i32) -> (i32, i32) {
    %c0_i32 = arith.constant 0 : i32
    %c0_i32_0 = arith.constant 0 : i32
    %c0_i32_1 = arith.constant 0 : i32
    return %c0_i32, %c0_i32_0 : i32, i32
  }
  func.func @transform_6(%arg0: i32) -> i32 {
    %c0_i32 = arith.constant 0 : i32
    %c0_i32_0 = arith.constant 0 : i32
    return %c0_i32 : i32
  }
  func.func @transform_7(%arg0: i32) -> (i32, i32, i32) {
    %c0_i32 = arith.constant 0 : i32
    %c0_i32_0 = arith.constant 0 : i32
    %c0_i32_1 = arith.constant 0 : i32
    return %c0_i32, %arg0, %c0_i32_0 : i32, i32, i32
  }
}

</mosaic_0001>

<llo_original>
// kernel: model_forward.1
$region0: #{model_forward.1}
  #allocation0 [shape = 'u32[]', space=smem, size = 0x4, offset = 0x4, fixed_abs, tag = 'smem constant byte address 0x4 - core index']
  #allocation1 [shape = 'u32[144,128]{1,0:T(1,128)}', space=vmem, size = 0x12000, scoped, tag = 'internal scratch']
  #allocation2 [shape = 'f32[3,10,46]{2,1,0:T(8,128)}', space=vmem, size = 0x6000, scoped, tag = 'scratch operand']
  #allocation3 [shape = 'f32[16,9,41]{2,1,0:T(8,128)}', space=vmem, size = 0x20000, scoped, tag = 'scratch operand']
  #allocation4 [shape = 'f32[8,8,40]{2,1,0:T(8,128)}', space=vmem, size = 0x8000, scoped, tag = 'scratch operand']
  #allocation17 [shape = 's32[]', space=sflag, size = 0x4, offset = 0, fixed_abs, tag = 'sflag constant byte address 0x0 - dummy sync flag']
  %s0 = inlined_call_operand.vmem [shape: f32[3,46,46], index: 0, kind: input, shape index: {}]
  %s1 = inlined_call_operand.vmem [shape: f32[3,16], index: 1, kind: input, shape index: {}]
  %s2 = inlined_call_operand.vmem [shape: f32[16], index: 2, kind: input, shape index: {}]
  %s3 = inlined_call_operand.vmem [shape: f32[16,8], index: 3, kind: input, shape index: {}]
  %s4 = inlined_call_operand.vmem [shape: f32[8], index: 4, kind: input, shape index: {}]
  %s5 = inlined_call_operand.vmem [shape: f32[8,8], index: 5, kind: input, shape index: {}]
  %s6 = inlined_call_operand.vmem [shape: f32[8], index: 6, kind: input, shape index: {}]
  %s7 = inlined_call_operand.hbm [shape: f32[8,40,40], index: 7, kind: output, shape index: {}]
  %s8 = sld [smem:[#allocation0]]
  $region92: #{model_forward.1} parent=0
    _
  %s10 = ssub.s32 1, %s8
  %s11 = scalar_select 0, %s10, %s8
  $region1: #{model_forward.1} parent=0
    #allocation5 [shape = 'u8[2048]{0}', space=smem, size = 0x800, scoped, tag = 'input window, operand 1, single buffered']
    #allocation6 [shape = 's32[2]{0}', space=sflag, size = 0x8, scoped, tag = 'scoped memory for model_forward.1']
    #allocation7 [shape = 's32[2]{0}', space=sflag, size = 0x8, scoped, tag = 'scoped memory for model_forward.1']
    #allocation8 [shape = 'u8[512]{0}', space=smem, size = 0x200, scoped, tag = 'input window, operand 2, single buffered']
    #allocation9 [shape = 's32[1]{0}', space=sflag, size = 0x4, scoped, tag = 'scoped memory for model_forward.1']
    #allocation10 [shape = 'u8[8192]{0}', space=smem, size = 0x2000, scoped, tag = 'input window, operand 3, single buffered']
    #allocation11 [shape = 'u8[512]{0}', space=smem, size = 0x200, scoped, tag = 'input window, operand 4, single buffered']
    #allocation12 [shape = 's32[1]{0}', space=sflag, size = 0x4, scoped, tag = 'scoped memory for model_forward.1']
    #allocation13 [shape = 'u8[4096]{0}', space=smem, size = 0x1000, scoped, tag = 'input window, operand 5, single buffered']
    #allocation14 [shape = 'u8[512]{0}', space=smem, size = 0x200, scoped, tag = 'input window, operand 6, single buffered']
    #allocation15 [shape = 's32[1]{0}', space=sflag, size = 0x4, scoped, tag = 'scoped memory for model_forward.1']
    #allocation16 [shape = 'u8[131072]{0}', space=vmem, size = 0x20000, scoped, tag = 'output window, operand 0']
    %12 = vsyncpa [#allocation7], 0
    %13 = vsyncpa [#allocation9], 0
    %14 = vsyncpa [#allocation12], 0
    %15 = vsyncpa [#allocation15], 0
    %16 = vsyncpa [#allocation6], 0
    %s17 = scalar_lea.sflag [#allocation6], 1
    %18 = vsyncpa %s17, 0
    loop: start=0, step=1, limit=5
    $region2: #{model_forward.1} parent=1 // loop_pre_header
      _
    $region3: #{model_forward.1} parent=1 // loop_header
      %s20 = sphi 0, %s24
      %p21 = scmp.ge.s32.totalorder %s20, 5
      %s28 = sphi 0, %s28
      %s30 = sphi 0, %s28
      %s31 = sphi 0, %s30
      %s45 = sphi 0, %s31
      %s49 = sphi 0, %s49
      %s51 = sphi 0, %s49
      %s52 = sphi 0, %s51
      %s66 = sphi 0, %s52
      %s70 = sphi 0, %s70
      %s72 = sphi 0, %s70
      %s73 = sphi 0, %s72
      %s87 = sphi 0, %s73
      %s91 = sphi 0, %s91
      %s93 = sphi 0, %s91
      %s94 = sphi 0, %s93
      %s108 = sphi 0, %s94
      %s112 = sphi 0, %s112
      %s114 = sphi 0, %s112
      %s115 = sphi 0, %s114
      %s129 = sphi 0, %s115
      %s133 = sphi 0, %s133
      %s135 = sphi 0, %s133
      %s136 = sphi 0, %s135
      %s150 = sphi 0, %s136
      %s154 = sphi 0, %s154
      %s156 = sphi 0, %s154
      %s157 = sphi 0, %s156
      %s171 = sphi 0, %s157
      %s177 = sphi 0, %s179
      %s180 = sphi 0, %s177
      %s181 = sphi 0, %s180
      %s197 = sphi 0, %s181
    $region4: #{model_forward.1} parent=1 // loop_header_branch
      %23 = sbr.rel (%p21) target = $region8
    $region5: #{model_forward.1} parent=1 // loop_body
      %s25 = ssub.s32 %s20, 1
      %s26 = ssub.s32 %s20, 2
      %s27 = sadd.s32 %s20, 1
      %s29 = sadd.s32 %s28, 1
      %p32 = scmp.eq.s32.totalorder %s20, 2
      %p33 = scmp.ne.s32.totalorder %s28, %s30
      %p34 = scmp.eq.s32.totalorder %s20, 0
      %p35 = por %p33, %p34
      %p36 = scmp.ne.s32.totalorder %s28, %s30
      %p37 = scmp.eq.s32.totalorder %s25, 2
      %p38 = por %p36, %p37
      %p39 = scmp.ne.s32.totalorder %s30, %s31
      %p40 = scmp.eq.s32.totalorder %s25, 0
      %p41 = por %p39, %p40
      %p42 = scmp.ne.s32.totalorder %s30, %s31
      %p43 = scmp.eq.s32.totalorder %s26, 2
      %p44 = por %p42, %p43
      %p46 = scmp.ne.s32.totalorder %s31, %s45
      %p47 = scmp.eq.s32.totalorder %s26, 0
      %p48 = por %p46, %p47
      %s50 = sadd.s32 %s49, 1
      %p53 = scmp.eq.s32.totalorder %s20, 2
      %p54 = scmp.ne.s32.totalorder %s49, %s51
      %p55 = scmp.eq.s32.totalorder %s20, 0
      %p56 = por %p54, %p55
      %p57 = scmp.ne.s32.totalorder %s49, %s51
      %p58 = scmp.eq.s32.totalorder %s25, 2
      %p59 = por %p57, %p58
      %p60 = scmp.ne.s32.totalorder %s51, %s52
      %p61 = scmp.eq.s32.totalorder %s25, 0
      %p62 = por %p60, %p61
      %p63 = scmp.ne.s32.totalorder %s51, %s52
      %p64 = scmp.eq.s32.totalorder %s26, 2
      %p65 = por %p63, %p64
      %p67 = scmp.ne.s32.totalorder %s52, %s66
      %p68 = scmp.eq.s32.totalorder %s26, 0
      %p69 = por %p67, %p68
      %s71 = sadd.s32 %s70, 1
      %p74 = scmp.eq.s32.totalorder %s20, 2
      %p75 = scmp.ne.s32.totalorder %s70, %s72
      %p76 = scmp.eq.s32.totalorder %s20, 0
      %p77 = por %p75, %p76
      %p78 = scmp.ne.s32.totalorder %s70, %s72
      %p79 = scmp.eq.s32.totalorder %s25, 2
      %p80 = por %p78, %p79
      %p81 = scmp.ne.s32.totalorder %s72, %s73
      %p82 = scmp.eq.s32.totalorder %s25, 0
      %p83 = por %p81, %p82
      %p84 = scmp.ne.s32.totalorder %s72, %s73
      %p85 = scmp.eq.s32.totalorder %s26, 2
      %p86 = por %p84, %p85
      %p88 = scmp.ne.s32.totalorder %s73, %s87
      %p89 = scmp.eq.s32.totalorder %s26, 0
      %p90 = por %p88, %p89
      %s92 = sadd.s32 %s91, 1
      %p95 = scmp.eq.s32.totalorder %s20, 2
      %p96 = scmp.ne.s32.totalorder %s91, %s93
      %p97 = scmp.eq.s32.totalorder %s20, 0
      %p98 = por %p96, %p97
      %p99 = scmp.ne.s32.totalorder %s91, %s93
      %p100 = scmp.eq.s32.totalorder %s25, 2
      %p101 = por %p99, %p100
      %p102 = scmp.ne.s32.totalorder %s93, %s94
      %p103 = scmp.eq.s32.totalorder %s25, 0
      %p104 = por %p102, %p103
      %p105 = scmp.ne.s32.totalorder %s93, %s94
      %p106 = scmp.eq.s32.totalorder %s26, 2
      %p107 = por %p105, %p106
      %p109 = scmp.ne.s32.totalorder %s94, %s108
      %p110 = scmp.eq.s32.totalorder %s26, 0
      %p111 = por %p109, %p110
      %s113 = sadd.s32 %s112, 1
      %p116 = scmp.eq.s32.totalorder %s20, 2
      %p117 = scmp.ne.s32.totalorder %s112, %s114
      %p118 = scmp.eq.s32.totalorder %s20, 0
      %p119 = por %p117, %p118
      %p120 = scmp.ne.s32.totalorder %s112, %s114
      %p121 = scmp.eq.s32.totalorder %s25, 2
      %p122 = por %p120, %p121
      %p123 = scmp.ne.s32.totalorder %s114, %s115
      %p124 = scmp.eq.s32.totalorder %s25, 0
      %p125 = por %p123, %p124
      %p126 = scmp.ne.s32.totalorder %s114, %s115
      %p127 = scmp.eq.s32.totalorder %s26, 2
      %p128 = por %p126, %p127
      %p130 = scmp.ne.s32.totalorder %s115, %s129
      %p131 = scmp.eq.s32.totalorder %s26, 0
      %p132 = por %p130, %p131
      %s134 = sadd.s32 %s133, 1
      %p137 = scmp.eq.s32.totalorder %s20, 2
      %p138 = scmp.ne.s32.totalorder %s133, %s135
      %p139 = scmp.eq.s32.totalorder %s20, 0
      %p140 = por %p138, %p139
      %p141 = scmp.ne.s32.totalorder %s133, %s135
      %p142 = scmp.eq.s32.totalorder %s25, 2
      %p143 = por %p141, %p142
      %p144 = scmp.ne.s32.totalorder %s135, %s136
      %p145 = scmp.eq.s32.totalorder %s25, 0
      %p146 = por %p144, %p145
      %p147 = scmp.ne.s32.totalorder %s135, %s136
      %p148 = scmp.eq.s32.totalorder %s26, 2
      %p149 = por %p147, %p148
      %p151 = scmp.ne.s32.totalorder %s136, %s150
      %p152 = scmp.eq.s32.totalorder %s26, 0
      %p153 = por %p151, %p152
      %s155 = sadd.s32 %s154, 1
      %p158 = scmp.eq.s32.totalorder %s20, 2
      %p159 = scmp.ne.s32.totalorder %s154, %s156
      %p160 = scmp.eq.s32.totalorder %s20, 0
      %p161 = por %p159, %p160
      %p162 = scmp.ne.s32.totalorder %s154, %s156
      %p163 = scmp.eq.s32.totalorder %s25, 2
      %p164 = por %p162, %p163
      %p165 = scmp.ne.s32.totalorder %s156, %s157
      %p166 = scmp.eq.s32.totalorder %s25, 0
      %p167 = por %p165, %p166
      %p168 = scmp.ne.s32.totalorder %s156, %s157
      %p169 = scmp.eq.s32.totalorder %s26, 2
      %p170 = por %p168, %p169
      %p172 = scmp.ne.s32.totalorder %s157, %s171
      %p173 = scmp.eq.s32.totalorder %s26, 0
      %p174 = por %p172, %p173
      %s175 = ssub.s32 %s20, %s27
      %p176 = scmp.eq.s32.totalorder %s175, 0
      %s178 = sadd.s32 %s177, 1
      %s179 = scalar_select %p176, %s177, %s178
      %p182 = pneg %p176
      %p183 = scmp.eq.s32.totalorder %s20, 2
      %p184 = por %p182, %p183
      %p185 = scmp.ne.s32.totalorder %s177, %s180
      %p186 = scmp.eq.s32.totalorder %s20, 0
      %p187 = por %p185, %p186
      %p188 = scmp.ne.s32.totalorder %s177, %s180
      %p189 = scmp.eq.s32.totalorder %s25, 2
      %p190 = por %p188, %p189
      %p191 = scmp.ne.s32.totalorder %s180, %s181
      %p192 = scmp.eq.s32.totalorder %s25, 0
      %p193 = por %p191, %p192
      %p194 = scmp.ne.s32.totalorder %s180, %s181
      %p195 = scmp.eq.s32.totalorder %s26, 2
      %p196 = por %p194, %p195
      %p198 = scmp.ne.s32.totalorder %s181, %s197
      %p199 = scmp.eq.s32.totalorder %s26, 0
      %p200 = por %p198, %p199
      %p201 = scmp.le.s32.totalorder 1, %s20
      %p202 = scmp.lt.s32.totalorder %s20, 4
      %p203 = pnand %p201, %p202
      %p204 = pneg %p203
      // Predicated region
      $region9: #{model_forward.1} parent=5 // pred_check
        _
      $region10: #{model_forward.1} parent=5 // pred_check_branch
        %206 = sbr.rel (%p203) target = $region12
      $region11: #{model_forward.1} parent=5 // pred_region
        %s207 = ssub.s32 %s20, 1
        // Predicated region
        $region13: #{model_forward.1} parent=11 // pred_check
          %p208 = pneg %p41
        $region14: #{model_forward.1} parent=11 // pred_check_branch
          %210 = sbr.rel (%p208) target = $region16
        $region15: #{model_forward.1} parent=11 // pred_region
          _
        $region16: #{model_forward.1} parent=11 // pred_fallthru
          _
        // Predicated region
        $region17: #{model_forward.1} parent=11 // pred_check
          %p211 = pneg %p62
        $region18: #{model_forward.1} parent=11 // pred_check_branch
          %213 = sbr.rel (%p211) target = $region20
        $region19: #{model_forward.1} parent=11 // pred_region
          %s215 = ssub.s32 64, 64
          %216 = vsyncadd [#allocation7], %s215
          %s218 = sshll.u32 %s1, 4
          %s219 = int_to_ptr.vmem [resolvable:$true] %s218
          %221 = dma.vmem_to_smem %s219, 64, [#allocation5], [#allocation7]
        $region20: #{model_forward.1} parent=11 // pred_fallthru
          _
        // Predicated region
        $region21: #{model_forward.1} parent=11 // pred_check
          %p222 = pneg %p83
        $region22: #{model_forward.1} parent=11 // pred_check_branch
          %224 = sbr.rel (%p222) target = $region24
        $region23: #{model_forward.1} parent=11 // pred_region
          %s226 = ssub.s32 16, 16
          %227 = vsyncadd [#allocation9], %s226
          %s229 = sshll.u32 %s2, 4
          %s230 = int_to_ptr.vmem [resolvable:$true] %s229
          %232 = dma.vmem_to_smem %s230, 16, [#allocation8], [#allocation9]
        $region24: #{model_forward.1} parent=11 // pred_fallthru
          _
        // Predicated region
        $region25: #{model_forward.1} parent=11 // pred_check
          %p233 = pneg %p104
        $region26: #{model_forward.1} parent=11 // pred_check_branch
          %235 = sbr.rel (%p233) target = $region28
        $region27: #{model_forward.1} parent=11 // pred_region
          %s237 = ssub.s32 256, 256
          %238 = vsyncadd [#allocation9], %s237
          %s239 = sshll.u32 %s3, 4
          %s240 = int_to_ptr.vmem [resolvable:$true] %s239
          %245 = dma.vmem_to_smem %s240, 256, [#allocation10], [#allocation9], 128, 128, 8
        $region28: #{model_forward.1} parent=11 // pred_fallthru
          _
        // Predicated region
        $region29: #{model_forward.1} parent=11 // pred_check
          %p246 = pneg %p125
        $region30: #{model_forward.1} parent=11 // pred_check_branch
          %248 = sbr.rel (%p246) target = $region32
        $region31: #{model_forward.1} parent=11 // pred_region
          %s250 = ssub.s32 16, 16
          %251 = vsyncadd [#allocation12], %s250
          %s253 = sshll.u32 %s4, 4
          %s254 = int_to_ptr.vmem [resolvable:$true] %s253
          %256 = dma.vmem_to_smem %s254, 16, [#allocation11], [#allocation12]
        $region32: #{model_forward.1} parent=11 // pred_fallthru
          _
        // Predicated region
        $region33: #{model_forward.1} parent=11 // pred_check
          %p257 = pneg %p146
        $region34: #{model_forward.1} parent=11 // pred_check_branch
          %259 = sbr.rel (%p257) target = $region36
        $region35: #{model_forward.1} parent=11 // pred_region
          %s261 = ssub.s32 128, 128
          %262 = vsyncadd [#allocation12], %s261
          %s264 = sshll.u32 %s5, 4
          %s265 = int_to_ptr.vmem [resolvable:$true] %s264
          %267 = dma.vmem_to_smem %s265, 128, [#allocation13], [#allocation12]
        $region36: #{model_forward.1} parent=11 // pred_fallthru
          _
        // Predicated region
        $region37: #{model_forward.1} parent=11 // pred_check
          %p268 = pneg %p167
        $region38: #{model_forward.1} parent=11 // pred_check_branch
          %270 = sbr.rel (%p268) target = $region40
        $region39: #{model_forward.1} parent=11 // pred_region
          %s272 = ssub.s32 16, 16
          %273 = vsyncadd [#allocation15], %s272
          %s275 = sshll.u32 %s6, 4
          %s276 = int_to_ptr.vmem [resolvable:$true] %s275
          %278 = dma.vmem_to_smem %s276, 16, [#allocation14], [#allocation15]
        $region40: #{model_forward.1} parent=11 // pred_fallthru
          _
      $region12: #{model_forward.1} parent=5 // pred_fallthru
        _
      %p279 = scmp.lt.s32.totalorder %s20, 3
      // Predicated region
      $region41: #{model_forward.1} parent=5 // pred_check
        %p280 = pneg %p279
      $region42: #{model_forward.1} parent=5 // pred_check_branch
        %282 = sbr.rel (%p280) target = $region44
      $region43: #{model_forward.1} parent=5 // pred_region
        _
      $region44: #{model_forward.1} parent=5 // pred_fallthru
        _
      %p283 = scmp.le.s32.totalorder 1, %s20
      %p284 = scmp.lt.s32.totalorder %s20, 4
      %p285 = pnand %p283, %p284
      %p286 = pneg %p285
      // Predicated region
      $region45: #{model_forward.1} parent=5 // pred_check
        _
      $region46: #{model_forward.1} parent=5 // pred_check_branch
        %288 = sbr.rel (%p285) target = $region48
      $region47: #{model_forward.1} parent=5 // pred_region
        %s289 = ssub.s32 %s20, 1
        // Predicated region
        $region49: #{model_forward.1} parent=47 // pred_check
          %p290 = pneg %p62
        $region50: #{model_forward.1} parent=47 // pred_check_branch
          %292 = sbr.rel (%p290) target = $region52
        $region51: #{model_forward.1} parent=47 // pred_region
          %293 = dma.done [#allocation7], 64
        $region52: #{model_forward.1} parent=47 // pred_fallthru
          _
        // Predicated region
        $region53: #{model_forward.1} parent=47 // pred_check
          %p294 = pneg %p83
        $region54: #{model_forward.1} parent=47 // pred_check_branch
          %296 = sbr.rel (%p294) target = $region56
        $region55: #{model_forward.1} parent=47 // pred_region
          %297 = dma.done [#allocation9], 16
        $region56: #{model_forward.1} parent=47 // pred_fallthru
          _
        // Predicated region
        $region57: #{model_forward.1} parent=47 // pred_check
          %p298 = pneg %p104
        $region58: #{model_forward.1} parent=47 // pred_check_branch
          %300 = sbr.rel (%p298) target = $region60
        $region59: #{model_forward.1} parent=47 // pred_region
          %301 = dma.done [#allocation9], 256
        $region60: #{model_forward.1} parent=47 // pred_fallthru
          _
        // Predicated region
        $region61: #{model_forward.1} parent=47 // pred_check
          %p302 = pneg %p125
        $region62: #{model_forward.1} parent=47 // pred_check_branch
          %304 = sbr.rel (%p302) target = $region64
        $region63: #{model_forward.1} parent=47 // pred_region
          %305 = dma.done [#allocation12], 16
        $region64: #{model_forward.1} parent=47 // pred_fallthru
          _
        // Predicated region
        $region65: #{model_forward.1} parent=47 // pred_check
          %p306 = pneg %p146
        $region66: #{model_forward.1} parent=47 // pred_check_branch
          %308 = sbr.rel (%p306) target = $region68
        $region67: #{model_forward.1} parent=47 // pred_region
          %309 = dma.done [#allocation12], 128
        $region68: #{model_forward.1} parent=47 // pred_fallthru
          _
        // Predicated region
        $region69: #{model_forward.1} parent=47 // pred_check
          %p310 = pneg %p167
        $region70: #{model_forward.1} parent=47 // pred_check_branch
          %312 = sbr.rel (%p310) target = $region72
        $region71: #{model_forward.1} parent=47 // pred_region
          %313 = dma.done [#allocation15], 16
        $region72: #{model_forward.1} parent=47 // pred_fallthru
          _
        %314 = sfence
        %p315 = pneg %p41
        %p316 = pneg %p38
        %p317 = pneg %p62
        %p318 = pneg %p59
        %p319 = pneg %p83
        %p320 = pneg %p80
        %p321 = pneg %p104
        %p322 = pneg %p101
        %p323 = pneg %p125
        %p324 = pneg %p122
        %p325 = pneg %p146
        %p326 = pneg %p143
        %p327 = pneg %p167
        %p328 = pneg %p164
        %p329 = pneg %p193
        %p330 = pneg %p190
        %s331 = sand.u32 %s180, 1
        %s332 = scalar_lea.sflag [#allocation6], %s331
        %s333 = sand.u32 %s180, 1
        %s334 = smul.addr %s333, 128
        %s335 = scalar_lea.vmem [#allocation16], %s334
        %s336 = smul.u32 2, %s25
        %s337 = ssub.s32 5, %s336
        %p338 = scmp.lt.s32.totalorder %s337, 2
        %s339 = scalar_select %p338, %s337, 2
        %s340 = smul.u32 1024, %s339
        %s341 = smul.u32 %s25, 16
        loop: start=0, step=1, limit=2
        $region73: #{model_forward.1} parent=47 // loop_pre_header
          _
        $region74: #{model_forward.1} parent=47 // loop_header
          %s343 = sphi 0, %s347
          %p344 = scmp.ge.s32.totalorder %s343, 2
        $region75: #{model_forward.1} parent=47 // loop_header_branch
          %346 = sbr.rel (%p344) target = $region79
        $region76: #{model_forward.1} parent=47 // loop_body
          %s348 = smul.u32 %s343, 8
          %s349 = sadd.s32 %s341, %s348
          %p350 = scmp.lt.s32.totalorder %s349, 32
          %s351 = scalar_select %p350, %s349, 32
          %s352 = ssub.s32 %s351, %s341
          %s353 = sadd.s32 %s351, 2
          %s354 = scalar_lea.vmem %s0, %s353
          %v355 = vld [vmem:[%s354] sm:$0xff]
          %v356 = vld [vmem:[%s354 + $0x8] sm:$0x3]
          %vm357 = vcmask 375808
          %358 = vst.msk [vmem:[#allocation2] sm:$0xff] %vm357, %v355
          %vm359 = vcmask 369664
          %360 = vst.msk [vmem:[#allocation2 + $0x8] sm:$0x3] %vm359, %v356
          %s361 = sadd.s32 %s353, 48
          %s362 = scalar_lea.vmem %s0, %s361
          %v363 = vld [vmem:[%s362] sm:$0xff]
          %v364 = vld [vmem:[%s362 + $0x8] sm:$0x3]
          %s365 = scalar_lea.vmem [#allocation2], 16
          %366 = vst.msk [vmem:[%s365] sm:$0xff] %vm357, %v363
          %367 = vst.msk [vmem:[%s365 + $0x8] sm:$0x3] %vm359, %v364
          %s368 = sadd.s32 %s353, 96
          %s369 = scalar_lea.vmem %s0, %s368
          %v370 = vld [vmem:[%s369] sm:$0xff]
          %v371 = vld [vmem:[%s369 + $0x8] sm:$0x3]
          %s372 = scalar_lea.vmem [#allocation2], 32
          %373 = vst.msk [vmem:[%s372] sm:$0xff] %vm357, %v370
          %374 = vst.msk [vmem:[%s372 + $0x8] sm:$0x3] %vm359, %v371
          %v375 = vld [vmem:[#allocation2] sm:$0xff]
          %v376 = vld [vmem:[#allocation2 + $0x8] sm:$0x3]
          %s377 = sld [smem:[#allocation5]]
          %v378 = vstv %s377
          %v379 = vmul.f32 %v375, %v378
          %v380 = vmul.f32 %v376, %v378
          %v381 = vld [vmem:[%s365] sm:$0xff]
          %v382 = vld [vmem:[%s365 + $0x8] sm:$0x3]
          %s383 = sld [smem:[#allocation5 + $0x80]]
          %v384 = vstv %s383
          %v385 = vmul.f32 %v381, %v384
          %v386 = vmul.f32 %v382, %v384
          %v387 = vadd.f32 %v379, %v385
          %v388 = vadd.f32 %v380, %v386
          %v389 = vld [vmem:[%s372] sm:$0xff]
          %v390 = vld [vmem:[%s372 + $0x8] sm:$0x3]
          %s391 = sld [smem:[#allocation5 + $0x100]]
          %v392 = vstv %s391
          %v393 = vmul.f32 %v389, %v392
          %v394 = vmul.f32 %v390, %v392
          %v395 = vadd.f32 %v387, %v393
          %v396 = vadd.f32 %v388, %v394
          %s397 = sld [smem:[#allocation8]]
          %v398 = vstv %s397
          %v399 = vadd.f32 %v395, %v398
          %v400 = vadd.f32 %v396, %v398
          %403 = vrot.lane.b32.xlu0 %v399, 127
          %v404 = vpop.permute.xlu0 %403
          %405 = vrot.lane.b32.xlu0 %v400, 127
          %v406 = vpop.permute.xlu0 %405
          %v409 = vmax.f32 %v399, %v404
          %v410 = vmax.f32 %v400, %v406
          %vm413 = vcmask 1046528
          %v414 = vrot.slane %v409, 1
          %v415 = vrot.slane %v410, 1
          %v416 = vsel %vm413, %v414, %v415
          %v419 = vmax.f32 %v409, %v416
          %v420 = vmax.f32 %v410, %v415
          %v421 = vmax.f32 %v419, 0.0
          %v422 = vmax.f32 %v420, 0.0
          %v423 = vadd.f32 %v399, %v421
          %v424 = vadd.f32 %v400, %v422
          %427 = vrot.lane.b32.xlu0 %v423, 126
          %v428 = vpop.permute.xlu0 %427
          %429 = vrot.lane.b32.xlu0 %v424, 126
          %v430 = vpop.permute.xlu0 %429
          %vm433 = vcmask 334848
          %434 = vst.msk [vmem:[#allocation3] sm:$0xff] %vm433, %v428
          %vm435 = vcmask 327680
          %436 = vst.msk [vmem:[#allocation3 + $0x8] sm:$0x1] %vm435, %v430
          %v437 = vld [vmem:[#allocation2] sm:$0xff]
          %v438 = vld [vmem:[#allocation2 + $0x8] sm:$0x3]
          %s439 = sld [smem:[#allocation5 + $0x1]]
          %v440 = vstv %s439
          %v441 = vmul.f32 %v437, %v440
          %v442 = vmul.f32 %v438, %v440
          %v443 = vld [vmem:[%s365] sm:$0xff]
          %v444 = vld [vmem:[%s365 + $0x8] sm:$0x3]
          %s445 = sld [smem:[#allocation5 + $0x81]]
          %v446 = vstv %s445
          %v447 = vmul.f32 %v443, %v446
          %v448 = vmul.f32 %v444, %v446
          %v449 = vadd.f32 %v441, %v447
          %v450 = vadd.f32 %v442, %v448
          %v451 = vld [vmem:[%s372] sm:$0xff]
          %v452 = vld [vmem:[%s372 + $0x8] sm:$0x3]
          %s453 = sld [smem:[#allocation5 + $0x101]]
          %v454 = vstv %s453
          %v455 = vmul.f32 %v451, %v454
          %v456 = vmul.f32 %v452, %v454
          %v457 = vadd.f32 %v449, %v455
          %v458 = vadd.f32 %v450, %v456
          %s459 = sld [smem:[#allocation8 + $0x1]]
          %v460 = vstv %s459
          %v461 = vadd.f32 %v457, %v460
          %v462 = vadd.f32 %v458, %v460
          %465 = vrot.lane.b32.xlu0 %v461, 127
          %v466 = vpop.permute.xlu0 %465
          %467 = vrot.lane.b32.xlu0 %v462, 127
          %v468 = vpop.permute.xlu0 %467
          %v471 = vmax.f32 %v461, %v466
          %v472 = vmax.f32 %v462, %v468
          %v475 = vrot.slane %v471, 1
          %v476 = vrot.slane %v472, 1
          %v477 = vsel %vm413, %v475, %v476
          %v480 = vmax.f32 %v471, %v477
          %v481 = vmax.f32 %v472, %v476
          %v482 = vmax.f32 %v480, 0.0
          %v483 = vmax.f32 %v481, 0.0
          %v484 = vadd.f32 %v461, %v482
          %v485 = vadd.f32 %v462, %v483
          %488 = vrot.lane.b32.xlu0 %v484, 126
          %v489 = vpop.permute.xlu0 %488
          %490 = vrot.lane.b32.xlu0 %v485, 126
          %v491 = vpop.permute.xlu0 %490
          %s494 = scalar_lea.vmem [#allocation3], 16
          %495 = vst.msk [vmem:[%s494] sm:$0xff] %vm433, %v489
          %496 = vst.msk [vmem:[%s494 + $0x8] sm:$0x1] %vm435, %v491
          %v497 = vld [vmem:[#allocation2] sm:$0xff]
          %v498 = vld [vmem:[#allocation2 + $0x8] sm:$0x3]
          %s499 = sld [smem:[#allocation5 + $0x2]]
          %v500 = vstv %s499
          %v501 = vmul.f32 %v497, %v500
          %v502 = vmul.f32 %v498, %v500
          %v503 = vld [vmem:[%s365] sm:$0xff]
          %v504 = vld [vmem:[%s365 + $0x8] sm:$0x3]
          %s505 = sld [smem:[#allocation5 + $0x82]]
          %v506 = vstv %s505
          %v507 = vmul.f32 %v503, %v506
          %v508 = vmul.f32 %v504, %v506
          %v509 = vadd.f32 %v501, %v507
          %v510 = vadd.f32 %v502, %v508
          %v511 = vld [vmem:[%s372] sm:$0xff]
          %v512 = vld [vmem:[%s372 + $0x8] sm:$0x3]
          %s513 = sld [smem:[#allocation5 + $0x102]]
          %v514 = vstv %s513
          %v515 = vmul.f32 %v511, %v514
          %v516 = vmul.f32 %v512, %v514
          %v517 = vadd.f32 %v509, %v515
          %v518 = vadd.f32 %v510, %v516
          %s519 = sld [smem:[#allocation8 + $0x2]]
          %v520 = vstv %s519
          %v521 = vadd.f32 %v517, %v520
          %v522 = vadd.f32 %v518, %v520
          %525 = vrot.lane.b32.xlu0 %v521, 127
          %v526 = vpop.permute.xlu0 %525
          %527 = vrot.lane.b32.xlu0 %v522, 127
          %v528 = vpop.permute.xlu0 %527
          %v531 = vmax.f32 %v521, %v526
          %v532 = vmax.f32 %v522, %v528
          %v535 = vrot.slane %v531, 1
          %v536 = vrot.slane %v532, 1
          %v537 = vsel %vm413, %v535, %v536
          %v540 = vmax.f32 %v531, %v537
          %v541 = vmax.f32 %v532, %v536
          %v542 = vmax.f32 %v540, 0.0
          %v543 = vmax.f32 %v541, 0.0
          %v544 = vadd.f32 %v521, %v542
          %v545 = vadd.f32 %v522, %v543
          %548 = vrot.lane.b32.xlu0 %v544, 126
          %v549 = vpop.permute.xlu0 %548
          %550 = vrot.lane.b32.xlu0 %v545, 126
          %v551 = vpop.permute.xlu0 %550
          %s554 = scalar_lea.vmem [#allocation3], 32
          %555 = vst.msk [vmem:[%s554] sm:$0xff] %vm433, %v549
          %556 = vst.msk [vmem:[%s554 + $0x8] sm:$0x1] %vm435, %v551
          %v557 = vld [vmem:[#allocation2] sm:$0xff]
          %v558 = vld [vmem:[#allocation2 + $0x8] sm:$0x3]
          %s559 = sld [smem:[#allocation5 + $0x3]]
          %v560 = vstv %s559
          %v561 = vmul.f32 %v557, %v560
          %v562 = vmul.f32 %v558, %v560
          %v563 = vld [vmem:[%s365] sm:$0xff]
          %v564 = vld [vmem:[%s365 + $0x8] sm:$0x3]
          %s565 = sld [smem:[#allocation5 + $0x83]]
          %v566 = vstv %s565
          %v567 = vmul.f32 %v563, %v566
          %v568 = vmul.f32 %v564, %v566
          %v569 = vadd.f32 %v561, %v567
          %v570 = vadd.f32 %v562, %v568
          %v571 = vld [vmem:[%s372] sm:$0xff]
          %v572 = vld [vmem:[%s372 + $0x8] sm:$0x3]
          %s573 = sld [smem:[#allocation5 + $0x103]]
          %v574 = vstv %s573
          %v575 = vmul.f32 %v571, %v574
          %v576 = vmul.f32 %v572, %v574
          %v577 = vadd.f32 %v569, %v575
          %v578 = vadd.f32 %v570, %v576
          %s579 = sld [smem:[#allocation8 + $0x3]]
          %v580 = vstv %s579
          %v581 = vadd.f32 %v577, %v580
          %v582 = vadd.f32 %v578, %v580
          %585 = vrot.lane.b32.xlu0 %v581, 127
          %v586 = vpop.permute.xlu0 %585
          %587 = vrot.lane.b32.xlu0 %v582, 127
          %v588 = vpop.permute.xlu0 %587
          %v591 = vmax.f32 %v581, %v586
          %v592 = vmax.f32 %v582, %v588
          %v595 = vrot.slane %v591, 1
          %v596 = vrot.slane %v592, 1
          %v597 = vsel %vm413, %v595, %v596
          %v600 = vmax.f32 %v591, %v597
          %v601 = vmax.f32 %v592, %v596
          %v602 = vmax.f32 %v600, 0.0
          %v603 = vmax.f32 %v601, 0.0
          %v604 = vadd.f32 %v581, %v602
          %v605 = vadd.f32 %v582, %v603
          %608 = vrot.lane.b32.xlu0 %v604, 126
          %v609 = vpop.permute.xlu0 %608
          %610 = vrot.lane.b32.xlu0 %v605, 126
          %v611 = vpop.permute.xlu0 %610
          %s614 = scalar_lea.vmem [#allocation3], 48
          %615 = vst.msk [vmem:[%s614] sm:$0xff] %vm433, %v609
          %616 = vst.msk [vmem:[%s614 + $0x8] sm:$0x1] %vm435, %v611
          %v617 = vld [vmem:[#allocation2] sm:$0xff]
          %v618 = vld [vmem:[#allocation2 + $0x8] sm:$0x3]
          %s619 = sld [smem:[#allocation5 + $0x4]]
          %v620 = vstv %s619
          %v621 = vmul.f32 %v617, %v620
          %v622 = vmul.f32 %v618, %v620
          %v623 = vld [vmem:[%s365] sm:$0xff]
          %v624 = vld [vmem:[%s365 + $0x8] sm:$0x3]
          %s625 = sld [smem:[#allocation5 + $0x84]]
          %v626 = vstv %s625
          %v627 = vmul.f32 %v623, %v626
          %v628 = vmul.f32 %v624, %v626
          %v629 = vadd.f32 %v621, %v627
          %v630 = vadd.f32 %v622, %v628
          %v631 = vld [vmem:[%s372] sm:$0xff]
          %v632 = vld [vmem:[%s372 + $0x8] sm:$0x3]
          %s633 = sld [smem:[#allocation5 + $0x104]]
          %v634 = vstv %s633
          %v635 = vmul.f32 %v631, %v634
          %v636 = vmul.f32 %v632, %v634
          %v637 = vadd.f32 %v629, %v635
          %v638 = vadd.f32 %v630, %v636
          %s639 = sld [smem:[#allocation8 + $0x4]]
          %v640 = vstv %s639
          %v641 = vadd.f32 %v637, %v640
          %v642 = vadd.f32 %v638, %v640
          %645 = vrot.lane.b32.xlu0 %v641, 127
          %v646 = vpop.permute.xlu0 %645
          %647 = vrot.lane.b32.xlu0 %v642, 127
          %v648 = vpop.permute.xlu0 %647
          %v651 = vmax.f32 %v641, %v646
          %v652 = vmax.f32 %v642, %v648
          %v655 = vrot.slane %v651, 1
          %v656 = vrot.slane %v652, 1
          %v657 = vsel %vm413, %v655, %v656
          %v660 = vmax.f32 %v651, %v657
          %v661 = vmax.f32 %v652, %v656
          %v662 = vmax.f32 %v660, 0.0
          %v663 = vmax.f32 %v661, 0.0
          %v664 = vadd.f32 %v641, %v662
          %v665 = vadd.f32 %v642, %v663
          %668 = vrot.lane.b32.xlu0 %v664, 126
          %v669 = vpop.permute.xlu0 %668
          %670 = vrot.lane.b32.xlu0 %v665, 126
          %v671 = vpop.permute.xlu0 %670
          %s674 = scalar_lea.vmem [#allocation3], 64
          %675 = vst.msk [vmem:[%s674] sm:$0xff] %vm433, %v669
          %676 = vst.msk [vmem:[%s674 + $0x8] sm:$0x1] %vm435, %v671
          %v677 = vld [vmem:[#allocation2] sm:$0xff]
          %v678 = vld [vmem:[#allocation2 + $0x8] sm:$0x3]
          %s679 = sld [smem:[#allocation5 + $0x5]]
          %v680 = vstv %s679
          %v681 = vmul.f32 %v677, %v680
          %v682 = vmul.f32 %v678, %v680
          %v683 = vld [vmem:[%s365] sm:$0xff]
          %v684 = vld [vmem:[%s365 + $0x8] sm:$0x3]
          %s685 = sld [smem:[#allocation5 + $0x85]]
          %v686 = vstv %s685
          %v687 = vmul.f32 %v683, %v686
          %v688 = vmul.f32 %v684, %v686
          %v689 = vadd.f32 %v681, %v687
          %v690 = vadd.f32 %v682, %v688
          %v691 = vld [vmem:[%s372] sm:$0xff]
          %v692 = vld [vmem:[%s372 + $0x8] sm:$0x3]
          %s693 = sld [smem:[#allocation5 + $0x105]]
          %v694 = vstv %s693
          %v695 = vmul.f32 %v691, %v694
          %v696 = vmul.f32 %v692, %v694
          %v697 = vadd.f32 %v689, %v695
          %v698 = vadd.f32 %v690, %v696
          %s699 = sld [smem:[#allocation8 + $0x5]]
          %v700 = vstv %s699
          %v701 = vadd.f32 %v697, %v700
          %v702 = vadd.f32 %v698, %v700
          %705 = vrot.lane.b32.xlu0 %v701, 127
          %v706 = vpop.permute.xlu0 %705
          %707 = vrot.lane.b32.xlu0 %v702, 127
          %v708 = vpop.permute.xlu0 %707
          %v711 = vmax.f32 %v701, %v706
          %v712 = vmax.f32 %v702, %v708
          %v715 = vrot.slane %v711, 1
          %v716 = vrot.slane %v712, 1
          %v717 = vsel %vm413, %v715, %v716
          %v720 = vmax.f32 %v711, %v717
          %v721 = vmax.f32 %v712, %v716
          %v722 = vmax.f32 %v720, 0.0
          %v723 = vmax.f32 %v721, 0.0
          %v724 = vadd.f32 %v701, %v722
          %v725 = vadd.f32 %v702, %v723
          %728 = vrot.lane.b32.xlu0 %v724, 126
          %v729 = vpop.permute.xlu0 %728
          %730 = vrot.lane.b32.xlu0 %v725, 126
          %v731 = vpop.permute.xlu0 %730
          %s734 = scalar_lea.vmem [#allocation3], 80
          %735 = vst.msk [vmem:[%s734] sm:$0xff] %vm433, %v729
          %736 = vst.msk [vmem:[%s734 + $0x8] sm:$0x1] %vm435, %v731
          %v737 = vld [vmem:[#allocation2] sm:$0xff]
          %v738 = vld [vmem:[#allocation2 + $0x8] sm:$0x3]
          %s739 = sld [smem:[#allocation5 + $0x6]]
          %v740 = vstv %s739
          %v741 = vmul.f32 %v737, %v740
          %v742 = vmul.f32 %v738, %v740
          %v743 = vld [vmem:[%s365] sm:$0xff]
          %v744 = vld [vmem:[%s365 + $0x8] sm:$0x3]
          %s745 = sld [smem:[#allocation5 + $0x86]]
          %v746 = vstv %s745
          %v747 = vmul.f32 %v743, %v746
          %v748 = vmul.f32 %v744, %v746
          %v749 = vadd.f32 %v741, %v747
          %v750 = vadd.f32 %v742, %v748
          %v751 = vld [vmem:[%s372] sm:$0xff]
          %v752 = vld [vmem:[%s372 + $0x8] sm:$0x3]
          %s753 = sld [smem:[#allocation5 + $0x106]]
          %v754 = vstv %s753
          %v755 = vmul.f32 %v751, %v754
          %v756 = vmul.f32 %v752, %v754
          %v757 = vadd.f32 %v749, %v755
          %v758 = vadd.f32 %v750, %v756
          %s759 = sld [smem:[#allocation8 + $0x6]]
          %v760 = vstv %s759
          %v761 = vadd.f32 %v757, %v760
          %v762 = vadd.f32 %v758, %v760
          %765 = vrot.lane.b32.xlu0 %v761, 127
          %v766 = vpop.permute.xlu0 %765
          %767 = vrot.lane.b32.xlu0 %v762, 127
          %v768 = vpop.permute.xlu0 %767
          %v771 = vmax.f32 %v761, %v766
          %v772 = vmax.f32 %v762, %v768
          %v775 = vrot.slane %v771, 1
          %v776 = vrot.slane %v772, 1
          %v777 = vsel %vm413, %v775, %v776
          %v780 = vmax.f32 %v771, %v777
          %v781 = vmax.f32 %v772, %v776
          %v782 = vmax.f32 %v780, 0.0
          %v783 = vmax.f32 %v781, 0.0
          %v784 = vadd.f32 %v761, %v782
          %v785 = vadd.f32 %v762, %v783
          %788 = vrot.lane.b32.xlu0 %v784, 126
          %v789 = vpop.permute.xlu0 %788
          %790 = vrot.lane.b32.xlu0 %v785, 126
          %v791 = vpop.permute.xlu0 %790
          %s794 = scalar_lea.vmem [#allocation3], 96
          %795 = vst.msk [vmem:[%s794] sm:$0xff] %vm433, %v789
          %796 = vst.msk [vmem:[%s794 + $0x8] sm:$0x1] %vm435, %v791
          %v797 = vld [vmem:[#allocation2] sm:$0xff]
          %v798 = vld [vmem:[#allocation2 + $0x8] sm:$0x3]
          %s799 = sld [smem:[#allocation5 + $0x7]]
          %v800 = vstv %s799
          %v801 = vmul.f32 %v797, %v800
          %v802 = vmul.f32 %v798, %v800
          %v803 = vld [vmem:[%s365] sm:$0xff]
          %v804 = vld [vmem:[%s365 + $0x8] sm:$0x3]
          %s805 = sld [smem:[#allocation5 + $0x87]]
          %v806 = vstv %s805
          %v807 = vmul.f32 %v803, %v806
          %v808 = vmul.f32 %v804, %v806
          %v809 = vadd.f32 %v801, %v807
          %v810 = vadd.f32 %v802, %v808
          %v811 = vld [vmem:[%s372] sm:$0xff]
          %v812 = vld [vmem:[%s372 + $0x8] sm:$0x3]
          %s813 = sld [smem:[#allocation5 + $0x107]]
          %v814 = vstv %s813
          %v815 = vmul.f32 %v811, %v814
          %v816 = vmul.f32 %v812, %v814
          %v817 = vadd.f32 %v809, %v815
          %v818 = vadd.f32 %v810, %v816
          %s819 = sld [smem:[#allocation8 + $0x7]]
          %v820 = vstv %s819
          %v821 = vadd.f32 %v817, %v820
          %v822 = vadd.f32 %v818, %v820
          %825 = vrot.lane.b32.xlu0 %v821, 127
          %v826 = vpop.permute.xlu0 %825
          %827 = vrot.lane.b32.xlu0 %v822, 127
          %v828 = vpop.permute.xlu0 %827
          %v831 = vmax.f32 %v821, %v826
          %v832 = vmax.f32 %v822, %v828
          %v835 = vrot.slane %v831, 1
          %v836 = vrot.slane %v832, 1
          %v837 = vsel %vm413, %v835, %v836
          %v840 = vmax.f32 %v831, %v837
          %v841 = vmax.f32 %v832, %v836
          %v842 = vmax.f32 %v840, 0.0
          %v843 = vmax.f32 %v841, 0.0
          %v844 = vadd.f32 %v821, %v842
          %v845 = vadd.f32 %v822, %v843
          %848 = vrot.lane.b32.xlu0 %v844, 126
          %v849 = vpop.permute.xlu0 %848
          %850 = vrot.lane.b32.xlu0 %v845, 126
          %v851 = vpop.permute.xlu0 %850
          %s854 = scalar_lea.vmem [#allocation3], 112
          %855 = vst.msk [vmem:[%s854] sm:$0xff] %vm433, %v849
          %856 = vst.msk [vmem:[%s854 + $0x8] sm:$0x1] %vm435, %v851
          %v857 = vld [vmem:[#allocation2] sm:$0xff]
          %v858 = vld [vmem:[#allocation2 + $0x8] sm:$0x3]
          %s859 = sld [smem:[#allocation5 + $0x8]]
          %v860 = vstv %s859
          %v861 = vmul.f32 %v857, %v860
          %v862 = vmul.f32 %v858, %v860
          %v863 = vld [vmem:[%s365] sm:$0xff]
          %v864 = vld [vmem:[%s365 + $0x8] sm:$0x3]
          %s865 = sld [smem:[#allocation5 + $0x88]]
          %v866 = vstv %s865
          %v867 = vmul.f32 %v863, %v866
          %v868 = vmul.f32 %v864, %v866
          %v869 = vadd.f32 %v861, %v867
          %v870 = vadd.f32 %v862, %v868
          %v871 = vld [vmem:[%s372] sm:$0xff]
          %v872 = vld [vmem:[%s372 + $0x8] sm:$0x3]
          %s873 = sld [smem:[#allocation5 + $0x108]]
          %v874 = vstv %s873
          %v875 = vmul.f32 %v871, %v874
          %v876 = vmul.f32 %v872, %v874
          %v877 = vadd.f32 %v869, %v875
          %v878 = vadd.f32 %v870, %v876
          %s879 = sld [smem:[#allocation8 + $0x8]]
          %v880 = vstv %s879
          %v881 = vadd.f32 %v877, %v880
          %v882 = vadd.f32 %v878, %v880
          %885 = vrot.lane.b32.xlu0 %v881, 127
          %v886 = vpop.permute.xlu0 %885
          %887 = vrot.lane.b32.xlu0 %v882, 127
          %v888 = vpop.permute.xlu0 %887
          %v891 = vmax.f32 %v881, %v886
          %v892 = vmax.f32 %v882, %v888
          %v895 = vrot.slane %v891, 1
          %v896 = vrot.slane %v892, 1
          %v897 = vsel %vm413, %v895, %v896
          %v900 = vmax.f32 %v891, %v897
          %v901 = vmax.f32 %v892, %v896
          %v902 = vmax.f32 %v900, 0.0
          %v903 = vmax.f32 %v901, 0.0
          %v904 = vadd.f32 %v881, %v902
          %v905 = vadd.f32 %v882, %v903
          %908 = vrot.lane.b32.xlu0 %v904, 126
          %v909 = vpop.permute.xlu0 %908
          %910 = vrot.lane.b32.xlu0 %v905, 126
          %v911 = vpop.permute.xlu0 %910
          %s914 = scalar_lea.vmem [#allocation3], 128
          %915 = vst.msk [vmem:[%s914] sm:$0xff] %vm433, %v909
          %916 = vst.msk [vmem:[%s914 + $0x8] sm:$0x1] %vm435, %v911
          %v917 = vld [vmem:[#allocation2] sm:$0xff]
          %v918 = vld [vmem:[#allocation2 + $0x8] sm:$0x3]
          %s919 = sld [smem:[#allocation5 + $0x9]]
          %v920 = vstv %s919
          %v921 = vmul.f32 %v917, %v920
          %v922 = vmul.f32 %v918, %v920
          %v923 = vld [vmem:[%s365] sm:$0xff]
          %v924 = vld [vmem:[%s365 + $0x8] sm:$0x3]
          %s925 = sld [smem:[#allocation5 + $0x89]]
          %v926 = vstv %s925
          %v927 = vmul.f32 %v923, %v926
          %v928 = vmul.f32 %v924, %v926
          %v929 = vadd.f32 %v921, %v927
          %v930 = vadd.f32 %v922, %v928
          %v931 = vld [vmem:[%s372] sm:$0xff]
          %v932 = vld [vmem:[%s372 + $0x8] sm:$0x3]
          %s933 = sld [smem:[#allocation5 + $0x109]]
          %v934 = vstv %s933
          %v935 = vmul.f32 %v931, %v934
          %v936 = vmul.f32 %v932, %v934
          %v937 = vadd.f32 %v929, %v935
          %v938 = vadd.f32 %v930, %v936
          %s939 = sld [smem:[#allocation8 + $0x9]]
          %v940 = vstv %s939
          %v941 = vadd.f32 %v937, %v940
          %v942 = vadd.f32 %v938, %v940
          %945 = vrot.lane.b32.xlu0 %v941, 127
          %v946 = vpop.permute.xlu0 %945
          %947 = vrot.lane.b32.xlu0 %v942, 127
          %v948 = vpop.permute.xlu0 %947
          %v951 = vmax.f32 %v941, %v946
          %v952 = vmax.f32 %v942, %v948
          %v955 = vrot.slane %v951, 1
          %v956 = vrot.slane %v952, 1
          %v957 = vsel %vm413, %v955, %v956
          %v960 = vmax.f32 %v951, %v957
          %v961 = vmax.f32 %v952, %v956
          %v962 = vmax.f32 %v960, 0.0
          %v963 = vmax.f32 %v961, 0.0
          %v964 = vadd.f32 %v941, %v962
          %v965 = vadd.f32 %v942, %v963
          %968 = vrot.lane.b32.xlu0 %v964, 126
          %v969 = vpop.permute.xlu0 %968
          %970 = vrot.lane.b32.xlu0 %v965, 126
          %v971 = vpop.permute.xlu0 %970
          %s974 = scalar_lea.vmem [#allocation3], 144
          %975 = vst.msk [vmem:[%s974] sm:$0xff] %vm433, %v969
          %976 = vst.msk [vmem:[%s974 + $0x8] sm:$0x1] %vm435, %v971
          %v977 = vld [vmem:[#allocation2] sm:$0xff]
          %v978 = vld [vmem:[#allocation2 + $0x8] sm:$0x3]
          %s979 = sld [smem:[#allocation5 + $0xa]]
          %v980 = vstv %s979
          %v981 = vmul.f32 %v977, %v980
          %v982 = vmul.f32 %v978, %v980
          %v983 = vld [vmem:[%s365] sm:$0xff]
          %v984 = vld [vmem:[%s365 + $0x8] sm:$0x3]
          %s985 = sld [smem:[#allocation5 + $0x8a]]
          %v986 = vstv %s985
          %v987 = vmul.f32 %v983, %v986
          %v988 = vmul.f32 %v984, %v986
          %v989 = vadd.f32 %v981, %v987
          %v990 = vadd.f32 %v982, %v988
          %v991 = vld [vmem:[%s372] sm:$0xff]
          %v992 = vld [vmem:[%s372 + $0x8] sm:$0x3]
          %s993 = sld [smem:[#allocation5 + $0x10a]]
          %v994 = vstv %s993
          %v995 = vmul.f32 %v991, %v994
          %v996 = vmul.f32 %v992, %v994
          %v997 = vadd.f32 %v989, %v995
          %v998 = vadd.f32 %v990, %v996
          %s999 = sld [smem:[#allocation8 + $0xa]]
          %v1000 = vstv %s999
          %v1001 = vadd.f32 %v997, %v1000
          %v1002 = vadd.f32 %v998, %v1000
          %1005 = vrot.lane.b32.xlu0 %v1001, 127
          %v1006 = vpop.permute.xlu0 %1005
          %1007 = vrot.lane.b32.xlu0 %v1002, 127
          %v1008 = vpop.permute.xlu0 %1007
          %v1011 = vmax.f32 %v1001, %v1006
          %v1012 = vmax.f32 %v1002, %v1008
          %v1015 = vrot.slane %v1011, 1
          %v1016 = vrot.slane %v1012, 1
          %v1017 = vsel %vm413, %v1015, %v1016
          %v1020 = vmax.f32 %v1011, %v1017
          %v1021 = vmax.f32 %v1012, %v1016
          %v1022 = vmax.f32 %v1020, 0.0
          %v1023 = vmax.f32 %v1021, 0.0
          %v1024 = vadd.f32 %v1001, %v1022
          %v1025 = vadd.f32 %v1002, %v1023
          %1028 = vrot.lane.b32.xlu0 %v1024, 126
          %v1029 = vpop.permute.xlu0 %1028
          %1030 = vrot.lane.b32.xlu0 %v1025, 126
          %v1031 = vpop.permute.xlu0 %1030
          %s1034 = scalar_lea.vmem [#allocation3], 160
          %1035 = vst.msk [vmem:[%s1034] sm:$0xff] %vm433, %v1029
          %1036 = vst.msk [vmem:[%s1034 + $0x8] sm:$0x1] %vm435, %v1031
          %v1037 = vld [vmem:[#allocation2] sm:$0xff]
          %v1038 = vld [vmem:[#allocation2 + $0x8] sm:$0x3]
          %s1039 = sld [smem:[#allocation5 + $0xb]]
          %v1040 = vstv %s1039
          %v1041 = vmul.f32 %v1037, %v1040
          %v1042 = vmul.f32 %v1038, %v1040
          %v1043 = vld [vmem:[%s365] sm:$0xff]
          %v1044 = vld [vmem:[%s365 + $0x8] sm:$0x3]
          %s1045 = sld [smem:[#allocation5 + $0x8b]]
          %v1046 = vstv %s1045
          %v1047 = vmul.f32 %v1043, %v1046
          %v1048 = vmul.f32 %v1044, %v1046
          %v1049 = vadd.f32 %v1041, %v1047
          %v1050 = vadd.f32 %v1042, %v1048
          %v1051 = vld [vmem:[%s372] sm:$0xff]
          %v1052 = vld [vmem:[%s372 + $0x8] sm:$0x3]
          %s1053 = sld [smem:[#allocation5 + $0x10b]]
          %v1054 = vstv %s1053
          %v1055 = vmul.f32 %v1051, %v1054
          %v1056 = vmul.f32 %v1052, %v1054
          %v1057 = vadd.f32 %v1049, %v1055
          %v1058 = vadd.f32 %v1050, %v1056
          %s1059 = sld [smem:[#allocation8 + $0xb]]
          %v1060 = vstv %s1059
          %v1061 = vadd.f32 %v1057, %v1060
          %v1062 = vadd.f32 %v1058, %v1060
          %1065 = vrot.lane.b32.xlu0 %v1061, 127
          %v1066 = vpop.permute.xlu0 %1065
          %1067 = vrot.lane.b32.xlu0 %v1062, 127
          %v1068 = vpop.permute.xlu0 %1067
          %v1071 = vmax.f32 %v1061, %v1066
          %v1072 = vmax.f32 %v1062, %v1068
          %v1075 = vrot.slane %v1071, 1
          %v1076 = vrot.slane %v1072, 1
          %v1077 = vsel %vm413, %v1075, %v1076
          %v1080 = vmax.f32 %v1071, %v1077
          %v1081 = vmax.f32 %v1072, %v1076
          %v1082 = vmax.f32 %v1080, 0.0
          %v1083 = vmax.f32 %v1081, 0.0
          %v1084 = vadd.f32 %v1061, %v1082
          %v1085 = vadd.f32 %v1062, %v1083
          %1088 = vrot.lane.b32.xlu0 %v1084, 126
          %v1089 = vpop.permute.xlu0 %1088
          %1090 = vrot.lane.b32.xlu0 %v1085, 126
          %v1091 = vpop.permute.xlu0 %1090
          %s1094 = scalar_lea.vmem [#allocation3], 176
          %1095 = vst.msk [vmem:[%s1094] sm:$0xff] %vm433, %v1089
          %1096 = vst.msk [vmem:[%s1094 + $0x8] sm:$0x1] %vm435, %v1091
          %v1097 = vld [vmem:[#allocation2] sm:$0xff]
          %v1098 = vld [vmem:[#allocation2 + $0x8] sm:$0x3]
          %s1099 = sld [smem:[#allocation5 + $0xc]]
          %v1100 = vstv %s1099
          %v1101 = vmul.f32 %v1097, %v1100
          %v1102 = vmul.f32 %v1098, %v1100
          %v1103 = vld [vmem:[%s365] sm:$0xff]
          %v1104 = vld [vmem:[%s365 + $0x8] sm:$0x3]
          %s1105 = sld [smem:[#allocation5 + $0x8c]]
          %v1106 = vstv %s1105
          %v1107 = vmul.f32 %v1103, %v1106
          %v1108 = vmul.f32 %v1104, %v1106
          %v1109 = vadd.f32 %v1101, %v1107
          %v1110 = vadd.f32 %v1102, %v1108
          %v1111 = vld [vmem:[%s372] sm:$0xff]
          %v1112 = vld [vmem:[%s372 + $0x8] sm:$0x3]
          %s1113 = sld [smem:[#allocation5 + $0x10c]]
          %v1114 = vstv %s1113
          %v1115 = vmul.f32 %v1111, %v1114
          %v1116 = vmul.f32 %v1112, %v1114
          %v1117 = vadd.f32 %v1109, %v1115
          %v1118 = vadd.f32 %v1110, %v1116
          %s1119 = sld [smem:[#allocation8 + $0xc]]
          %v1120 = vstv %s1119
          %v1121 = vadd.f32 %v1117, %v1120
          %v1122 = vadd.f32 %v1118, %v1120
          %1125 = vrot.lane.b32.xlu0 %v1121, 127
          %v1126 = vpop.permute.xlu0 %1125
          %1127 = vrot.lane.b32.xlu0 %v1122, 127
          %v1128 = vpop.permute.xlu0 %1127
          %v1131 = vmax.f32 %v1121, %v1126
          %v1132 = vmax.f32 %v1122, %v1128
          %v1135 = vrot.slane %v1131, 1
          %v1136 = vrot.slane %v1132, 1
          %v1137 = vsel %vm413, %v1135, %v1136
          %v1140 = vmax.f32 %v1131, %v1137
          %v1141 = vmax.f32 %v1132, %v1136
          %v1142 = vmax.f32 %v1140, 0.0
          %v1143 = vmax.f32 %v1141, 0.0
          %v1144 = vadd.f32 %v1121, %v1142
          %v1145 = vadd.f32 %v1122, %v1143
          %1148 = vrot.lane.b32.xlu0 %v1144, 126
          %v1149 = vpop.permute.xlu0 %1148
          %1150 = vrot.lane.b32.xlu0 %v1145, 126
          %v1151 = vpop.permute.xlu0 %1150
          %s1154 = scalar_lea.vmem [#allocation3], 192
          %1155 = vst.msk [vmem:[%s1154] sm:$0xff] %vm433, %v1149
          %1156 = vst.msk [vmem:[%s1154 + $0x8] sm:$0x1] %vm435, %v1151
          %v1157 = vld [vmem:[#allocation2] sm:$0xff]
          %v1158 = vld [vmem:[#allocation2 + $0x8] sm:$0x3]
          %s1159 = sld [smem:[#allocation5 + $0xd]]
          %v1160 = vstv %s1159
          %v1161 = vmul.f32 %v1157, %v1160
          %v1162 = vmul.f32 %v1158, %v1160
          %v1163 = vld [vmem:[%s365] sm:$0xff]
          %v1164 = vld [vmem:[%s365 + $0x8] sm:$0x3]
          %s1165 = sld [smem:[#allocation5 + $0x8d]]
          %v1166 = vstv %s1165
          %v1167 = vmul.f32 %v1163, %v1166
          %v1168 = vmul.f32 %v1164, %v1166
          %v1169 = vadd.f32 %v1161, %v1167
          %v1170 = vadd.f32 %v1162, %v1168
          %v1171 = vld [vmem:[%s372] sm:$0xff]
          %v1172 = vld [vmem:[%s372 + $0x8] sm:$0x3]
          %s1173 = sld [smem:[#allocation5 + $0x10d]]
          %v1174 = vstv %s1173
          %v1175 = vmul.f32 %v1171, %v1174
          %v1176 = vmul.f32 %v1172, %v1174
          %v1177 = vadd.f32 %v1169, %v1175
          %v1178 = vadd.f32 %v1170, %v1176
          %s1179 = sld [smem:[#allocation8 + $0xd]]
          %v1180 = vstv %s1179
          %v1181 = vadd.f32 %v1177, %v1180
          %v1182 = vadd.f32 %v1178, %v1180
          %1185 = vrot.lane.b32.xlu0 %v1181, 127
          %v1186 = vpop.permute.xlu0 %1185
          %1187 = vrot.lane.b32.xlu0 %v1182, 127
          %v1188 = vpop.permute.xlu0 %1187
          %v1191 = vmax.f32 %v1181, %v1186
          %v1192 = vmax.f32 %v1182, %v1188
          %v1195 = vrot.slane %v1191, 1
          %v1196 = vrot.slane %v1192, 1
          %v1197 = vsel %vm413, %v1195, %v1196
          %v1200 = vmax.f32 %v1191, %v1197
          %v1201 = vmax.f32 %v1192, %v1196
          %v1202 = vmax.f32 %v1200, 0.0
          %v1203 = vmax.f32 %v1201, 0.0
          %v1204 = vadd.f32 %v1181, %v1202
          %v1205 = vadd.f32 %v1182, %v1203
          %1208 = vrot.lane.b32.xlu0 %v1204, 126
          %v1209 = vpop.permute.xlu0 %1208
          %1210 = vrot.lane.b32.xlu0 %v1205, 126
          %v1211 = vpop.permute.xlu0 %1210
          %s1214 = scalar_lea.vmem [#allocation3], 208
          %1215 = vst.msk [vmem:[%s1214] sm:$0xff] %vm433, %v1209
          %1216 = vst.msk [vmem:[%s1214 + $0x8] sm:$0x1] %vm435, %v1211
          %v1217 = vld [vmem:[#allocation2] sm:$0xff]
          %v1218 = vld [vmem:[#allocation2 + $0x8] sm:$0x3]
          %s1219 = sld [smem:[#allocation5 + $0xe]]
          %v1220 = vstv %s1219
          %v1221 = vmul.f32 %v1217, %v1220
          %v1222 = vmul.f32 %v1218, %v1220
          %v1223 = vld [vmem:[%s365] sm:$0xff]
          %v1224 = vld [vmem:[%s365 + $0x8] sm:$0x3]
          %s1225 = sld [smem:[#allocation5 + $0x8e]]
          %v1226 = vstv %s1225
          %v1227 = vmul.f32 %v1223, %v1226
          %v1228 = vmul.f32 %v1224, %v1226
          %v1229 = vadd.f32 %v1221, %v1227
          %v1230 = vadd.f32 %v1222, %v1228
          %v1231 = vld [vmem:[%s372] sm:$0xff]
          %v1232 = vld [vmem:[%s372 + $0x8] sm:$0x3]
          %s1233 = sld [smem:[#allocation5 + $0x10e]]
          %v1234 = vstv %s1233
          %v1235 = vmul.f32 %v1231, %v1234
          %v1236 = vmul.f32 %v1232, %v1234
          %v1237 = vadd.f32 %v1229, %v1235
          %v1238 = vadd.f32 %v1230, %v1236
          %s1239 = sld [smem:[#allocation8 + $0xe]]
          %v1240 = vstv %s1239
          %v1241 = vadd.f32 %v1237, %v1240
          %v1242 = vadd.f32 %v1238, %v1240
          %1245 = vrot.lane.b32.xlu0 %v1241, 127
          %v1246 = vpop.permute.xlu0 %1245
          %1247 = vrot.lane.b32.xlu0 %v1242, 127
          %v1248 = vpop.permute.xlu0 %1247
          %v1251 = vmax.f32 %v1241, %v1246
          %v1252 = vmax.f32 %v1242, %v1248
          %v1255 = vrot.slane %v1251, 1
          %v1256 = vrot.slane %v1252, 1
          %v1257 = vsel %vm413, %v1255, %v1256
          %v1260 = vmax.f32 %v1251, %v1257
          %v1261 = vmax.f32 %v1252, %v1256
          %v1262 = vmax.f32 %v1260, 0.0
          %v1263 = vmax.f32 %v1261, 0.0
          %v1264 = vadd.f32 %v1241, %v1262
          %v1265 = vadd.f32 %v1242, %v1263
          %1268 = vrot.lane.b32.xlu0 %v1264, 126
          %v1269 = vpop.permute.xlu0 %1268
          %1270 = vrot.lane.b32.xlu0 %v1265, 126
          %v1271 = vpop.permute.xlu0 %1270
          %s1274 = scalar_lea.vmem [#allocation3], 224
          %1275 = vst.msk [vmem:[%s1274] sm:$0xff] %vm433, %v1269
          %1276 = vst.msk [vmem:[%s1274 + $0x8] sm:$0x1] %vm435, %v1271
          %v1277 = vld [vmem:[#allocation2] sm:$0xff]
          %v1278 = vld [vmem:[#allocation2 + $0x8] sm:$0x3]
          %s1279 = sld [smem:[#allocation5 + $0xf]]
          %v1280 = vstv %s1279
          %v1281 = vmul.f32 %v1277, %v1280
          %v1282 = vmul.f32 %v1278, %v1280
          %v1283 = vld [vmem:[%s365] sm:$0xff]
          %v1284 = vld [vmem:[%s365 + $0x8] sm:$0x3]
          %s1285 = sld [smem:[#allocation5 + $0x8f]]
          %v1286 = vstv %s1285
          %v1287 = vmul.f32 %v1283, %v1286
          %v1288 = vmul.f32 %v1284, %v1286
          %v1289 = vadd.f32 %v1281, %v1287
          %v1290 = vadd.f32 %v1282, %v1288
          %v1291 = vld [vmem:[%s372] sm:$0xff]
          %v1292 = vld [vmem:[%s372 + $0x8] sm:$0x3]
          %s1293 = sld [smem:[#allocation5 + $0x10f]]
          %v1294 = vstv %s1293
          %v1295 = vmul.f32 %v1291, %v1294
          %v1296 = vmul.f32 %v1292, %v1294
          %v1297 = vadd.f32 %v1289, %v1295
          %v1298 = vadd.f32 %v1290, %v1296
          %s1299 = sld [smem:[#allocation8 + $0xf]]
          %v1300 = vstv %s1299
          %v1301 = vadd.f32 %v1297, %v1300
          %v1302 = vadd.f32 %v1298, %v1300
          %1305 = vrot.lane.b32.xlu0 %v1301, 127
          %v1306 = vpop.permute.xlu0 %1305
          %1307 = vrot.lane.b32.xlu0 %v1302, 127
          %v1308 = vpop.permute.xlu0 %1307
          %v1311 = vmax.f32 %v1301, %v1306
          %v1312 = vmax.f32 %v1302, %v1308
          %v1315 = vrot.slane %v1311, 1
          %v1316 = vrot.slane %v1312, 1
          %v1317 = vsel %vm413, %v1315, %v1316
          %v1320 = vmax.f32 %v1311, %v1317
          %v1321 = vmax.f32 %v1312, %v1316
          %v1322 = vmax.f32 %v1320, 0.0
          %v1323 = vmax.f32 %v1321, 0.0
          %v1324 = vadd.f32 %v1301, %v1322
          %v1325 = vadd.f32 %v1302, %v1323
          %1328 = vrot.lane.b32.xlu0 %v1324, 126
          %v1329 = vpop.permute.xlu0 %1328
          %1330 = vrot.lane.b32.xlu0 %v1325, 126
          %v1331 = vpop.permute.xlu0 %1330
          %s1334 = scalar_lea.vmem [#allocation3], 240
          %1335 = vst.msk [vmem:[%s1334] sm:$0xff] %vm433, %v1329
          %1336 = vst.msk [vmem:[%s1334 + $0x8] sm:$0x1] %vm435, %v1331
          %v1337 = vld [vmem:[#allocation3] sm:$0xff]
          %v1338 = vld [vmem:[#allocation3 + $0x8] sm:$0x1]
          %s1339 = sld [smem:[#allocation10]]
          %v1340 = vstv %s1339
          %v1341 = vmul.f32 %v1337, %v1340
          %v1342 = vmul.f32 %v1338, %v1340
          %s1343 = sld [smem:[#allocation11]]
          %v1344 = vstv %s1343
          %v1345 = vadd.f32 %v1341, %v1344
          %v1346 = vadd.f32 %v1342, %v1344
          %s1347 = sld [smem:[#allocation10 + $0x1]]
          %v1348 = vstv %s1347
          %v1349 = vmul.f32 %v1337, %v1348
          %v1350 = vmul.f32 %v1338, %v1348
          %s1351 = sld [smem:[#allocation11 + $0x1]]
          %v1352 = vstv %s1351
          %v1353 = vadd.f32 %v1349, %v1352
          %v1354 = vadd.f32 %v1350, %v1352
          %v1355 = vld [vmem:[%s494] sm:$0xff]
          %v1356 = vld [vmem:[%s494 + $0x8] sm:$0x1]
          %s1357 = sld [smem:[#allocation10 + $0x80]]
          %v1358 = vstv %s1357
          %v1359 = vmul.f32 %v1355, %v1358
          %v1360 = vmul.f32 %v1356, %v1358
          %v1361 = vadd.f32 %v1345, %v1359
          %v1362 = vadd.f32 %v1346, %v1360
          %s1363 = sld [smem:[#allocation10 + $0x81]]
          %v1364 = vstv %s1363
          %v1365 = vmul.f32 %v1355, %v1364
          %v1366 = vmul.f32 %v1356, %v1364
          %v1367 = vadd.f32 %v1353, %v1365
          %v1368 = vadd.f32 %v1354, %v1366
          %v1369 = vld [vmem:[%s554] sm:$0xff]
          %v1370 = vld [vmem:[%s554 + $0x8] sm:$0x1]
          %s1371 = sld [smem:[#allocation10 + $0x100]]
          %v1372 = vstv %s1371
          %v1373 = vmul.f32 %v1369, %v1372
          %v1374 = vmul.f32 %v1370, %v1372
          %v1375 = vadd.f32 %v1361, %v1373
          %v1376 = vadd.f32 %v1362, %v1374
          %s1377 = sld [smem:[#allocation10 + $0x101]]
          %v1378 = vstv %s1377
          %v1379 = vmul.f32 %v1369, %v1378
          %v1380 = vmul.f32 %v1370, %v1378
          %v1381 = vadd.f32 %v1367, %v1379
          %v1382 = vadd.f32 %v1368, %v1380
          %v1383 = vld [vmem:[%s614] sm:$0xff]
          %v1384 = vld [vmem:[%s614 + $0x8] sm:$0x1]
          %s1385 = sld [smem:[#allocation10 + $0x180]]
          %v1386 = vstv %s1385
          %v1387 = vmul.f32 %v1383, %v1386
          %v1388 = vmul.f32 %v1384, %v1386
          %v1389 = vadd.f32 %v1375, %v1387
          %v1390 = vadd.f32 %v1376, %v1388
          %s1391 = sld [smem:[#allocation10 + $0x181]]
          %v1392 = vstv %s1391
          %v1393 = vmul.f32 %v1383, %v1392
          %v1394 = vmul.f32 %v1384, %v1392
          %v1395 = vadd.f32 %v1381, %v1393
          %v1396 = vadd.f32 %v1382, %v1394
          %v1397 = vld [vmem:[%s674] sm:$0xff]
          %v1398 = vld [vmem:[%s674 + $0x8] sm:$0x1]
          %s1399 = sld [smem:[#allocation10 + $0x200]]
          %v1400 = vstv %s1399
          %v1401 = vmul.f32 %v1397, %v1400
          %v1402 = vmul.f32 %v1398, %v1400
          %v1403 = vadd.f32 %v1389, %v1401
          %v1404 = vadd.f32 %v1390, %v1402
          %s1405 = sld [smem:[#allocation10 + $0x201]]
          %v1406 = vstv %s1405
          %v1407 = vmul.f32 %v1397, %v1406
          %v1408 = vmul.f32 %v1398, %v1406
          %v1409 = vadd.f32 %v1395, %v1407
          %v1410 = vadd.f32 %v1396, %v1408
          %v1411 = vld [vmem:[%s734] sm:$0xff]
          %v1412 = vld [vmem:[%s734 + $0x8] sm:$0x1]
          %s1413 = sld [smem:[#allocation10 + $0x280]]
          %v1414 = vstv %s1413
          %v1415 = vmul.f32 %v1411, %v1414
          %v1416 = vmul.f32 %v1412, %v1414
          %v1417 = vadd.f32 %v1403, %v1415
          %v1418 = vadd.f32 %v1404, %v1416
          %s1419 = sld [smem:[#allocation10 + $0x281]]
          %v1420 = vstv %s1419
          %v1421 = vmul.f32 %v1411, %v1420
          %v1422 = vmul.f32 %v1412, %v1420
          %v1423 = vadd.f32 %v1409, %v1421
          %v1424 = vadd.f32 %v1410, %v1422
          %v1425 = vld [vmem:[%s794] sm:$0xff]
          %v1426 = vld [vmem:[%s794 + $0x8] sm:$0x1]
          %s1427 = sld [smem:[#allocation10 + $0x300]]
          %v1428 = vstv %s1427
          %v1429 = vmul.f32 %v1425, %v1428
          %v1430 = vmul.f32 %v1426, %v1428
          %v1431 = vadd.f32 %v1417, %v1429
          %v1432 = vadd.f32 %v1418, %v1430
          %s1433 = sld [smem:[#allocation10 + $0x301]]
          %v1434 = vstv %s1433
          %v1435 = vmul.f32 %v1425, %v1434
          %v1436 = vmul.f32 %v1426, %v1434
          %v1437 = vadd.f32 %v1423, %v1435
          %v1438 = vadd.f32 %v1424, %v1436
          %v1439 = vld [vmem:[%s854] sm:$0xff]
          %v1440 = vld [vmem:[%s854 + $0x8] sm:$0x1]
          %s1441 = sld [smem:[#allocation10 + $0x380]]
          %v1442 = vstv %s1441
          %v1443 = vmul.f32 %v1439, %v1442
          %v1444 = vmul.f32 %v1440, %v1442
          %v1445 = vadd.f32 %v1431, %v1443
          %v1446 = vadd.f32 %v1432, %v1444
          %s1447 = sld [smem:[#allocation10 + $0x381]]
          %v1448 = vstv %s1447
          %v1449 = vmul.f32 %v1439, %v1448
          %v1450 = vmul.f32 %v1440, %v1448
          %v1451 = vadd.f32 %v1437, %v1449
          %v1452 = vadd.f32 %v1438, %v1450
          %v1453 = vld [vmem:[%s914] sm:$0xff]
          %v1454 = vld [vmem:[%s914 + $0x8] sm:$0x1]
          %s1455 = sld [smem:[#allocation10 + $0x400]]
          %v1456 = vstv %s1455
          %v1457 = vmul.f32 %v1453, %v1456
          %v1458 = vmul.f32 %v1454, %v1456
          %v1459 = vadd.f32 %v1445, %v1457
          %v1460 = vadd.f32 %v1446, %v1458
          %s1461 = sld [smem:[#allocation10 + $0x401]]
          %v1462 = vstv %s1461
          %v1463 = vmul.f32 %v1453, %v1462
          %v1464 = vmul.f32 %v1454, %v1462
          %v1465 = vadd.f32 %v1451, %v1463
          %v1466 = vadd.f32 %v1452, %v1464
          %v1467 = vld [vmem:[%s974] sm:$0xff]
          %v1468 = vld [vmem:[%s974 + $0x8] sm:$0x1]
          %s1469 = sld [smem:[#allocation10 + $0x480]]
          %v1470 = vstv %s1469
          %v1471 = vmul.f32 %v1467, %v1470
          %v1472 = vmul.f32 %v1468, %v1470
          %v1473 = vadd.f32 %v1459, %v1471
          %v1474 = vadd.f32 %v1460, %v1472
          %s1475 = sld [smem:[#allocation10 + $0x481]]
          %v1476 = vstv %s1475
          %v1477 = vmul.f32 %v1467, %v1476
          %v1478 = vmul.f32 %v1468, %v1476
          %v1479 = vadd.f32 %v1465, %v1477
          %v1480 = vadd.f32 %v1466, %v1478
          %v1481 = vld [vmem:[%s1034] sm:$0xff]
          %v1482 = vld [vmem:[%s1034 + $0x8] sm:$0x1]
          %s1483 = sld [smem:[#allocation10 + $0x500]]
          %v1484 = vstv %s1483
          %v1485 = vmul.f32 %v1481, %v1484
          %v1486 = vmul.f32 %v1482, %v1484
          %v1487 = vadd.f32 %v1473, %v1485
          %v1488 = vadd.f32 %v1474, %v1486
          %s1489 = sld [smem:[#allocation10 + $0x501]]
          %v1490 = vstv %s1489
          %v1491 = vmul.f32 %v1481, %v1490
          %v1492 = vmul.f32 %v1482, %v1490
          %v1493 = vadd.f32 %v1479, %v1491
          %v1494 = vadd.f32 %v1480, %v1492
          %v1495 = vld [vmem:[%s1094] sm:$0xff]
          %v1496 = vld [vmem:[%s1094 + $0x8] sm:$0x1]
          %s1497 = sld [smem:[#allocation10 + $0x580]]
          %v1498 = vstv %s1497
          %v1499 = vmul.f32 %v1495, %v1498
          %v1500 = vmul.f32 %v1496, %v1498
          %v1501 = vadd.f32 %v1487, %v1499
          %v1502 = vadd.f32 %v1488, %v1500
          %s1503 = sld [smem:[#allocation10 + $0x581]]
          %v1504 = vstv %s1503
          %v1505 = vmul.f32 %v1495, %v1504
          %v1506 = vmul.f32 %v1496, %v1504
          %v1507 = vadd.f32 %v1493, %v1505
          %v1508 = vadd.f32 %v1494, %v1506
          %v1509 = vld [vmem:[%s1154] sm:$0xff]
          %v1510 = vld [vmem:[%s1154 + $0x8] sm:$0x1]
          %s1511 = sld [smem:[#allocation10 + $0x600]]
          %v1512 = vstv %s1511
          %v1513 = vmul.f32 %v1509, %v1512
          %v1514 = vmul.f32 %v1510, %v1512
          %v1515 = vadd.f32 %v1501, %v1513
          %v1516 = vadd.f32 %v1502, %v1514
          %s1517 = sld [smem:[#allocation10 + $0x601]]
          %v1518 = vstv %s1517
          %v1519 = vmul.f32 %v1509, %v1518
          %v1520 = vmul.f32 %v1510, %v1518
          %v1521 = vadd.f32 %v1507, %v1519
          %v1522 = vadd.f32 %v1508, %v1520
          %v1523 = vld [vmem:[%s1214] sm:$0xff]
          %v1524 = vld [vmem:[%s1214 + $0x8] sm:$0x1]
          %s1525 = sld [smem:[#allocation10 + $0x680]]
          %v1526 = vstv %s1525
          %v1527 = vmul.f32 %v1523, %v1526
          %v1528 = vmul.f32 %v1524, %v1526
          %v1529 = vadd.f32 %v1515, %v1527
          %v1530 = vadd.f32 %v1516, %v1528
          %s1531 = sld [smem:[#allocation10 + $0x681]]
          %v1532 = vstv %s1531
          %v1533 = vmul.f32 %v1523, %v1532
          %v1534 = vmul.f32 %v1524, %v1532
          %v1535 = vadd.f32 %v1521, %v1533
          %v1536 = vadd.f32 %v1522, %v1534
          %v1537 = vld [vmem:[%s1274] sm:$0xff]
          %v1538 = vld [vmem:[%s1274 + $0x8] sm:$0x1]
          %s1539 = sld [smem:[#allocation10 + $0x700]]
          %v1540 = vstv %s1539
          %v1541 = vmul.f32 %v1537, %v1540
          %v1542 = vmul.f32 %v1538, %v1540
          %v1543 = vadd.f32 %v1529, %v1541
          %v1544 = vadd.f32 %v1530, %v1542
          %s1545 = sld [smem:[#allocation10 + $0x701]]
          %v1546 = vstv %s1545
          %v1547 = vmul.f32 %v1537, %v1546
          %v1548 = vmul.f32 %v1538, %v1546
          %v1549 = vadd.f32 %v1535, %v1547
          %v1550 = vadd.f32 %v1536, %v1548
          %v1551 = vld [vmem:[%s1334] sm:$0xff]
          %v1552 = vld [vmem:[%s1334 + $0x8] sm:$0x1]
          %s1553 = sld [smem:[#allocation10 + $0x780]]
          %v1554 = vstv %s1553
          %v1555 = vmul.f32 %v1551, %v1554
          %v1556 = vmul.f32 %v1552, %v1554
          %v1557 = vadd.f32 %v1543, %v1555
          %v1558 = vadd.f32 %v1544, %v1556
          %s1559 = sld [smem:[#allocation10 + $0x781]]
          %v1560 = vstv %s1559
          %v1561 = vmul.f32 %v1551, %v1560
          %v1562 = vmul.f32 %v1552, %v1560
          %v1563 = vadd.f32 %v1549, %v1561
          %v1564 = vadd.f32 %v1550, %v1562
          %1567 = vrot.lane.b32.xlu0 %v1557, 127
          %v1568 = vpop.permute.xlu0 %1567
          %1569 = vrot.lane.b32.xlu0 %v1558, 127
          %v1570 = vpop.permute.xlu0 %1569
          %v1573 = vmax.f32 %v1557, %v1568
          %v1574 = vmax.f32 %v1558, %v1570
          %v1577 = vrot.slane %v1573, 1
          %v1578 = vrot.slane %v1574, 1
          %v1579 = vsel %vm413, %v1577, %v1578
          %v1581 = vmax.f32 %v1573, %v1579
          %v1582 = vmax.f32 %v1581, 0.0
          %vm1583 = vcmask 326656
          %1584 = vst.msk [vmem:[#allocation4] sm:$0xff] %vm1583, %v1582
          %1587 = vrot.lane.b32.xlu0 %v1563, 127
          %v1588 = vpop.permute.xlu0 %1587
          %1589 = vrot.lane.b32.xlu0 %v1564, 127
          %v1590 = vpop.permute.xlu0 %1589
          %v1593 = vmax.f32 %v1563, %v1588
          %v1594 = vmax.f32 %v1564, %v1590
          %v1597 = vrot.slane %v1593, 1
          %v1598 = vrot.slane %v1594, 1
          %v1599 = vsel %vm413, %v1597, %v1598
          %v1601 = vmax.f32 %v1593, %v1599
          %v1602 = vmax.f32 %v1601, 0.0
          %s1603 = scalar_lea.vmem [#allocation4], 8
          %1604 = vst.msk [vmem:[%s1603] sm:$0xff] %vm1583, %v1602
          %v1605 = vld [vmem:[#allocation3] sm:$0xff]
          %v1606 = vld [vmem:[#allocation3 + $0x8] sm:$0x1]
          %s1607 = sld [smem:[#allocation10 + $0x2]]
          %v1608 = vstv %s1607
          %v1609 = vmul.f32 %v1605, %v1608
          %v1610 = vmul.f32 %v1606, %v1608
          %s1611 = sld [smem:[#allocation11 + $0x2]]
          %v1612 = vstv %s1611
          %v1613 = vadd.f32 %v1609, %v1612
          %v1614 = vadd.f32 %v1610, %v1612
          %s1615 = sld [smem:[#allocation10 + $0x3]]
          %v1616 = vstv %s1615
          %v1617 = vmul.f32 %v1605, %v1616
          %v1618 = vmul.f32 %v1606, %v1616
          %s1619 = sld [smem:[#allocation11 + $0x3]]
          %v1620 = vstv %s1619
          %v1621 = vadd.f32 %v1617, %v1620
          %v1622 = vadd.f32 %v1618, %v1620
          %v1623 = vld [vmem:[%s494] sm:$0xff]
          %v1624 = vld [vmem:[%s494 + $0x8] sm:$0x1]
          %s1625 = sld [smem:[#allocation10 + $0x82]]
          %v1626 = vstv %s1625
          %v1627 = vmul.f32 %v1623, %v1626
          %v1628 = vmul.f32 %v1624, %v1626
          %v1629 = vadd.f32 %v1613, %v1627
          %v1630 = vadd.f32 %v1614, %v1628
          %s1631 = sld [smem:[#allocation10 + $0x83]]
          %v1632 = vstv %s1631
          %v1633 = vmul.f32 %v1623, %v1632
          %v1634 = vmul.f32 %v1624, %v1632
          %v1635 = vadd.f32 %v1621, %v1633
          %v1636 = vadd.f32 %v1622, %v1634
          %v1637 = vld [vmem:[%s554] sm:$0xff]
          %v1638 = vld [vmem:[%s554 + $0x8] sm:$0x1]
          %s1639 = sld [smem:[#allocation10 + $0x102]]
          %v1640 = vstv %s1639
          %v1641 = vmul.f32 %v1637, %v1640
          %v1642 = vmul.f32 %v1638, %v1640
          %v1643 = vadd.f32 %v1629, %v1641
          %v1644 = vadd.f32 %v1630, %v1642
          %s1645 = sld [smem:[#allocation10 + $0x103]]
          %v1646 = vstv %s1645
          %v1647 = vmul.f32 %v1637, %v1646
          %v1648 = vmul.f32 %v1638, %v1646
          %v1649 = vadd.f32 %v1635, %v1647
          %v1650 = vadd.f32 %v1636, %v1648
          %v1651 = vld [vmem:[%s614] sm:$0xff]
          %v1652 = vld [vmem:[%s614 + $0x8] sm:$0x1]
          %s1653 = sld [smem:[#allocation10 + $0x182]]
          %v1654 = vstv %s1653
          %v1655 = vmul.f32 %v1651, %v1654
          %v1656 = vmul.f32 %v1652, %v1654
          %v1657 = vadd.f32 %v1643, %v1655
          %v1658 = vadd.f32 %v1644, %v1656
          %s1659 = sld [smem:[#allocation10 + $0x183]]
          %v1660 = vstv %s1659
          %v1661 = vmul.f32 %v1651, %v1660
          %v1662 = vmul.f32 %v1652, %v1660
          %v1663 = vadd.f32 %v1649, %v1661
          %v1664 = vadd.f32 %v1650, %v1662
          %v1665 = vld [vmem:[%s674] sm:$0xff]
          %v1666 = vld [vmem:[%s674 + $0x8] sm:$0x1]
          %s1667 = sld [smem:[#allocation10 + $0x202]]
          %v1668 = vstv %s1667
          %v1669 = vmul.f32 %v1665, %v1668
          %v1670 = vmul.f32 %v1666, %v1668
          %v1671 = vadd.f32 %v1657, %v1669
          %v1672 = vadd.f32 %v1658, %v1670
          %s1673 = sld [smem:[#allocation10 + $0x203]]
          %v1674 = vstv %s1673
          %v1675 = vmul.f32 %v1665, %v1674
          %v1676 = vmul.f32 %v1666, %v1674
          %v1677 = vadd.f32 %v1663, %v1675
          %v1678 = vadd.f32 %v1664, %v1676
          %v1679 = vld [vmem:[%s734] sm:$0xff]
          %v1680 = vld [vmem:[%s734 + $0x8] sm:$0x1]
          %s1681 = sld [smem:[#allocation10 + $0x282]]
          %v1682 = vstv %s1681
          %v1683 = vmul.f32 %v1679, %v1682
          %v1684 = vmul.f32 %v1680, %v1682
          %v1685 = vadd.f32 %v1671, %v1683
          %v1686 = vadd.f32 %v1672, %v1684
          %s1687 = sld [smem:[#allocation10 + $0x283]]
          %v1688 = vstv %s1687
          %v1689 = vmul.f32 %v1679, %v1688
          %v1690 = vmul.f32 %v1680, %v1688
          %v1691 = vadd.f32 %v1677, %v1689
          %v1692 = vadd.f32 %v1678, %v1690
          %v1693 = vld [vmem:[%s794] sm:$0xff]
          %v1694 = vld [vmem:[%s794 + $0x8] sm:$0x1]
          %s1695 = sld [smem:[#allocation10 + $0x302]]
          %v1696 = vstv %s1695
          %v1697 = vmul.f32 %v1693, %v1696
          %v1698 = vmul.f32 %v1694, %v1696
          %v1699 = vadd.f32 %v1685, %v1697
          %v1700 = vadd.f32 %v1686, %v1698
          %s1701 = sld [smem:[#allocation10 + $0x303]]
          %v1702 = vstv %s1701
          %v1703 = vmul.f32 %v1693, %v1702
          %v1704 = vmul.f32 %v1694, %v1702
          %v1705 = vadd.f32 %v1691, %v1703
          %v1706 = vadd.f32 %v1692, %v1704
          %v1707 = vld [vmem:[%s854] sm:$0xff]
          %v1708 = vld [vmem:[%s854 + $0x8] sm:$0x1]
          %s1709 = sld [smem:[#allocation10 + $0x382]]
          %v1710 = vstv %s1709
          %v1711 = vmul.f32 %v1707, %v1710
          %v1712 = vmul.f32 %v1708, %v1710
          %v1713 = vadd.f32 %v1699, %v1711
          %v1714 = vadd.f32 %v1700, %v1712
          %s1715 = sld [smem:[#allocation10 + $0x383]]
          %v1716 = vstv %s1715
          %v1717 = vmul.f32 %v1707, %v1716
          %v1718 = vmul.f32 %v1708, %v1716
          %v1719 = vadd.f32 %v1705, %v1717
          %v1720 = vadd.f32 %v1706, %v1718
          %v1721 = vld [vmem:[%s914] sm:$0xff]
          %v1722 = vld [vmem:[%s914 + $0x8] sm:$0x1]
          %s1723 = sld [smem:[#allocation10 + $0x402]]
          %v1724 = vstv %s1723
          %v1725 = vmul.f32 %v1721, %v1724
          %v1726 = vmul.f32 %v1722, %v1724
          %v1727 = vadd.f32 %v1713, %v1725
          %v1728 = vadd.f32 %v1714, %v1726
          %s1729 = sld [smem:[#allocation10 + $0x403]]
          %v1730 = vstv %s1729
          %v1731 = vmul.f32 %v1721, %v1730
          %v1732 = vmul.f32 %v1722, %v1730
          %v1733 = vadd.f32 %v1719, %v1731
          %v1734 = vadd.f32 %v1720, %v1732
          %v1735 = vld [vmem:[%s974] sm:$0xff]
          %v1736 = vld [vmem:[%s974 + $0x8] sm:$0x1]
          %s1737 = sld [smem:[#allocation10 + $0x482]]
          %v1738 = vstv %s1737
          %v1739 = vmul.f32 %v1735, %v1738
          %v1740 = vmul.f32 %v1736, %v1738
          %v1741 = vadd.f32 %v1727, %v1739
          %v1742 = vadd.f32 %v1728, %v1740
          %s1743 = sld [smem:[#allocation10 + $0x483]]
          %v1744 = vstv %s1743
          %v1745 = vmul.f32 %v1735, %v1744
          %v1746 = vmul.f32 %v1736, %v1744
          %v1747 = vadd.f32 %v1733, %v1745
          %v1748 = vadd.f32 %v1734, %v1746
          %v1749 = vld [vmem:[%s1034] sm:$0xff]
          %v1750 = vld [vmem:[%s1034 + $0x8] sm:$0x1]
          %s1751 = sld [smem:[#allocation10 + $0x502]]
          %v1752 = vstv %s1751
          %v1753 = vmul.f32 %v1749, %v1752
          %v1754 = vmul.f32 %v1750, %v1752
          %v1755 = vadd.f32 %v1741, %v1753
          %v1756 = vadd.f32 %v1742, %v1754
          %s1757 = sld [smem:[#allocation10 + $0x503]]
          %v1758 = vstv %s1757
          %v1759 = vmul.f32 %v1749, %v1758
          %v1760 = vmul.f32 %v1750, %v1758
          %v1761 = vadd.f32 %v1747, %v1759
          %v1762 = vadd.f32 %v1748, %v1760
          %v1763 = vld [vmem:[%s1094] sm:$0xff]
          %v1764 = vld [vmem:[%s1094 + $0x8] sm:$0x1]
          %s1765 = sld [smem:[#allocation10 + $0x582]]
          %v1766 = vstv %s1765
          %v1767 = vmul.f32 %v1763, %v1766
          %v1768 = vmul.f32 %v1764, %v1766
          %v1769 = vadd.f32 %v1755, %v1767
          %v1770 = vadd.f32 %v1756, %v1768
          %s1771 = sld [smem:[#allocation10 + $0x583]]
          %v1772 = vstv %s1771
          %v1773 = vmul.f32 %v1763, %v1772
          %v1774 = vmul.f32 %v1764, %v1772
          %v1775 = vadd.f32 %v1761, %v1773
          %v1776 = vadd.f32 %v1762, %v1774
          %v1777 = vld [vmem:[%s1154] sm:$0xff]
          %v1778 = vld [vmem:[%s1154 + $0x8] sm:$0x1]
          %s1779 = sld [smem:[#allocation10 + $0x602]]
          %v1780 = vstv %s1779
          %v1781 = vmul.f32 %v1777, %v1780
          %v1782 = vmul.f32 %v1778, %v1780
          %v1783 = vadd.f32 %v1769, %v1781
          %v1784 = vadd.f32 %v1770, %v1782
          %s1785 = sld [smem:[#allocation10 + $0x603]]
          %v1786 = vstv %s1785
          %v1787 = vmul.f32 %v1777, %v1786
          %v1788 = vmul.f32 %v1778, %v1786
          %v1789 = vadd.f32 %v1775, %v1787
          %v1790 = vadd.f32 %v1776, %v1788
          %v1791 = vld [vmem:[%s1214] sm:$0xff]
          %v1792 = vld [vmem:[%s1214 + $0x8] sm:$0x1]
          %s1793 = sld [smem:[#allocation10 + $0x682]]
          %v1794 = vstv %s1793
          %v1795 = vmul.f32 %v1791, %v1794
          %v1796 = vmul.f32 %v1792, %v1794
          %v1797 = vadd.f32 %v1783, %v1795
          %v1798 = vadd.f32 %v1784, %v1796
          %s1799 = sld [smem:[#allocation10 + $0x683]]
          %v1800 = vstv %s1799
          %v1801 = vmul.f32 %v1791, %v1800
          %v1802 = vmul.f32 %v1792, %v1800
          %v1803 = vadd.f32 %v1789, %v1801
          %v1804 = vadd.f32 %v1790, %v1802
          %v1805 = vld [vmem:[%s1274] sm:$0xff]
          %v1806 = vld [vmem:[%s1274 + $0x8] sm:$0x1]
          %s1807 = sld [smem:[#allocation10 + $0x702]]
          %v1808 = vstv %s1807
          %v1809 = vmul.f32 %v1805, %v1808
          %v1810 = vmul.f32 %v1806, %v1808
          %v1811 = vadd.f32 %v1797, %v1809
          %v1812 = vadd.f32 %v1798, %v1810
          %s1813 = sld [smem:[#allocation10 + $0x703]]
          %v1814 = vstv %s1813
          %v1815 = vmul.f32 %v1805, %v1814
          %v1816 = vmul.f32 %v1806, %v1814
          %v1817 = vadd.f32 %v1803, %v1815
          %v1818 = vadd.f32 %v1804, %v1816
          %v1819 = vld [vmem:[%s1334] sm:$0xff]
          %v1820 = vld [vmem:[%s1334 + $0x8] sm:$0x1]
          %s1821 = sld [smem:[#allocation10 + $0x782]]
          %v1822 = vstv %s1821
          %v1823 = vmul.f32 %v1819, %v1822
          %v1824 = vmul.f32 %v1820, %v1822
          %v1825 = vadd.f32 %v1811, %v1823
          %v1826 = vadd.f32 %v1812, %v1824
          %s1827 = sld [smem:[#allocation10 + $0x783]]
          %v1828 = vstv %s1827
          %v1829 = vmul.f32 %v1819, %v1828
          %v1830 = vmul.f32 %v1820, %v1828
          %v1831 = vadd.f32 %v1817, %v1829
          %v1832 = vadd.f32 %v1818, %v1830
          %1835 = vrot.lane.b32.xlu0 %v1825, 127
          %v1836 = vpop.permute.xlu0 %1835
          %1837 = vrot.lane.b32.xlu0 %v1826, 127
          %v1838 = vpop.permute.xlu0 %1837
          %v1841 = vmax.f32 %v1825, %v1836
          %v1842 = vmax.f32 %v1826, %v1838
          %v1845 = vrot.slane %v1841, 1
          %v1846 = vrot.slane %v1842, 1
          %v1847 = vsel %vm413, %v1845, %v1846
          %v1849 = vmax.f32 %v1841, %v1847
          %v1850 = vmax.f32 %v1849, 0.0
          %s1851 = scalar_lea.vmem [#allocation4], 16
          %1852 = vst.msk [vmem:[%s1851] sm:$0xff] %vm1583, %v1850
          %1855 = vrot.lane.b32.xlu0 %v1831, 127
          %v1856 = vpop.permute.xlu0 %1855
          %1857 = vrot.lane.b32.xlu0 %v1832, 127
          %v1858 = vpop.permute.xlu0 %1857
          %v1861 = vmax.f32 %v1831, %v1856
          %v1862 = vmax.f32 %v1832, %v1858
          %v1865 = vrot.slane %v1861, 1
          %v1866 = vrot.slane %v1862, 1
          %v1867 = vsel %vm413, %v1865, %v1866
          %v1869 = vmax.f32 %v1861, %v1867
          %v1870 = vmax.f32 %v1869, 0.0
          %s1871 = scalar_lea.vmem [#allocation4], 24
          %1872 = vst.msk [vmem:[%s1871] sm:$0xff] %vm1583, %v1870
          %v1873 = vld [vmem:[#allocation3] sm:$0xff]
          %v1874 = vld [vmem:[#allocation3 + $0x8] sm:$0x1]
          %s1875 = sld [smem:[#allocation10 + $0x4]]
          %v1876 = vstv %s1875
          %v1877 = vmul.f32 %v1873, %v1876
          %v1878 = vmul.f32 %v1874, %v1876
          %s1879 = sld [smem:[#allocation11 + $0x4]]
          %v1880 = vstv %s1879
          %v1881 = vadd.f32 %v1877, %v1880
          %v1882 = vadd.f32 %v1878, %v1880
          %s1883 = sld [smem:[#allocation10 + $0x5]]
          %v1884 = vstv %s1883
          %v1885 = vmul.f32 %v1873, %v1884
          %v1886 = vmul.f32 %v1874, %v1884
          %s1887 = sld [smem:[#allocation11 + $0x5]]
          %v1888 = vstv %s1887
          %v1889 = vadd.f32 %v1885, %v1888
          %v1890 = vadd.f32 %v1886, %v1888
          %v1891 = vld [vmem:[%s494] sm:$0xff]
          %v1892 = vld [vmem:[%s494 + $0x8] sm:$0x1]
          %s1893 = sld [smem:[#allocation10 + $0x84]]
          %v1894 = vstv %s1893
          %v1895 = vmul.f32 %v1891, %v1894
          %v1896 = vmul.f32 %v1892, %v1894
          %v1897 = vadd.f32 %v1881, %v1895
          %v1898 = vadd.f32 %v1882, %v1896
          %s1899 = sld [smem:[#allocation10 + $0x85]]
          %v1900 = vstv %s1899
          %v1901 = vmul.f32 %v1891, %v1900
          %v1902 = vmul.f32 %v1892, %v1900
          %v1903 = vadd.f32 %v1889, %v1901
          %v1904 = vadd.f32 %v1890, %v1902
          %v1905 = vld [vmem:[%s554] sm:$0xff]
          %v1906 = vld [vmem:[%s554 + $0x8] sm:$0x1]
          %s1907 = sld [smem:[#allocation10 + $0x104]]
          %v1908 = vstv %s1907
          %v1909 = vmul.f32 %v1905, %v1908
          %v1910 = vmul.f32 %v1906, %v1908
          %v1911 = vadd.f32 %v1897, %v1909
          %v1912 = vadd.f32 %v1898, %v1910
          %s1913 = sld [smem:[#allocation10 + $0x105]]
          %v1914 = vstv %s1913
          %v1915 = vmul.f32 %v1905, %v1914
          %v1916 = vmul.f32 %v1906, %v1914
          %v1917 = vadd.f32 %v1903, %v1915
          %v1918 = vadd.f32 %v1904, %v1916
          %v1919 = vld [vmem:[%s614] sm:$0xff]
          %v1920 = vld [vmem:[%s614 + $0x8] sm:$0x1]
          %s1921 = sld [smem:[#allocation10 + $0x184]]
          %v1922 = vstv %s1921
          %v1923 = vmul.f32 %v1919, %v1922
          %v1924 = vmul.f32 %v1920, %v1922
          %v1925 = vadd.f32 %v1911, %v1923
          %v1926 = vadd.f32 %v1912, %v1924
          %s1927 = sld [smem:[#allocation10 + $0x185]]
          %v1928 = vstv %s1927
          %v1929 = vmul.f32 %v1919, %v1928
          %v1930 = vmul.f32 %v1920, %v1928
          %v1931 = vadd.f32 %v1917, %v1929
          %v1932 = vadd.f32 %v1918, %v1930
          %v1933 = vld [vmem:[%s674] sm:$0xff]
          %v1934 = vld [vmem:[%s674 + $0x8] sm:$0x1]
          %s1935 = sld [smem:[#allocation10 + $0x204]]
          %v1936 = vstv %s1935
          %v1937 = vmul.f32 %v1933, %v1936
          %v1938 = vmul.f32 %v1934, %v1936
          %v1939 = vadd.f32 %v1925, %v1937
          %v1940 = vadd.f32 %v1926, %v1938
          %s1941 = sld [smem:[#allocation10 + $0x205]]
          %v1942 = vstv %s1941
          %v1943 = vmul.f32 %v1933, %v1942
          %v1944 = vmul.f32 %v1934, %v1942
          %v1945 = vadd.f32 %v1931, %v1943
          %v1946 = vadd.f32 %v1932, %v1944
          %v1947 = vld [vmem:[%s734] sm:$0xff]
          %v1948 = vld [vmem:[%s734 + $0x8] sm:$0x1]
          %s1949 = sld [smem:[#allocation10 + $0x284]]
          %v1950 = vstv %s1949
          %v1951 = vmul.f32 %v1947, %v1950
          %v1952 = vmul.f32 %v1948, %v1950
          %v1953 = vadd.f32 %v1939, %v1951
          %v1954 = vadd.f32 %v1940, %v1952
          %s1955 = sld [smem:[#allocation10 + $0x285]]
          %v1956 = vstv %s1955
          %v1957 = vmul.f32 %v1947, %v1956
          %v1958 = vmul.f32 %v1948, %v1956
          %v1959 = vadd.f32 %v1945, %v1957
          %v1960 = vadd.f32 %v1946, %v1958
          %v1961 = vld [vmem:[%s794] sm:$0xff]
          %v1962 = vld [vmem:[%s794 + $0x8] sm:$0x1]
          %s1963 = sld [smem:[#allocation10 + $0x304]]
          %v1964 = vstv %s1963
          %v1965 = vmul.f32 %v1961, %v1964
          %v1966 = vmul.f32 %v1962, %v1964
          %v1967 = vadd.f32 %v1953, %v1965
          %v1968 = vadd.f32 %v1954, %v1966
          %s1969 = sld [smem:[#allocation10 + $0x305]]
          %v1970 = vstv %s1969
          %v1971 = vmul.f32 %v1961, %v1970
          %v1972 = vmul.f32 %v1962, %v1970
          %v1973 = vadd.f32 %v1959, %v1971
          %v1974 = vadd.f32 %v1960, %v1972
          %v1975 = vld [vmem:[%s854] sm:$0xff]
          %v1976 = vld [vmem:[%s854 + $0x8] sm:$0x1]
          %s1977 = sld [smem:[#allocation10 + $0x384]]
          %v1978 = vstv %s1977
          %v1979 = vmul.f32 %v1975, %v1978
          %v1980 = vmul.f32 %v1976, %v1978
          %v1981 = vadd.f32 %v1967, %v1979
          %v1982 = vadd.f32 %v1968, %v1980
          %s1983 = sld [smem:[#allocation10 + $0x385]]
          %v1984 = vstv %s1983
          %v1985 = vmul.f32 %v1975, %v1984
          %v1986 = vmul.f32 %v1976, %v1984
          %v1987 = vadd.f32 %v1973, %v1985
          %v1988 = vadd.f32 %v1974, %v1986
          %v1989 = vld [vmem:[%s914] sm:$0xff]
          %v1990 = vld [vmem:[%s914 + $0x8] sm:$0x1]
          %s1991 = sld [smem:[#allocation10 + $0x404]]
          %v1992 = vstv %s1991
          %v1993 = vmul.f32 %v1989, %v1992
          %v1994 = vmul.f32 %v1990, %v1992
          %v1995 = vadd.f32 %v1981, %v1993
          %v1996 = vadd.f32 %v1982, %v1994
          %s1997 = sld [smem:[#allocation10 + $0x405]]
          %v1998 = vstv %s1997
          %v1999 = vmul.f32 %v1989, %v1998
          %v2000 = vmul.f32 %v1990, %v1998
          %v2001 = vadd.f32 %v1987, %v1999
          %v2002 = vadd.f32 %v1988, %v2000
          %v2003 = vld [vmem:[%s974] sm:$0xff]
          %v2004 = vld [vmem:[%s974 + $0x8] sm:$0x1]
          %s2005 = sld [smem:[#allocation10 + $0x484]]
          %v2006 = vstv %s2005
          %v2007 = vmul.f32 %v2003, %v2006
          %v2008 = vmul.f32 %v2004, %v2006
          %v2009 = vadd.f32 %v1995, %v2007
          %v2010 = vadd.f32 %v1996, %v2008
          %s2011 = sld [smem:[#allocation10 + $0x485]]
          %v2012 = vstv %s2011
          %v2013 = vmul.f32 %v2003, %v2012
          %v2014 = vmul.f32 %v2004, %v2012
          %v2015 = vadd.f32 %v2001, %v2013
          %v2016 = vadd.f32 %v2002, %v2014
          %v2017 = vld [vmem:[%s1034] sm:$0xff]
          %v2018 = vld [vmem:[%s1034 + $0x8] sm:$0x1]
          %s2019 = sld [smem:[#allocation10 + $0x504]]
          %v2020 = vstv %s2019
          %v2021 = vmul.f32 %v2017, %v2020
          %v2022 = vmul.f32 %v2018, %v2020
          %v2023 = vadd.f32 %v2009, %v2021
          %v2024 = vadd.f32 %v2010, %v2022
          %s2025 = sld [smem:[#allocation10 + $0x505]]
          %v2026 = vstv %s2025
          %v2027 = vmul.f32 %v2017, %v2026
          %v2028 = vmul.f32 %v2018, %v2026
          %v2029 = vadd.f32 %v2015, %v2027
          %v2030 = vadd.f32 %v2016, %v2028
          %v2031 = vld [vmem:[%s1094] sm:$0xff]
          %v2032 = vld [vmem:[%s1094 + $0x8] sm:$0x1]
          %s2033 = sld [smem:[#allocation10 + $0x584]]
          %v2034 = vstv %s2033
          %v2035 = vmul.f32 %v2031, %v2034
          %v2036 = vmul.f32 %v2032, %v2034
          %v2037 = vadd.f32 %v2023, %v2035
          %v2038 = vadd.f32 %v2024, %v2036
          %s2039 = sld [smem:[#allocation10 + $0x585]]
          %v2040 = vstv %s2039
          %v2041 = vmul.f32 %v2031, %v2040
          %v2042 = vmul.f32 %v2032, %v2040
          %v2043 = vadd.f32 %v2029, %v2041
          %v2044 = vadd.f32 %v2030, %v2042
          %v2045 = vld [vmem:[%s1154] sm:$0xff]
          %v2046 = vld [vmem:[%s1154 + $0x8] sm:$0x1]
          %s2047 = sld [smem:[#allocation10 + $0x604]]
          %v2048 = vstv %s2047
          %v2049 = vmul.f32 %v2045, %v2048
          %v2050 = vmul.f32 %v2046, %v2048
          %v2051 = vadd.f32 %v2037, %v2049
          %v2052 = vadd.f32 %v2038, %v2050
          %s2053 = sld [smem:[#allocation10 + $0x605]]
          %v2054 = vstv %s2053
          %v2055 = vmul.f32 %v2045, %v2054
          %v2056 = vmul.f32 %v2046, %v2054
          %v2057 = vadd.f32 %v2043, %v2055
          %v2058 = vadd.f32 %v2044, %v2056
          %v2059 = vld [vmem:[%s1214] sm:$0xff]
          %v2060 = vld [vmem:[%s1214 + $0x8] sm:$0x1]
          %s2061 = sld [smem:[#allocation10 + $0x684]]
          %v2062 = vstv %s2061
          %v2063 = vmul.f32 %v2059, %v2062
          %v2064 = vmul.f32 %v2060, %v2062
          %v2065 = vadd.f32 %v2051, %v2063
          %v2066 = vadd.f32 %v2052, %v2064
          %s2067 = sld [smem:[#allocation10 + $0x685]]
          %v2068 = vstv %s2067
          %v2069 = vmul.f32 %v2059, %v2068
          %v2070 = vmul.f32 %v2060, %v2068
          %v2071 = vadd.f32 %v2057, %v2069
          %v2072 = vadd.f32 %v2058, %v2070
          %v2073 = vld [vmem:[%s1274] sm:$0xff]
          %v2074 = vld [vmem:[%s1274 + $0x8] sm:$0x1]
          %s2075 = sld [smem:[#allocation10 + $0x704]]
          %v2076 = vstv %s2075
          %v2077 = vmul.f32 %v2073, %v2076
          %v2078 = vmul.f32 %v2074, %v2076
          %v2079 = vadd.f32 %v2065, %v2077
          %v2080 = vadd.f32 %v2066, %v2078
          %s2081 = sld [smem:[#allocation10 + $0x705]]
          %v2082 = vstv %s2081
          %v2083 = vmul.f32 %v2073, %v2082
          %v2084 = vmul.f32 %v2074, %v2082
          %v2085 = vadd.f32 %v2071, %v2083
          %v2086 = vadd.f32 %v2072, %v2084
          %v2087 = vld [vmem:[%s1334] sm:$0xff]
          %v2088 = vld [vmem:[%s1334 + $0x8] sm:$0x1]
          %s2089 = sld [smem:[#allocation10 + $0x784]]
          %v2090 = vstv %s2089
          %v2091 = vmul.f32 %v2087, %v2090
          %v2092 = vmul.f32 %v2088, %v2090
          %v2093 = vadd.f32 %v2079, %v2091
          %v2094 = vadd.f32 %v2080, %v2092
          %s2095 = sld [smem:[#allocation10 + $0x785]]
          %v2096 = vstv %s2095
          %v2097 = vmul.f32 %v2087, %v2096
          %v2098 = vmul.f32 %v2088, %v2096
          %v2099 = vadd.f32 %v2085, %v2097
          %v2100 = vadd.f32 %v2086, %v2098
          %2103 = vrot.lane.b32.xlu0 %v2093, 127
          %v2104 = vpop.permute.xlu0 %2103
          %2105 = vrot.lane.b32.xlu0 %v2094, 127
          %v2106 = vpop.permute.xlu0 %2105
          %v2109 = vmax.f32 %v2093, %v2104
          %v2110 = vmax.f32 %v2094, %v2106
          %v2113 = vrot.slane %v2109, 1
          %v2114 = vrot.slane %v2110, 1
          %v2115 = vsel %vm413, %v2113, %v2114
          %v2117 = vmax.f32 %v2109, %v2115
          %v2118 = vmax.f32 %v2117, 0.0
          %s2119 = scalar_lea.vmem [#allocation4], 32
          %2120 = vst.msk [vmem:[%s2119] sm:$0xff] %vm1583, %v2118
          %2123 = vrot.lane.b32.xlu0 %v2099, 127
          %v2124 = vpop.permute.xlu0 %2123
          %2125 = vrot.lane.b32.xlu0 %v2100, 127
          %v2126 = vpop.permute.xlu0 %2125
          %v2129 = vmax.f32 %v2099, %v2124
          %v2130 = vmax.f32 %v2100, %v2126
          %v2133 = vrot.slane %v2129, 1
          %v2134 = vrot.slane %v2130, 1
          %v2135 = vsel %vm413, %v2133, %v2134
          %v2137 = vmax.f32 %v2129, %v2135
          %v2138 = vmax.f32 %v2137, 0.0
          %s2139 = scalar_lea.vmem [#allocation4], 40
          %2140 = vst.msk [vmem:[%s2139] sm:$0xff] %vm1583, %v2138
          %v2141 = vld [vmem:[#allocation3] sm:$0xff]
          %v2142 = vld [vmem:[#allocation3 + $0x8] sm:$0x1]
          %s2143 = sld [smem:[#allocation10 + $0x6]]
          %v2144 = vstv %s2143
          %v2145 = vmul.f32 %v2141, %v2144
          %v2146 = vmul.f32 %v2142, %v2144
          %s2147 = sld [smem:[#allocation11 + $0x6]]
          %v2148 = vstv %s2147
          %v2149 = vadd.f32 %v2145, %v2148
          %v2150 = vadd.f32 %v2146, %v2148
          %s2151 = sld [smem:[#allocation10 + $0x7]]
          %v2152 = vstv %s2151
          %v2153 = vmul.f32 %v2141, %v2152
          %v2154 = vmul.f32 %v2142, %v2152
          %s2155 = sld [smem:[#allocation11 + $0x7]]
          %v2156 = vstv %s2155
          %v2157 = vadd.f32 %v2153, %v2156
          %v2158 = vadd.f32 %v2154, %v2156
          %v2159 = vld [vmem:[%s494] sm:$0xff]
          %v2160 = vld [vmem:[%s494 + $0x8] sm:$0x1]
          %s2161 = sld [smem:[#allocation10 + $0x86]]
          %v2162 = vstv %s2161
          %v2163 = vmul.f32 %v2159, %v2162
          %v2164 = vmul.f32 %v2160, %v2162
          %v2165 = vadd.f32 %v2149, %v2163
          %v2166 = vadd.f32 %v2150, %v2164
          %s2167 = sld [smem:[#allocation10 + $0x87]]
          %v2168 = vstv %s2167
          %v2169 = vmul.f32 %v2159, %v2168
          %v2170 = vmul.f32 %v2160, %v2168
          %v2171 = vadd.f32 %v2157, %v2169
          %v2172 = vadd.f32 %v2158, %v2170
          %v2173 = vld [vmem:[%s554] sm:$0xff]
          %v2174 = vld [vmem:[%s554 + $0x8] sm:$0x1]
          %s2175 = sld [smem:[#allocation10 + $0x106]]
          %v2176 = vstv %s2175
          %v2177 = vmul.f32 %v2173, %v2176
          %v2178 = vmul.f32 %v2174, %v2176
          %v2179 = vadd.f32 %v2165, %v2177
          %v2180 = vadd.f32 %v2166, %v2178
          %s2181 = sld [smem:[#allocation10 + $0x107]]
          %v2182 = vstv %s2181
          %v2183 = vmul.f32 %v2173, %v2182
          %v2184 = vmul.f32 %v2174, %v2182
          %v2185 = vadd.f32 %v2171, %v2183
          %v2186 = vadd.f32 %v2172, %v2184
          %v2187 = vld [vmem:[%s614] sm:$0xff]
          %v2188 = vld [vmem:[%s614 + $0x8] sm:$0x1]
          %s2189 = sld [smem:[#allocation10 + $0x186]]
          %v2190 = vstv %s2189
          %v2191 = vmul.f32 %v2187, %v2190
          %v2192 = vmul.f32 %v2188, %v2190
          %v2193 = vadd.f32 %v2179, %v2191
          %v2194 = vadd.f32 %v2180, %v2192
          %s2195 = sld [smem:[#allocation10 + $0x187]]
          %v2196 = vstv %s2195
          %v2197 = vmul.f32 %v2187, %v2196
          %v2198 = vmul.f32 %v2188, %v2196
          %v2199 = vadd.f32 %v2185, %v2197
          %v2200 = vadd.f32 %v2186, %v2198
          %v2201 = vld [vmem:[%s674] sm:$0xff]
          %v2202 = vld [vmem:[%s674 + $0x8] sm:$0x1]
          %s2203 = sld [smem:[#allocation10 + $0x206]]
          %v2204 = vstv %s2203
          %v2205 = vmul.f32 %v2201, %v2204
          %v2206 = vmul.f32 %v2202, %v2204
          %v2207 = vadd.f32 %v2193, %v2205
          %v2208 = vadd.f32 %v2194, %v2206
          %s2209 = sld [smem:[#allocation10 + $0x207]]
          %v2210 = vstv %s2209
          %v2211 = vmul.f32 %v2201, %v2210
          %v2212 = vmul.f32 %v2202, %v2210
          %v2213 = vadd.f32 %v2199, %v2211
          %v2214 = vadd.f32 %v2200, %v2212
          %v2215 = vld [vmem:[%s734] sm:$0xff]
          %v2216 = vld [vmem:[%s734 + $0x8] sm:$0x1]
          %s2217 = sld [smem:[#allocation10 + $0x286]]
          %v2218 = vstv %s2217
          %v2219 = vmul.f32 %v2215, %v2218
          %v2220 = vmul.f32 %v2216, %v2218
          %v2221 = vadd.f32 %v2207, %v2219
          %v2222 = vadd.f32 %v2208, %v2220
          %s2223 = sld [smem:[#allocation10 + $0x287]]
          %v2224 = vstv %s2223
          %v2225 = vmul.f32 %v2215, %v2224
          %v2226 = vmul.f32 %v2216, %v2224
          %v2227 = vadd.f32 %v2213, %v2225
          %v2228 = vadd.f32 %v2214, %v2226
          %v2229 = vld [vmem:[%s794] sm:$0xff]
          %v2230 = vld [vmem:[%s794 + $0x8] sm:$0x1]
          %s2231 = sld [smem:[#allocation10 + $0x306]]
          %v2232 = vstv %s2231
          %v2233 = vmul.f32 %v2229, %v2232
          %v2234 = vmul.f32 %v2230, %v2232
          %v2235 = vadd.f32 %v2221, %v2233
          %v2236 = vadd.f32 %v2222, %v2234
          %s2237 = sld [smem:[#allocation10 + $0x307]]
          %v2238 = vstv %s2237
          %v2239 = vmul.f32 %v2229, %v2238
          %v2240 = vmul.f32 %v2230, %v2238
          %v2241 = vadd.f32 %v2227, %v2239
          %v2242 = vadd.f32 %v2228, %v2240
          %v2243 = vld [vmem:[%s854] sm:$0xff]
          %v2244 = vld [vmem:[%s854 + $0x8] sm:$0x1]
          %s2245 = sld [smem:[#allocation10 + $0x386]]
          %v2246 = vstv %s2245
          %v2247 = vmul.f32 %v2243, %v2246
          %v2248 = vmul.f32 %v2244, %v2246
          %v2249 = vadd.f32 %v2235, %v2247
          %v2250 = vadd.f32 %v2236, %v2248
          %s2251 = sld [smem:[#allocation10 + $0x387]]
          %v2252 = vstv %s2251
          %v2253 = vmul.f32 %v2243, %v2252
          %v2254 = vmul.f32 %v2244, %v2252
          %v2255 = vadd.f32 %v2241, %v2253
          %v2256 = vadd.f32 %v2242, %v2254
          %v2257 = vld [vmem:[%s914] sm:$0xff]
          %v2258 = vld [vmem:[%s914 + $0x8] sm:$0x1]
          %s2259 = sld [smem:[#allocation10 + $0x406]]
          %v2260 = vstv %s2259
          %v2261 = vmul.f32 %v2257, %v2260
          %v2262 = vmul.f32 %v2258, %v2260
          %v2263 = vadd.f32 %v2249, %v2261
          %v2264 = vadd.f32 %v2250, %v2262
          %s2265 = sld [smem:[#allocation10 + $0x407]]
          %v2266 = vstv %s2265
          %v2267 = vmul.f32 %v2257, %v2266
          %v2268 = vmul.f32 %v2258, %v2266
          %v2269 = vadd.f32 %v2255, %v2267
          %v2270 = vadd.f32 %v2256, %v2268
          %v2271 = vld [vmem:[%s974] sm:$0xff]
          %v2272 = vld [vmem:[%s974 + $0x8] sm:$0x1]
          %s2273 = sld [smem:[#allocation10 + $0x486]]
          %v2274 = vstv %s2273
          %v2275 = vmul.f32 %v2271, %v2274
          %v2276 = vmul.f32 %v2272, %v2274
          %v2277 = vadd.f32 %v2263, %v2275
          %v2278 = vadd.f32 %v2264, %v2276
          %s2279 = sld [smem:[#allocation10 + $0x487]]
          %v2280 = vstv %s2279
          %v2281 = vmul.f32 %v2271, %v2280
          %v2282 = vmul.f32 %v2272, %v2280
          %v2283 = vadd.f32 %v2269, %v2281
          %v2284 = vadd.f32 %v2270, %v2282
          %v2285 = vld [vmem:[%s1034] sm:$0xff]
          %v2286 = vld [vmem:[%s1034 + $0x8] sm:$0x1]
          %s2287 = sld [smem:[#allocation10 + $0x506]]
          %v2288 = vstv %s2287
          %v2289 = vmul.f32 %v2285, %v2288
          %v2290 = vmul.f32 %v2286, %v2288
          %v2291 = vadd.f32 %v2277, %v2289
          %v2292 = vadd.f32 %v2278, %v2290
          %s2293 = sld [smem:[#allocation10 + $0x507]]
          %v2294 = vstv %s2293
          %v2295 = vmul.f32 %v2285, %v2294
          %v2296 = vmul.f32 %v2286, %v2294
          %v2297 = vadd.f32 %v2283, %v2295
          %v2298 = vadd.f32 %v2284, %v2296
          %v2299 = vld [vmem:[%s1094] sm:$0xff]
          %v2300 = vld [vmem:[%s1094 + $0x8] sm:$0x1]
          %s2301 = sld [smem:[#allocation10 + $0x586]]
          %v2302 = vstv %s2301
          %v2303 = vmul.f32 %v2299, %v2302
          %v2304 = vmul.f32 %v2300, %v2302
          %v2305 = vadd.f32 %v2291, %v2303
          %v2306 = vadd.f32 %v2292, %v2304
          %s2307 = sld [smem:[#allocation10 + $0x587]]
          %v2308 = vstv %s2307
          %v2309 = vmul.f32 %v2299, %v2308
          %v2310 = vmul.f32 %v2300, %v2308
          %v2311 = vadd.f32 %v2297, %v2309
          %v2312 = vadd.f32 %v2298, %v2310
          %v2313 = vld [vmem:[%s1154] sm:$0xff]
          %v2314 = vld [vmem:[%s1154 + $0x8] sm:$0x1]
          %s2315 = sld [smem:[#allocation10 + $0x606]]
          %v2316 = vstv %s2315
          %v2317 = vmul.f32 %v2313, %v2316
          %v2318 = vmul.f32 %v2314, %v2316
          %v2319 = vadd.f32 %v2305, %v2317
          %v2320 = vadd.f32 %v2306, %v2318
          %s2321 = sld [smem:[#allocation10 + $0x607]]
          %v2322 = vstv %s2321
          %v2323 = vmul.f32 %v2313, %v2322
          %v2324 = vmul.f32 %v2314, %v2322
          %v2325 = vadd.f32 %v2311, %v2323
          %v2326 = vadd.f32 %v2312, %v2324
          %v2327 = vld [vmem:[%s1214] sm:$0xff]
          %v2328 = vld [vmem:[%s1214 + $0x8] sm:$0x1]
          %s2329 = sld [smem:[#allocation10 + $0x686]]
          %v2330 = vstv %s2329
          %v2331 = vmul.f32 %v2327, %v2330
          %v2332 = vmul.f32 %v2328, %v2330
          %v2333 = vadd.f32 %v2319, %v2331
          %v2334 = vadd.f32 %v2320, %v2332
          %s2335 = sld [smem:[#allocation10 + $0x687]]
          %v2336 = vstv %s2335
          %v2337 = vmul.f32 %v2327, %v2336
          %v2338 = vmul.f32 %v2328, %v2336
          %v2339 = vadd.f32 %v2325, %v2337
          %v2340 = vadd.f32 %v2326, %v2338
          %v2341 = vld [vmem:[%s1274] sm:$0xff]
          %v2342 = vld [vmem:[%s1274 + $0x8] sm:$0x1]
          %s2343 = sld [smem:[#allocation10 + $0x706]]
          %v2344 = vstv %s2343
          %v2345 = vmul.f32 %v2341, %v2344
          %v2346 = vmul.f32 %v2342, %v2344
          %v2347 = vadd.f32 %v2333, %v2345
          %v2348 = vadd.f32 %v2334, %v2346
          %s2349 = sld [smem:[#allocation10 + $0x707]]
          %v2350 = vstv %s2349
          %v2351 = vmul.f32 %v2341, %v2350
          %v2352 = vmul.f32 %v2342, %v2350
          %v2353 = vadd.f32 %v2339, %v2351
          %v2354 = vadd.f32 %v2340, %v2352
          %v2355 = vld [vmem:[%s1334] sm:$0xff]
          %v2356 = vld [vmem:[%s1334 + $0x8] sm:$0x1]
          %s2357 = sld [smem:[#allocation10 + $0x786]]
          %v2358 = vstv %s2357
          %v2359 = vmul.f32 %v2355, %v2358
          %v2360 = vmul.f32 %v2356, %v2358
          %v2361 = vadd.f32 %v2347, %v2359
          %v2362 = vadd.f32 %v2348, %v2360
          %s2363 = sld [smem:[#allocation10 + $0x787]]
          %v2364 = vstv %s2363
          %v2365 = vmul.f32 %v2355, %v2364
          %v2366 = vmul.f32 %v2356, %v2364
          %v2367 = vadd.f32 %v2353, %v2365
          %v2368 = vadd.f32 %v2354, %v2366
          %2371 = vrot.lane.b32.xlu0 %v2361, 127
          %v2372 = vpop.permute.xlu0 %2371
          %2373 = vrot.lane.b32.xlu0 %v2362, 127
          %v2374 = vpop.permute.xlu0 %2373
          %v2377 = vmax.f32 %v2361, %v2372
          %v2378 = vmax.f32 %v2362, %v2374
          %v2381 = vrot.slane %v2377, 1
          %v2382 = vrot.slane %v2378, 1
          %v2383 = vsel %vm413, %v2381, %v2382
          %v2385 = vmax.f32 %v2377, %v2383
          %v2386 = vmax.f32 %v2385, 0.0
          %s2387 = scalar_lea.vmem [#allocation4], 48
          %2388 = vst.msk [vmem:[%s2387] sm:$0xff] %vm1583, %v2386
          %2391 = vrot.lane.b32.xlu0 %v2367, 127
          %v2392 = vpop.permute.xlu0 %2391
          %2393 = vrot.lane.b32.xlu0 %v2368, 127
          %v2394 = vpop.permute.xlu0 %2393
          %v2397 = vmax.f32 %v2367, %v2392
          %v2398 = vmax.f32 %v2368, %v2394
          %v2401 = vrot.slane %v2397, 1
          %v2402 = vrot.slane %v2398, 1
          %v2403 = vsel %vm413, %v2401, %v2402
          %v2405 = vmax.f32 %v2397, %v2403
          %v2406 = vmax.f32 %v2405, 0.0
          %s2407 = scalar_lea.vmem [#allocation4], 56
          %2408 = vst.msk [vmem:[%s2407] sm:$0xff] %vm1583, %v2406
          %v2409 = vld [vmem:[#allocation4] sm:$0xff]
          %s2410 = sld [smem:[#allocation13]]
          %v2411 = vstv %s2410
          %v2412 = vmul.f32 %v2409, %v2411
          %s2413 = sld [smem:[#allocation14]]
          %v2414 = vstv %s2413
          %v2415 = vadd.f32 %v2412, %v2414
          %s2416 = sld [smem:[#allocation13 + $0x1]]
          %v2417 = vstv %s2416
          %v2418 = vmul.f32 %v2409, %v2417
          %s2419 = sld [smem:[#allocation14 + $0x1]]
          %v2420 = vstv %s2419
          %v2421 = vadd.f32 %v2418, %v2420
          %v2422 = vld [vmem:[%s1603] sm:$0xff]
          %s2423 = sld [smem:[#allocation13 + $0x80]]
          %v2424 = vstv %s2423
          %v2425 = vmul.f32 %v2422, %v2424
          %v2426 = vadd.f32 %v2415, %v2425
          %s2427 = sld [smem:[#allocation13 + $0x81]]
          %v2428 = vstv %s2427
          %v2429 = vmul.f32 %v2422, %v2428
          %v2430 = vadd.f32 %v2421, %v2429
          %v2431 = vld [vmem:[%s1851] sm:$0xff]
          %s2432 = sld [smem:[#allocation13 + $0x100]]
          %v2433 = vstv %s2432
          %v2434 = vmul.f32 %v2431, %v2433
          %v2435 = vadd.f32 %v2426, %v2434
          %s2436 = sld [smem:[#allocation13 + $0x101]]
          %v2437 = vstv %s2436
          %v2438 = vmul.f32 %v2431, %v2437
          %v2439 = vadd.f32 %v2430, %v2438
          %v2440 = vld [vmem:[%s1871] sm:$0xff]
          %s2441 = sld [smem:[#allocation13 + $0x180]]
          %v2442 = vstv %s2441
          %v2443 = vmul.f32 %v2440, %v2442
          %v2444 = vadd.f32 %v2435, %v2443
          %s2445 = sld [smem:[#allocation13 + $0x181]]
          %v2446 = vstv %s2445
          %v2447 = vmul.f32 %v2440, %v2446
          %v2448 = vadd.f32 %v2439, %v2447
          %v2449 = vld [vmem:[%s2119] sm:$0xff]
          %s2450 = sld [smem:[#allocation13 + $0x200]]
          %v2451 = vstv %s2450
          %v2452 = vmul.f32 %v2449, %v2451
          %v2453 = vadd.f32 %v2444, %v2452
          %s2454 = sld [smem:[#allocation13 + $0x201]]
          %v2455 = vstv %s2454
          %v2456 = vmul.f32 %v2449, %v2455
          %v2457 = vadd.f32 %v2448, %v2456
          %v2458 = vld [vmem:[%s2139] sm:$0xff]
          %s2459 = sld [smem:[#allocation13 + $0x280]]
          %v2460 = vstv %s2459
          %v2461 = vmul.f32 %v2458, %v2460
          %v2462 = vadd.f32 %v2453, %v2461
          %s2463 = sld [smem:[#allocation13 + $0x281]]
          %v2464 = vstv %s2463
          %v2465 = vmul.f32 %v2458, %v2464
          %v2466 = vadd.f32 %v2457, %v2465
          %v2467 = vld [vmem:[%s2387] sm:$0xff]
          %s2468 = sld [smem:[#allocation13 + $0x300]]
          %v2469 = vstv %s2468
          %v2470 = vmul.f32 %v2467, %v2469
          %v2471 = vadd.f32 %v2462, %v2470
          %s2472 = sld [smem:[#allocation13 + $0x301]]
          %v2473 = vstv %s2472
          %v2474 = vmul.f32 %v2467, %v2473
          %v2475 = vadd.f32 %v2466, %v2474
          %v2476 = vld [vmem:[%s2407] sm:$0xff]
          %s2477 = sld [smem:[#allocation13 + $0x380]]
          %v2478 = vstv %s2477
          %v2479 = vmul.f32 %v2476, %v2478
          %v2480 = vadd.f32 %v2471, %v2479
          %s2481 = sld [smem:[#allocation13 + $0x381]]
          %v2482 = vstv %s2481
          %v2483 = vmul.f32 %v2476, %v2482
          %v2484 = vadd.f32 %v2475, %v2483
          %v2485 = vmax.f32 %v2480, -0.1
          %v2486 = vmin.f32 %v2485, 0.3
          %s2487 = scalar_lea.vmem %s335, %s352 [#allocation16]
          %2488 = vst.msk [vmem:[%s2487] sm:$0xff] %vm1583, %v2486
          %v2489 = vmax.f32 %v2484, -0.1
          %v2490 = vmin.f32 %v2489, 0.3
          %s2491 = sadd.s32 %s352, 16
          %s2492 = scalar_lea.vmem %s335, %s2491 [#allocation16]
          %2493 = vst.msk [vmem:[%s2492] sm:$0xff] %vm1583, %v2490
          %v2494 = vld [vmem:[#allocation4] sm:$0xff]
          %s2495 = sld [smem:[#allocation13 + $0x2]]
          %v2496 = vstv %s2495
          %v2497 = vmul.f32 %v2494, %v2496
          %s2498 = sld [smem:[#allocation14 + $0x2]]
          %v2499 = vstv %s2498
          %v2500 = vadd.f32 %v2497, %v2499
          %s2501 = sld [smem:[#allocation13 + $0x3]]
          %v2502 = vstv %s2501
          %v2503 = vmul.f32 %v2494, %v2502
          %s2504 = sld [smem:[#allocation14 + $0x3]]
          %v2505 = vstv %s2504
          %v2506 = vadd.f32 %v2503, %v2505
          %v2507 = vld [vmem:[%s1603] sm:$0xff]
          %s2508 = sld [smem:[#allocation13 + $0x82]]
          %v2509 = vstv %s2508
          %v2510 = vmul.f32 %v2507, %v2509
          %v2511 = vadd.f32 %v2500, %v2510
          %s2512 = sld [smem:[#allocation13 + $0x83]]
          %v2513 = vstv %s2512
          %v2514 = vmul.f32 %v2507, %v2513
          %v2515 = vadd.f32 %v2506, %v2514
          %v2516 = vld [vmem:[%s1851] sm:$0xff]
          %s2517 = sld [smem:[#allocation13 + $0x102]]
          %v2518 = vstv %s2517
          %v2519 = vmul.f32 %v2516, %v2518
          %v2520 = vadd.f32 %v2511, %v2519
          %s2521 = sld [smem:[#allocation13 + $0x103]]
          %v2522 = vstv %s2521
          %v2523 = vmul.f32 %v2516, %v2522
          %v2524 = vadd.f32 %v2515, %v2523
          %v2525 = vld [vmem:[%s1871] sm:$0xff]
          %s2526 = sld [smem:[#allocation13 + $0x182]]
          %v2527 = vstv %s2526
          %v2528 = vmul.f32 %v2525, %v2527
          %v2529 = vadd.f32 %v2520, %v2528
          %s2530 = sld [smem:[#allocation13 + $0x183]]
          %v2531 = vstv %s2530
          %v2532 = vmul.f32 %v2525, %v2531
          %v2533 = vadd.f32 %v2524, %v2532
          %v2534 = vld [vmem:[%s2119] sm:$0xff]
          %s2535 = sld [smem:[#allocation13 + $0x202]]
          %v2536 = vstv %s2535
          %v2537 = vmul.f32 %v2534, %v2536
          %v2538 = vadd.f32 %v2529, %v2537
          %s2539 = sld [smem:[#allocation13 + $0x203]]
          %v2540 = vstv %s2539
          %v2541 = vmul.f32 %v2534, %v2540
          %v2542 = vadd.f32 %v2533, %v2541
          %v2543 = vld [vmem:[%s2139] sm:$0xff]
          %s2544 = sld [smem:[#allocation13 + $0x282]]
          %v2545 = vstv %s2544
          %v2546 = vmul.f32 %v2543, %v2545
          %v2547 = vadd.f32 %v2538, %v2546
          %s2548 = sld [smem:[#allocation13 + $0x283]]
          %v2549 = vstv %s2548
          %v2550 = vmul.f32 %v2543, %v2549
          %v2551 = vadd.f32 %v2542, %v2550
          %v2552 = vld [vmem:[%s2387] sm:$0xff]
          %s2553 = sld [smem:[#allocation13 + $0x302]]
          %v2554 = vstv %s2553
          %v2555 = vmul.f32 %v2552, %v2554
          %v2556 = vadd.f32 %v2547, %v2555
          %s2557 = sld [smem:[#allocation13 + $0x303]]
          %v2558 = vstv %s2557
          %v2559 = vmul.f32 %v2552, %v2558
          %v2560 = vadd.f32 %v2551, %v2559
          %v2561 = vld [vmem:[%s2407] sm:$0xff]
          %s2562 = sld [smem:[#allocation13 + $0x382]]
          %v2563 = vstv %s2562
          %v2564 = vmul.f32 %v2561, %v2563
          %v2565 = vadd.f32 %v2556, %v2564
          %s2566 = sld [smem:[#allocation13 + $0x383]]
          %v2567 = vstv %s2566
          %v2568 = vmul.f32 %v2561, %v2567
          %v2569 = vadd.f32 %v2560, %v2568
          %v2570 = vmax.f32 %v2565, -0.1
          %v2571 = vmin.f32 %v2570, 0.3
          %s2572 = sadd.s32 %s352, 32
          %s2573 = scalar_lea.vmem %s335, %s2572 [#allocation16]
          %2574 = vst.msk [vmem:[%s2573] sm:$0xff] %vm1583, %v2571
          %v2575 = vmax.f32 %v2569, -0.1
          %v2576 = vmin.f32 %v2575, 0.3
          %s2577 = sadd.s32 %s352, 48
          %s2578 = scalar_lea.vmem %s335, %s2577 [#allocation16]
          %2579 = vst.msk [vmem:[%s2578] sm:$0xff] %vm1583, %v2576
          %v2580 = vld [vmem:[#allocation4] sm:$0xff]
          %s2581 = sld [smem:[#allocation13 + $0x4]]
          %v2582 = vstv %s2581
          %v2583 = vmul.f32 %v2580, %v2582
          %s2584 = sld [smem:[#allocation14 + $0x4]]
          %v2585 = vstv %s2584
          %v2586 = vadd.f32 %v2583, %v2585
          %s2587 = sld [smem:[#allocation13 + $0x5]]
          %v2588 = vstv %s2587
          %v2589 = vmul.f32 %v2580, %v2588
          %s2590 = sld [smem:[#allocation14 + $0x5]]
          %v2591 = vstv %s2590
          %v2592 = vadd.f32 %v2589, %v2591
          %v2593 = vld [vmem:[%s1603] sm:$0xff]
          %s2594 = sld [smem:[#allocation13 + $0x84]]
          %v2595 = vstv %s2594
          %v2596 = vmul.f32 %v2593, %v2595
          %v2597 = vadd.f32 %v2586, %v2596
          %s2598 = sld [smem:[#allocation13 + $0x85]]
          %v2599 = vstv %s2598
          %v2600 = vmul.f32 %v2593, %v2599
          %v2601 = vadd.f32 %v2592, %v2600
          %v2602 = vld [vmem:[%s1851] sm:$0xff]
          %s2603 = sld [smem:[#allocation13 + $0x104]]
          %v2604 = vstv %s2603
          %v2605 = vmul.f32 %v2602, %v2604
          %v2606 = vadd.f32 %v2597, %v2605
          %s2607 = sld [smem:[#allocation13 + $0x105]]
          %v2608 = vstv %s2607
          %v2609 = vmul.f32 %v2602, %v2608
          %v2610 = vadd.f32 %v2601, %v2609
          %v2611 = vld [vmem:[%s1871] sm:$0xff]
          %s2612 = sld [smem:[#allocation13 + $0x184]]
          %v2613 = vstv %s2612
          %v2614 = vmul.f32 %v2611, %v2613
          %v2615 = vadd.f32 %v2606, %v2614
          %s2616 = sld [smem:[#allocation13 + $0x185]]
          %v2617 = vstv %s2616
          %v2618 = vmul.f32 %v2611, %v2617
          %v2619 = vadd.f32 %v2610, %v2618
          %v2620 = vld [vmem:[%s2119] sm:$0xff]
          %s2621 = sld [smem:[#allocation13 + $0x204]]
          %v2622 = vstv %s2621
          %v2623 = vmul.f32 %v2620, %v2622
          %v2624 = vadd.f32 %v2615, %v2623
          %s2625 = sld [smem:[#allocation13 + $0x205]]
          %v2626 = vstv %s2625
          %v2627 = vmul.f32 %v2620, %v2626
          %v2628 = vadd.f32 %v2619, %v2627
          %v2629 = vld [vmem:[%s2139] sm:$0xff]
          %s2630 = sld [smem:[#allocation13 + $0x284]]
          %v2631 = vstv %s2630
          %v2632 = vmul.f32 %v2629, %v2631
          %v2633 = vadd.f32 %v2624, %v2632
          %s2634 = sld [smem:[#allocation13 + $0x285]]
          %v2635 = vstv %s2634
          %v2636 = vmul.f32 %v2629, %v2635
          %v2637 = vadd.f32 %v2628, %v2636
          %v2638 = vld [vmem:[%s2387] sm:$0xff]
          %s2639 = sld [smem:[#allocation13 + $0x304]]
          %v2640 = vstv %s2639
          %v2641 = vmul.f32 %v2638, %v2640
          %v2642 = vadd.f32 %v2633, %v2641
          %s2643 = sld [smem:[#allocation13 + $0x305]]
          %v2644 = vstv %s2643
          %v2645 = vmul.f32 %v2638, %v2644
          %v2646 = vadd.f32 %v2637, %v2645
          %v2647 = vld [vmem:[%s2407] sm:$0xff]
          %s2648 = sld [smem:[#allocation13 + $0x384]]
          %v2649 = vstv %s2648
          %v2650 = vmul.f32 %v2647, %v2649
          %v2651 = vadd.f32 %v2642, %v2650
          %s2652 = sld [smem:[#allocation13 + $0x385]]
          %v2653 = vstv %s2652
          %v2654 = vmul.f32 %v2647, %v2653
          %v2655 = vadd.f32 %v2646, %v2654
          %v2656 = vmax.f32 %v2651, -0.1
          %v2657 = vmin.f32 %v2656, 0.3
          %s2658 = sadd.s32 %s352, 64
          %s2659 = scalar_lea.vmem %s335, %s2658 [#allocation16]
          %2660 = vst.msk [vmem:[%s2659] sm:$0xff] %vm1583, %v2657
          %v2661 = vmax.f32 %v2655, -0.1
          %v2662 = vmin.f32 %v2661, 0.3
          %s2663 = sadd.s32 %s352, 80
          %s2664 = scalar_lea.vmem %s335, %s2663 [#allocation16]
          %2665 = vst.msk [vmem:[%s2664] sm:$0xff] %vm1583, %v2662
          %v2666 = vld [vmem:[#allocation4] sm:$0xff]
          %s2667 = sld [smem:[#allocation13 + $0x6]]
          %v2668 = vstv %s2667
          %v2669 = vmul.f32 %v2666, %v2668
          %s2670 = sld [smem:[#allocation14 + $0x6]]
          %v2671 = vstv %s2670
          %v2672 = vadd.f32 %v2669, %v2671
          %s2673 = sld [smem:[#allocation13 + $0x7]]
          %v2674 = vstv %s2673
          %v2675 = vmul.f32 %v2666, %v2674
          %s2676 = sld [smem:[#allocation14 + $0x7]]
          %v2677 = vstv %s2676
          %v2678 = vadd.f32 %v2675, %v2677
          %v2679 = vld [vmem:[%s1603] sm:$0xff]
          %s2680 = sld [smem:[#allocation13 + $0x86]]
          %v2681 = vstv %s2680
          %v2682 = vmul.f32 %v2679, %v2681
          %v2683 = vadd.f32 %v2672, %v2682
          %s2684 = sld [smem:[#allocation13 + $0x87]]
          %v2685 = vstv %s2684
          %v2686 = vmul.f32 %v2679, %v2685
          %v2687 = vadd.f32 %v2678, %v2686
          %v2688 = vld [vmem:[%s1851] sm:$0xff]
          %s2689 = sld [smem:[#allocation13 + $0x106]]
          %v2690 = vstv %s2689
          %v2691 = vmul.f32 %v2688, %v2690
          %v2692 = vadd.f32 %v2683, %v2691
          %s2693 = sld [smem:[#allocation13 + $0x107]]
          %v2694 = vstv %s2693
          %v2695 = vmul.f32 %v2688, %v2694
          %v2696 = vadd.f32 %v2687, %v2695
          %v2697 = vld [vmem:[%s1871] sm:$0xff]
          %s2698 = sld [smem:[#allocation13 + $0x186]]
          %v2699 = vstv %s2698
          %v2700 = vmul.f32 %v2697, %v2699
          %v2701 = vadd.f32 %v2692, %v2700
          %s2702 = sld [smem:[#allocation13 + $0x187]]
          %v2703 = vstv %s2702
          %v2704 = vmul.f32 %v2697, %v2703
          %v2705 = vadd.f32 %v2696, %v2704
          %v2706 = vld [vmem:[%s2119] sm:$0xff]
          %s2707 = sld [smem:[#allocation13 + $0x206]]
          %v2708 = vstv %s2707
          %v2709 = vmul.f32 %v2706, %v2708
          %v2710 = vadd.f32 %v2701, %v2709
          %s2711 = sld [smem:[#allocation13 + $0x207]]
          %v2712 = vstv %s2711
          %v2713 = vmul.f32 %v2706, %v2712
          %v2714 = vadd.f32 %v2705, %v2713
          %v2715 = vld [vmem:[%s2139] sm:$0xff]
          %s2716 = sld [smem:[#allocation13 + $0x286]]
          %v2717 = vstv %s2716
          %v2718 = vmul.f32 %v2715, %v2717
          %v2719 = vadd.f32 %v2710, %v2718
          %s2720 = sld [smem:[#allocation13 + $0x287]]
          %v2721 = vstv %s2720
          %v2722 = vmul.f32 %v2715, %v2721
          %v2723 = vadd.f32 %v2714, %v2722
          %v2724 = vld [vmem:[%s2387] sm:$0xff]
          %s2725 = sld [smem:[#allocation13 + $0x306]]
          %v2726 = vstv %s2725
          %v2727 = vmul.f32 %v2724, %v2726
          %v2728 = vadd.f32 %v2719, %v2727
          %s2729 = sld [smem:[#allocation13 + $0x307]]
          %v2730 = vstv %s2729
          %v2731 = vmul.f32 %v2724, %v2730
          %v2732 = vadd.f32 %v2723, %v2731
          %v2733 = vld [vmem:[%s2407] sm:$0xff]
          %s2734 = sld [smem:[#allocation13 + $0x386]]
          %v2735 = vstv %s2734
          %v2736 = vmul.f32 %v2733, %v2735
          %v2737 = vadd.f32 %v2728, %v2736
          %s2738 = sld [smem:[#allocation13 + $0x387]]
          %v2739 = vstv %s2738
          %v2740 = vmul.f32 %v2733, %v2739
          %v2741 = vadd.f32 %v2732, %v2740
          %v2742 = vmax.f32 %v2737, -0.1
          %v2743 = vmin.f32 %v2742, 0.3
          %s2744 = sadd.s32 %s352, 96
          %s2745 = scalar_lea.vmem %s335, %s2744 [#allocation16]
          %2746 = vst.msk [vmem:[%s2745] sm:$0xff] %vm1583, %v2743
          %v2747 = vmax.f32 %v2741, -0.1
          %v2748 = vmin.f32 %v2747, 0.3
          %s2749 = sadd.s32 %s352, 112
          %s2750 = scalar_lea.vmem %s335, %s2749 [#allocation16]
          %2751 = vst.msk [vmem:[%s2750] sm:$0xff] %vm1583, %v2748
        $region77: #{model_forward.1} parent=47 // loop_footer
          %s347 = sadd.s32 1, %s343
        $region78: #{model_forward.1} parent=47 // loop_footer_branch
          %342 = sbr.rel target = $region74
        $region79: #{model_forward.1} parent=47 // loop_exit
          _
        %s2752 = sand.u32 %s180, 1
        %s2753 = scalar_lea.sflag [#allocation6], %s2752
        %s2754 = sand.u32 %s180, 1
        %s2755 = smul.addr %s2754, 128
        %s2756 = scalar_lea.vmem [#allocation16], %s2755
        // Predicated region
        $region80: #{model_forward.1} parent=47 // pred_check
          %p2757 = pneg %p190
        $region81: #{model_forward.1} parent=47 // pred_check_branch
          %2759 = sbr.rel (%p2757) target = $region83
        $region82: #{model_forward.1} parent=47 // pred_region
          #allocation18 [shape = 'u32[6]{0}', space=smem, size = 0x18, scoped, tag = 'DMA stride descriptor']
          %s2760 = smul.u32 2, %s25
          %s2761 = ssub.s32 5, %s2760
          %p2762 = scmp.lt.s32.totalorder %s2761, 2
          %s2763 = scalar_select %p2762, %s2761, 2
          %s2764 = smul.u32 1024, %s2763
          %s2766 = ssub.s32 2048, %s2764
          %2767 = vsyncadd %s2753, %s2766
          %p2768 = scmp.ne.s32.totalorder 0, %s2764
          %s2769 = smul.addr %s2760, 128
          %s2770 = scalar_lea.hbm %s7, %s2769
          %s2771 = smul.u32 8, %s2763
          %s2772 = smul.u32 %s2771, 8
          %s2774 = sshll.u32 1, 14
          %s2775 = sxor.u32 4294967295, %s2774
          %s2778 = sshll.u32 7, 18
          %s2779 = sxor.u32 4294967295, %s2778
          %s2780 = sand.u32 0, %s2779
          %s2782 = sor.u32 %s2780, 0
          %s2784 = sshll.u32 3, 24
          %s2785 = sxor.u32 4294967295, %s2784
          %s2786 = sand.u32 %s2782, %s2785
          %s2788 = sor.u32 %s2786, 0
          %s2789 = sshll.u32 %s2756, 4
          %s2790 = int_to_ptr.vmem [resolvable:$true] %s2789
          %s2791 = sshll.u32 %s2772, 4
          %2796 = sst [smem:[#allocation18]] 256
          %s2797 = scalar_lea.smem [#allocation18], 1
          %2798 = sst [smem:[%s2797]] 640
          %s2799 = scalar_lea.smem [#allocation18], 2
          %2800 = sst [smem:[%s2799]] %s2763
          %s2801 = scalar_lea.smem [#allocation18], 3
          %2802 = sst [smem:[%s2801]] 128
          %s2803 = scalar_lea.smem [#allocation18], 4
          %2804 = sst [smem:[%s2803]] 128
          %s2805 = scalar_lea.smem [#allocation18], 5
          %2806 = sst [smem:[%s2805]] 8
          %2808 = dma.general (%p2768), %s2790, %s2791, %s2770, %s2753, [#allocation17], [#allocation18], %s2788, 0
        $region83: #{model_forward.1} parent=47 // pred_fallthru
          _
      $region48: #{model_forward.1} parent=5 // pred_fallthru
        _
      %p2809 = scmp.le.s32.totalorder 2, %s20
      // Predicated region
      $region84: #{model_forward.1} parent=5 // pred_check
        %p2810 = pneg %p2809
      $region85: #{model_forward.1} parent=5 // pred_check_branch
        %2812 = sbr.rel (%p2810) target = $region87
      $region86: #{model_forward.1} parent=5 // pred_region
        %s2813 = ssub.s32 %s20, 2
        // Predicated region
        $region88: #{model_forward.1} parent=86 // pred_check
          %p2814 = pneg %p196
        $region89: #{model_forward.1} parent=86 // pred_check_branch
          %2816 = sbr.rel (%p2814) target = $region91
        $region90: #{model_forward.1} parent=86 // pred_region
          %s2817 = sand.u32 %s181, 1
          %s2818 = scalar_lea.sflag [#allocation6], %s2817
          %s2819 = sand.u32 %s181, 1
          %s2820 = smul.addr %s2819, 128
          %s2821 = scalar_lea.vmem [#allocation16], %s2820
          %2822 = dma.done %s2818, 2048
        $region91: #{model_forward.1} parent=86 // pred_fallthru
          _
      $region87: #{model_forward.1} parent=5 // pred_fallthru
        _
    $region6: #{model_forward.1} parent=1 // loop_footer
      %s24 = sadd.s32 1, %s20
    $region7: #{model_forward.1} parent=1 // loop_footer_branch
      %19 = sbr.rel target = $region3
    $region8: #{model_forward.1} parent=1 // loop_exit
      _
    %2823 = vsyncpa [#allocation6], 1
    %s2824 = scalar_lea.sflag [#allocation6], 1
    %2825 = vsyncpa %s2824, 1
    %2826 = vsyncpa [#allocation7], 1
    %s2827 = scalar_lea.sflag [#allocation7], 1
    %2828 = vsyncpa %s2827, 1
    %2829 = vsyncpa [#allocation9], 1
    %2830 = vsyncpa [#allocation12], 1
    %2831 = vsyncpa [#allocation15], 1

</llo_original>
